<compile_context>
chip_gen: v5e
topology: v5e:2x2
jax: 0.10.0
libtpu: 0.0.40
codegen_flags: <defaults>
</compile_context>

<pallas_src>
import math

import jax
import jax.numpy as jnp
from jax.experimental import pallas as pl
from jax.experimental.pallas import tpu as pltpu

# ----------------------- scaled-down config -----------------------
B          = 2          # batch
SEQ_LEN    = 8          # text tokens
NUM_ROI    = 8          # visual regions
S_TOTAL    = SEQ_LEN + NUM_ROI
HIDDEN     = 64         # bert hidden size (768 in the real model)
NUM_HEADS  = 4
HEAD_DIM   = HIDDEN // NUM_HEADS
INTER      = 4 * HIDDEN
IMG_SIZE   = 128        # region-feature dim (2048 in the real model)
NB_VOCAB   = 50         # explanation vocab (+1 for padding idx 0)
NB_ANSWER  = 30
NUM_STEP   = 4          # decoding steps (12 in the real model)
NUM_LAYERS = 2          # bert encoder layers (12 in the real model)
WORD_VOCAB = 100        # text word-embedding vocab
MAX_POS    = 32
LN_EPS     = 1e-12

def _round128(n):
    return ((n + 127) // 128) * 128

V_PAD = _round128(NB_VOCAB + 1)     # lane-dense word-head width
A_PAD = _round128(NB_ANSWER)        # lane-dense answer-head width
_NEG  = -1e9                        # logit pad (exp underflows to exactly 0)

# batch grid axis is independent work -> shard across TensorCores on v7x.
_CP_PAR = pltpu.CompilerParams(dimension_semantics=("parallel",))


# ----------------------- small in-kernel helpers -----------------------
def _rep(a):
    """BlockSpec for an array replicated across the (batch) grid axis."""
    nd = a.ndim
    return pl.BlockSpec(a.shape, lambda b, _n=nd: (0,) * _n)


def _mm(a, w):
    """2-D matmul; activations cast to the (bf16) weight dtype, f32 accumulation."""
    return jax.lax.dot_general(
        a.astype(w.dtype), w,
        dimension_numbers=(((1,), (0,)), ((), ())),
        preferred_element_type=jnp.float32)


def _mm_t(a, b):
    """2-D matmul with rhs transposed: (M,K)@(N,K)->(M,N), bf16 MXU, f32 acc."""
    return jax.lax.dot_general(
        a.astype(jnp.bfloat16), b.astype(jnp.bfloat16),
        dimension_numbers=(((1,), (1,)), ((), ())),
        preferred_element_type=jnp.float32)


def _ln(x, g, b):
    mu = jnp.mean(x, axis=-1, keepdims=True)
    c = x - mu
    var = jnp.mean(c * c, axis=-1, keepdims=True)
    return c * jax.lax.rsqrt(var + LN_EPS) * g + b


_SQRT_2_OVER_PI = 0.7978845608028654


def _gelu(x):
    # TODO(synk): HF BERT uses exact erf-GELU; tanh approximation used here since
    #             lax.erf lowering inside Mosaic is not guaranteed.
    return 0.5 * x * (1.0 + jnp.tanh(_SQRT_2_OVER_PI * (x + 0.044715 * x * x * x)))


# ----------------------- the single fused kernel -----------------------
def _forward_kernel(txt_ref, img_ref, mask_ref,
                    visw_ref, visb_ref, eg_ref, eb_ref,
                    wqkv_ref, bqkv_ref, wo_ref, bo_ref, ln1g_ref, ln1b_ref,
                    wi_ref, bi_ref, wo2_ref, bo2_ref, ln2g_ref, ln2b_ref,
                    attvw_ref, attvb_ref, clsw_ref, clsb_ref,
                    atthw_ref, atthb_ref, attw_ref, attb_ref,
                    arwx_ref, arbx_ref, arwh_ref, arbh_ref, armh_ref, armhb_ref,
                    vfcw_ref, vfcb_ref,
                    lrwx_ref, lrbx_ref, lrwh_ref, lrbh_ref, lrmh_ref, lrmhb_ref,
                    langw_ref, langb_ref, expemb_ref,
                    sent_ref, ans_ref):
    # ------------- embeddings: visual projection + LayerNorm -------------
    g = eg_ref[...]
    be = eb_ref[...]
    txt = _ln(txt_ref[0], g, be)                                        # (L, H)
    vis = _ln(_mm(img_ref[0], visw_ref[...]) + visb_ref[...], g, be)    # (R, H)
    x = jnp.concatenate([txt, vis], axis=0)                             # (S, H)
    mask = mask_ref[0]                                                  # (1, S) additive bias

    # ------------- BERT encoder: all layers with VMEM-resident x -------------
    scale = 1.0 / math.sqrt(HEAD_DIM)
    for l in range(NUM_LAYERS):
        qkv = _mm(x, wqkv_ref[l]) + bqkv_ref[l]                         # (S, 3H) one lane-dense matmul
        ctx_heads = []
        for h in range(NUM_HEADS):
            q = qkv[:, h * HEAD_DIM:(h + 1) * HEAD_DIM]
            k = qkv[:, HIDDEN + h * HEAD_DIM:HIDDEN + (h + 1) * HEAD_DIM]
            v = qkv[:, 2 * HIDDEN + h * HEAD_DIM:2 * HIDDEN + (h + 1) * HEAD_DIM]
            s = _mm_t(q, k) * scale + mask                              # (S, S)
            m = jnp.max(s, axis=-1, keepdims=True)
            e = jnp.exp(s - m)
            p = e * pl.reciprocal(jnp.sum(e, axis=-1, keepdims=True), approx=True)
            ctx_heads.append(_mm(p, v.astype(jnp.bfloat16)))            # (S, HD)
        ctx = jnp.concatenate(ctx_heads, axis=-1)                       # (S, H) head-major
        attn_out = _mm(ctx, wo_ref[l]) + bo_ref[l]                      # single output proj
        x1 = _ln(attn_out + x, ln1g_ref[l], ln1b_ref[l])
        inter = _gelu(_mm(x1, wi_ref[l]) + bi_ref[l])                   # (S, INTER)
        x = _ln(_mm(inter, wo2_ref[l]) + bo2_ref[l] + x1, ln2g_ref[l], ln2b_ref[l])

    cls = x[0:1, :]                                                     # (1, H)

    # ------------- answer head + decoder query features (one cls matmul slab) ---
    cls_proj = _mm(cls, clsw_ref[...]) + clsb_ref[...]                  # (1, 2H + A_PAD)
    q_att = jnp.tanh(cls_proj[:, :HIDDEN])
    q_enc = jnp.tanh(cls_proj[:, HIDDEN:2 * HIDDEN])
    ans_logits = cls_proj[:, 2 * HIDDEN:]                               # padded cols biased -1e9
    am = jnp.max(ans_logits, axis=-1, keepdims=True)
    ae = jnp.exp(ans_logits - am)
    ans_ref[0] = ae / jnp.sum(ae, axis=-1, keepdims=True)               # exact softmax

    # ------------- explanation decoder (all NUM_STEP steps) -------------
    img = img_ref[0]                                                    # (R, IMG)
    fuse = jnp.tanh(_mm(img, attvw_ref[...]) + attvb_ref[...]) * q_att  # (R, H)
    fuse_mean = jnp.mean(fuse, axis=0, keepdims=True)                   # x_1 at t=0
    fuse_sum = jnp.sum(fuse, axis=0, keepdims=True)                     # x_1 for t>0
    lane_ids = jax.lax.broadcasted_iota(jnp.int32, (1, V_PAD), 1)

    def gru(xv, hv, wx_ref, bx_ref, wh_ref, bh_ref, wmh_ref, bmh_ref):
        # packed gate weights: wx (Din, 3H)=[update|reset|memory], wh (H, 2H)=[update|reset]
        gx = _mm(xv, wx_ref[...]) + bx_ref[...]                         # (1, 3H)
        gh = _mm(hv, wh_ref[...]) + bh_ref[...]                         # (1, 2H)
        z = jax.nn.sigmoid(gx[:, :HIDDEN] + gh[:, :HIDDEN])
        r = jax.nn.sigmoid(gx[:, HIDDEN:2 * HIDDEN] + gh[:, HIDDEN:])
        m = jnp.tanh(gx[:, 2 * HIDDEN:] + _mm(r * hv, wmh_ref[...]) + bmh_ref[...])
        return (1.0 - z) * hv + z * m

    # default ss_rate=2 -> scheduled sampling always feeds back the model's own
    # argmax prediction (the `exp` ground-truth branch is dead in the reference).
    def step(t, carry):
        h2, prev_word = carry
        fuse_in = jnp.where(t == 0, fuse_mean, fuse_sum)
        x1 = jnp.concatenate([fuse_in, h2, prev_word], axis=-1)         # (1, 3H)
        h1 = gru(x1, h2, arwx_ref, arbx_ref, arwh_ref, arbh_ref, armh_ref, armhb_ref)
        att_h = jnp.tanh(_mm(h1, atthw_ref[...]) + atthb_ref[...] + fuse)      # (R, H)
        # att(.) is a (H,1) linear -> VPU multiply + lane reduce (no N=1 MXU op)
        logit = jnp.sum(att_h * attw_ref[...], axis=-1, keepdims=True) + attb_ref[...]  # (R, 1)
        lm = jnp.max(logit, axis=0, keepdims=True)                      # softmax over regions
        le = jnp.exp(logit - lm)
        att = le * pl.reciprocal(jnp.sum(le, axis=0, keepdims=True), approx=True)
        att_x = jnp.sum(att * img, axis=0, keepdims=True)               # (1, IMG) readout
        v_enc = jnp.tanh(_mm(att_x, vfcw_ref[...]) + vfcb_ref[...])     # (1, H)
        x2 = jnp.concatenate([v_enc * q_enc, h1], axis=-1)              # (1, 2H)
        h2n = gru(x2, h2, lrwx_ref, lrbx_ref, lrwh_ref, lrbh_ref, lrmh_ref, lrmhb_ref)
        wl = _mm(h2n, langw_ref[...]) + langb_ref[...]                  # (1, V_PAD)
        wm = jnp.max(wl, axis=-1, keepdims=True)
        we = jnp.exp(wl - wm)
        pred = we / jnp.sum(we, axis=-1, keepdims=True)                 # exact softmax
        sent_ref[0, t] = pred                                           # lane-dense store
        # argmax feedback through the explanation embedding (first maximal index)
        mx = jnp.max(pred, axis=-1, keepdims=True)
        idx = jnp.min(jnp.where(pred == mx, lane_ids, V_PAD))
        idx = jnp.minimum(idx, NB_VOCAB)
        return (h2n, expemb_ref[idx])

    h0 = jnp.zeros((1, HIDDEN), jnp.float32)
    _ = jax.lax.fori_loop(0, NUM_STEP, step, (h0, h0))


# ----------------------- forward pass -----------------------
def visualbert_rex_forward(p, img, input_ids, token_type, attention_mask):
    Bb = img.shape[0]

    # text embeddings (gathers stay in plain JAX)
    txt = (p["word_emb"][input_ids] + p["tok_type_emb"][token_type]
           + p["pos_emb"][:SEQ_LEN][None, :, :])                        # (B, L, H)

    # extended attention mask
    visual_mask = jnp.ones((Bb, NUM_ROI), jnp.float32)
    concat_mask = jnp.concatenate([attention_mask, visual_mask], axis=1)     # (B, S)
    mask_bias = ((1.0 - concat_mask) * -10000.0).reshape(Bb, 1, S_TOTAL)     # (B, 1, S)

    args = (txt, img, mask_bias,
            p["vis_proj_w"], p["vis_bias"], p["emb_ln_g"], p["emb_ln_b"],
            p["wqkv"], p["bqkv"], p["wo"], p["bo"], p["ln1_g"], p["ln1_b"],
            p["wi"], p["bi"], p["wo2"], p["bo2"], p["ln2_g"], p["ln2_b"],
            p["att_v_w"], p["att_v_b"], p["cls_w"], p["cls_b"],
            p["att_h_w"], p["att_h_b"], p["att_w"], p["att_b"],
            p["ar_wx"], p["ar_bx"], p["ar_wh"], p["ar_bh"], p["ar_wmh"], p["ar_bmh"],
            p["v_fc_w"], p["v_fc_b"],
            p["lr_wx"], p["lr_bx"], p["lr_wh"], p["lr_bh"], p["lr_wmh"], p["lr_bmh"],
            p["lang_w"], p["lang_b"], p["exp_emb"])

    in_specs = ([pl.BlockSpec((1, SEQ_LEN, HIDDEN), lambda b: (b, 0, 0)),
                 pl.BlockSpec((1, NUM_ROI, IMG_SIZE), lambda b: (b, 0, 0)),
                 pl.BlockSpec((1, 1, S_TOTAL), lambda b: (b, 0, 0))]
                + [_rep(a) for a in args[3:]])

    sent4, ans3 = pl.pallas_call(
        _forward_kernel,
        out_shape=(jax.ShapeDtypeStruct((Bb, NUM_STEP, 1, V_PAD), jnp.float32),
                   jax.ShapeDtypeStruct((Bb, 1, A_PAD), jnp.float32)),
        grid=(Bb,),
        in_specs=in_specs,
        out_specs=(pl.BlockSpec((1, NUM_STEP, 1, V_PAD), lambda b: (b, 0, 0, 0)),
                   pl.BlockSpec((1, 1, A_PAD), lambda b: (b, 0, 0))),
        compiler_params=_CP_PAR,
    )(*args)

    output_sent = sent4.reshape(Bb, NUM_STEP, V_PAD)[:, :, :NB_VOCAB + 1]
    output_ans = ans3.reshape(Bb, A_PAD)[:, :NB_ANSWER]
    return output_ans, output_sent


# ----------------------- deterministic parameter init (PyTorch layout) -----------------------
def init_params(seed=0):
    keys = iter(jax.random.split(jax.random.PRNGKey(seed), 512))

    def w(shape, scale=0.02):
        return (scale * jax.random.normal(next(keys), shape)).astype(jnp.float32)

    def zeros(shape):
        return jnp.zeros(shape, jnp.float32)

    def ones(shape):
        return jnp.ones(shape, jnp.float32)

    def make_gru(din, h):
        return {
            "Wux": w((din, h)), "bux": zeros((h,)), "Wuh": w((h, h)), "buh": zeros((h,)),
            "Wrx": w((din, h)), "brx": zeros((h,)), "Wrh": w((h, h)), "brh": zeros((h,)),
            "Wmx": w((din, h)), "bmx": zeros((h,)), "Wmh": w((h, h)), "bmh": zeros((h,)),
        }

    layers = []
    for _ in range(NUM_LAYERS):
        layers.append({
            "Wq": w((HIDDEN, HIDDEN)), "bq": zeros((HIDDEN,)),
            "Wk": w((HIDDEN, HIDDEN)), "bk": zeros((HIDDEN,)),
            "Wv": w((HIDDEN, HIDDEN)), "bv": zeros((HIDDEN,)),
            "Wo": w((HIDDEN, HIDDEN)), "bo": zeros((HIDDEN,)),
            "ln1_g": ones((HIDDEN,)), "ln1_b": zeros((HIDDEN,)),
            "Wi": w((HIDDEN, INTER)), "bi": zeros((INTER,)),
            "Wo2": w((INTER, HIDDEN)), "bo2": zeros((HIDDEN,)),
            "ln2_g": ones((HIDDEN,)), "ln2_b": zeros((HIDDEN,)),
        })

    return {
        "word_emb": w((WORD_VOCAB, HIDDEN)),
        "pos_emb": w((MAX_POS, HIDDEN)),
        "tok_type_emb": w((2, HIDDEN)),
        "vis_proj_w": w((IMG_SIZE, HIDDEN)), "vis_proj_b": zeros((HIDDEN,)),
        "vis_tok_type_emb": w((2, HIDDEN)),
        "vis_pos_emb": w((MAX_POS, HIDDEN)),
        "emb_ln_g": ones((HIDDEN,)), "emb_ln_b": zeros((HIDDEN,)),
        "layers": layers,
        "ans_cls_w": w((HIDDEN, NB_ANSWER)), "ans_cls_b": zeros((NB_ANSWER,)),
        "exp_emb": w((NB_VOCAB + 1, HIDDEN)).at[0].set(0.0),   # padding_idx=0
        "att_q_w": w((HIDDEN, HIDDEN)), "att_q_b": zeros((HIDDEN,)),
        "att_v_w": w((IMG_SIZE, HIDDEN)), "att_v_b": zeros((HIDDEN,)),
        "att_h_w": w((HIDDEN, HIDDEN)), "att_h_b": zeros((HIDDEN,)),
        "att_w": w((HIDDEN, 1)), "att_b": zeros((1,)),
        "att_rnn": make_gru(3 * HIDDEN, HIDDEN),
        "q_fc_w": w((HIDDEN, HIDDEN)), "q_fc_b": zeros((HIDDEN,)),
        "v_fc_w": w((IMG_SIZE, HIDDEN)), "v_fc_b": zeros((HIDDEN,)),
        "language_rnn": make_gru(2 * HIDDEN, HIDDEN),
        "lang_fc_w": w((HIDDEN, NB_VOCAB + 1)), "lang_fc_b": zeros((NB_VOCAB + 1,)),
        # TODO(synk): sent_cls and the use_structure branch (structure_mapping .pth load)
        #             are omitted — neither participates in the default forward path.
    }


# ----------------------- repack into fused kernel layouts -----------------------
def pack_params(p):
    """Repack raw (PyTorch-layout) params into the fused-kernel layouts (bf16 weights,
    lane-dense fused slabs, layer-stacked encoder weights, 128-padded output heads)."""
    bf = lambda a: a.astype(jnp.bfloat16)

    def stack(fn):
        return jnp.stack([fn(lp) for lp in p["layers"]], axis=0)

    out = {
        "word_emb": p["word_emb"], "tok_type_emb": p["tok_type_emb"], "pos_emb": p["pos_emb"],
        "vis_proj_w": bf(p["vis_proj_w"]),
        "vis_bias": (p["vis_proj_b"] + p["vis_tok_type_emb"][1]
                     + p["vis_pos_emb"][0]).reshape(1, HIDDEN),
        "emb_ln_g": p["emb_ln_g"].reshape(1, HIDDEN),
        "emb_ln_b": p["emb_ln_b"].reshape(1, HIDDEN),
        # ---- encoder, stacked over layers; QKV fused along output features ----
        "wqkv": bf(stack(lambda lp: jnp.concatenate([lp["Wq"], lp["Wk"], lp["Wv"]], axis=1))),
        "bqkv": stack(lambda lp: jnp.concatenate([lp["bq"], lp["bk"], lp["bv"]]).reshape(1, 3 * HIDDEN)),
        "wo": bf(stack(lambda lp: lp["Wo"])),
        "bo": stack(lambda lp: lp["bo"].reshape(1, HIDDEN)),
        "ln1_g": stack(lambda lp: lp["ln1_g"].reshape(1, HIDDEN)),
        "ln1_b": stack(lambda lp: lp["ln1_b"].reshape(1, HIDDEN)),
        "wi": bf(stack(lambda lp: lp["Wi"])),
        "bi": stack(lambda lp: lp["bi"].reshape(1, INTER)),
        "wo2": bf(stack(lambda lp: lp["Wo2"])),
        "bo2": stack(lambda lp: lp["bo2"].reshape(1, HIDDEN)),
        "ln2_g": stack(lambda lp: lp["ln2_g"].reshape(1, HIDDEN)),
        "ln2_b": stack(lambda lp: lp["ln2_b"].reshape(1, HIDDEN)),
    }

    # ---- decoder cls slab: [att_q | q_fc | ans_cls(padded to A_PAD)] ----
    ans_w_pad = jnp.pad(p["ans_cls_w"], ((0, 0), (0, A_PAD - NB_ANSWER)))
    ans_b_pad = jnp.full((A_PAD,), _NEG, jnp.float32).at[:NB_ANSWER].set(p["ans_cls_b"])
    out["cls_w"] = bf(jnp.concatenate([p["att_q_w"], p["q_fc_w"], ans_w_pad], axis=1))
    out["cls_b"] = jnp.concatenate([p["att_q_b"], p["q_fc_b"], ans_b_pad]).reshape(1, 2 * HIDDEN + A_PAD)

    out["att_v_w"] = bf(p["att_v_w"]); out["att_v_b"] = p["att_v_b"].reshape(1, HIDDEN)
    out["att_h_w"] = bf(p["att_h_w"]); out["att_h_b"] = p["att_h_b"].reshape(1, HIDDEN)
    out["att_w"] = p["att_w"].reshape(1, HIDDEN)      # used as a VPU row-reduce, keep f32
    out["att_b"] = p["att_b"].reshape(1, 1)
    out["v_fc_w"] = bf(p["v_fc_w"]); out["v_fc_b"] = p["v_fc_b"].reshape(1, HIDDEN)

    def pack_gru(g, prefix):
        out[prefix + "_wx"] = bf(jnp.concatenate([g["Wux"], g["Wrx"], g["Wmx"]], axis=1))  # (Din, 3H)
        out[prefix + "_bx"] = jnp.concatenate([g["bux"], g["brx"], g["bmx"]]).reshape(1, 3 * HIDDEN)
        out[prefix + "_wh"] = bf(jnp.concatenate([g["Wuh"], g["Wrh"]], axis=1))            # (H, 2H)
        out[prefix + "_bh"] = jnp.concatenate([g["buh"], g["brh"]]).reshape(1, 2 * HIDDEN)
        out[prefix + "_wmh"] = bf(g["Wmh"])
        out[prefix + "_bmh"] = g["bmh"].reshape(1, HIDDEN)

    pack_gru(p["att_rnn"], "ar")
    pack_gru(p["language_rnn"], "lr")

    # ---- word head padded to V_PAD lanes (bias -1e9 on padding) ----
    out["lang_w"] = bf(jnp.pad(p["lang_fc_w"], ((0, 0), (0, V_PAD - (NB_VOCAB + 1)))))
    out["lang_b"] = (jnp.full((V_PAD,), _NEG, jnp.float32)
                     .at[:NB_VOCAB + 1].set(p["lang_fc_b"]).reshape(1, V_PAD))
    out["exp_emb"] = p["exp_emb"].reshape(NB_VOCAB + 1, 1, HIDDEN)
    return out


# ----------------------- main -----------------------
if __name__ == "__main__":
    raw_params = init_params(0)
    params = pack_params(raw_params)

    key = jax.random.PRNGKey(0)
    k_img, k_ids = jax.random.split(key)
    img = jax.random.normal(k_img, (B, NUM_ROI, IMG_SIZE), jnp.float32)
    input_ids = jax.random.randint(k_ids, (B, SEQ_LEN), 0, WORD_VOCAB, dtype=jnp.int32)
    token_type = jnp.zeros((B, SEQ_LEN), jnp.int32)
    attention_mask = jnp.ones((B, SEQ_LEN), jnp.float32)

    fwd = jax.jit(visualbert_rex_forward)
    output_ans, output_sent = fwd(params, img, input_ids, token_type, attention_mask)
    jax.block_until_ready((output_ans, output_sent))

    assert output_ans.shape == (B, NB_ANSWER)
    assert output_sent.shape == (B, NUM_STEP, NB_VOCAB + 1)
    print("KERNEL_OK")
</pallas_src>

<mosaic_0001>
module attributes {stable_mosaic.version = 11 : i64} {
  func.func @_forward_kernel(%arg0: i32, %arg1: memref<1x8x64xf32, #tpu.memory_space<vmem>>, %arg2: memref<1x8x128xf32, #tpu.memory_space<vmem>>, %arg3: memref<1x1x16xf32, #tpu.memory_space<vmem>>, %arg4: memref<128x64xbf16, #tpu.memory_space<vmem>>, %arg5: memref<1x64xf32, #tpu.memory_space<vmem>>, %arg6: memref<1x64xf32, #tpu.memory_space<vmem>>, %arg7: memref<1x64xf32, #tpu.memory_space<vmem>>, %arg8: memref<2x64x192xbf16, #tpu.memory_space<vmem>>, %arg9: memref<2x1x192xf32, #tpu.memory_space<vmem>>, %arg10: memref<2x64x64xbf16, #tpu.memory_space<vmem>>, %arg11: memref<2x1x64xf32, #tpu.memory_space<vmem>>, %arg12: memref<2x1x64xf32, #tpu.memory_space<vmem>>, %arg13: memref<2x1x64xf32, #tpu.memory_space<vmem>>, %arg14: memref<2x64x256xbf16, #tpu.memory_space<vmem>>, %arg15: memref<2x1x256xf32, #tpu.memory_space<vmem>>, %arg16: memref<2x256x64xbf16, #tpu.memory_space<vmem>>, %arg17: memref<2x1x64xf32, #tpu.memory_space<vmem>>, %arg18: memref<2x1x64xf32, #tpu.memory_space<vmem>>, %arg19: memref<2x1x64xf32, #tpu.memory_space<vmem>>, %arg20: memref<128x64xbf16, #tpu.memory_space<vmem>>, %arg21: memref<1x64xf32, #tpu.memory_space<vmem>>, %arg22: memref<64x256xbf16, #tpu.memory_space<vmem>>, %arg23: memref<1x256xf32, #tpu.memory_space<vmem>>, %arg24: memref<64x64xbf16, #tpu.memory_space<vmem>>, %arg25: memref<1x64xf32, #tpu.memory_space<vmem>>, %arg26: memref<1x64xf32, #tpu.memory_space<vmem>>, %arg27: memref<1x1xf32, #tpu.memory_space<vmem>>, %arg28: memref<192x192xbf16, #tpu.memory_space<vmem>>, %arg29: memref<1x192xf32, #tpu.memory_space<vmem>>, %arg30: memref<64x128xbf16, #tpu.memory_space<vmem>>, %arg31: memref<1x128xf32, #tpu.memory_space<vmem>>, %arg32: memref<64x64xbf16, #tpu.memory_space<vmem>>, %arg33: memref<1x64xf32, #tpu.memory_space<vmem>>, %arg34: memref<128x64xbf16, #tpu.memory_space<vmem>>, %arg35: memref<1x64xf32, #tpu.memory_space<vmem>>, %arg36: memref<128x192xbf16, #tpu.memory_space<vmem>>, %arg37: memref<1x192xf32, #tpu.memory_space<vmem>>, %arg38: memref<64x128xbf16, #tpu.memory_space<vmem>>, %arg39: memref<1x128xf32, #tpu.memory_space<vmem>>, %arg40: memref<64x64xbf16, #tpu.memory_space<vmem>>, %arg41: memref<1x64xf32, #tpu.memory_space<vmem>>, %arg42: memref<64x128xbf16, #tpu.memory_space<vmem>>, %arg43: memref<1x128xf32, #tpu.memory_space<vmem>>, %arg44: memref<51x1x64xf32, #tpu.memory_space<vmem>>, %arg45: memref<1x4x1x128xf32, #tpu.memory_space<vmem>>, %arg46: memref<1x1x128xf32, #tpu.memory_space<vmem>>) attributes {dimension_semantics = [#tpu.dimension_semantics<parallel>], iteration_bounds = array<i64: 2>, scalar_prefetch = 0 : i64, scratch_operands = 0 : i64, tpu.core_type = #tpu.core_type<tc>, window_params = [{transform_indices = @transform_0, window_bounds = array<i64: 1, 8, 64>}, {transform_indices = @transform_1, window_bounds = array<i64: 1, 8, 128>}, {transform_indices = @transform_2, window_bounds = array<i64: 1, 1, 16>}, {pipeline_mode = #tpu.pipeline_mode<synchronous>, transform_indices = @transform_3, window_bounds = array<i64: 128, 64>}, {pipeline_mode = #tpu.pipeline_mode<synchronous>, transform_indices = @transform_4, window_bounds = array<i64: 1, 64>}, {pipeline_mode = #tpu.pipeline_mode<synchronous>, transform_indices = @transform_5, window_bounds = array<i64: 1, 64>}, {pipeline_mode = #tpu.pipeline_mode<synchronous>, transform_indices = @transform_6, window_bounds = array<i64: 1, 64>}, {pipeline_mode = #tpu.pipeline_mode<synchronous>, transform_indices = @transform_7, window_bounds = array<i64: 2, 64, 192>}, {pipeline_mode = #tpu.pipeline_mode<synchronous>, transform_indices = @transform_8, window_bounds = array<i64: 2, 1, 192>}, {pipeline_mode = #tpu.pipeline_mode<synchronous>, transform_indices = @transform_9, window_bounds = array<i64: 2, 64, 64>}, {pipeline_mode = #tpu.pipeline_mode<synchronous>, transform_indices = @transform_10, window_bounds = array<i64: 2, 1, 64>}, {pipeline_mode = #tpu.pipeline_mode<synchronous>, transform_indices = @transform_11, window_bounds = array<i64: 2, 1, 64>}, {pipeline_mode = #tpu.pipeline_mode<synchronous>, transform_indices = @transform_12, window_bounds = array<i64: 2, 1, 64>}, {pipeline_mode = #tpu.pipeline_mode<synchronous>, transform_indices = @transform_13, window_bounds = array<i64: 2, 64, 256>}, {pipeline_mode = #tpu.pipeline_mode<synchronous>, transform_indices = @transform_14, window_bounds = array<i64: 2, 1, 256>}, {pipeline_mode = #tpu.pipeline_mode<synchronous>, transform_indices = @transform_15, window_bounds = array<i64: 2, 256, 64>}, {pipeline_mode = #tpu.pipeline_mode<synchronous>, transform_indices = @transform_16, window_bounds = array<i64: 2, 1, 64>}, {pipeline_mode = #tpu.pipeline_mode<synchronous>, transform_indices = @transform_17, window_bounds = array<i64: 2, 1, 64>}, {pipeline_mode = #tpu.pipeline_mode<synchronous>, transform_indices = @transform_18, window_bounds = array<i64: 2, 1, 64>}, {pipeline_mode = #tpu.pipeline_mode<synchronous>, transform_indices = @transform_19, window_bounds = array<i64: 128, 64>}, {pipeline_mode = #tpu.pipeline_mode<synchronous>, transform_indices = @transform_20, window_bounds = array<i64: 1, 64>}, {pipeline_mode = #tpu.pipeline_mode<synchronous>, transform_indices = @transform_21, window_bounds = array<i64: 64, 256>}, {pipeline_mode = #tpu.pipeline_mode<synchronous>, transform_indices = @transform_22, window_bounds = array<i64: 1, 256>}, {pipeline_mode = #tpu.pipeline_mode<synchronous>, transform_indices = @transform_23, window_bounds = array<i64: 64, 64>}, {pipeline_mode = #tpu.pipeline_mode<synchronous>, transform_indices = @transform_24, window_bounds = array<i64: 1, 64>}, {pipeline_mode = #tpu.pipeline_mode<synchronous>, transform_indices = @transform_25, window_bounds = array<i64: 1, 64>}, {pipeline_mode = #tpu.pipeline_mode<synchronous>, transform_indices = @transform_26, window_bounds = array<i64: 1, 1>}, {pipeline_mode = #tpu.pipeline_mode<synchronous>, transform_indices = @transform_27, window_bounds = array<i64: 192, 192>}, {pipeline_mode = #tpu.pipeline_mode<synchronous>, transform_indices = @transform_28, window_bounds = array<i64: 1, 192>}, {pipeline_mode = #tpu.pipeline_mode<synchronous>, transform_indices = @transform_29, window_bounds = array<i64: 64, 128>}, {pipeline_mode = #tpu.pipeline_mode<synchronous>, transform_indices = @transform_30, window_bounds = array<i64: 1, 128>}, {pipeline_mode = #tpu.pipeline_mode<synchronous>, transform_indices = @transform_31, window_bounds = array<i64: 64, 64>}, {pipeline_mode = #tpu.pipeline_mode<synchronous>, transform_indices = @transform_32, window_bounds = array<i64: 1, 64>}, {pipeline_mode = #tpu.pipeline_mode<synchronous>, transform_indices = @transform_33, window_bounds = array<i64: 128, 64>}, {pipeline_mode = #tpu.pipeline_mode<synchronous>, transform_indices = @transform_34, window_bounds = array<i64: 1, 64>}, {pipeline_mode = #tpu.pipeline_mode<synchronous>, transform_indices = @transform_35, window_bounds = array<i64: 128, 192>}, {pipeline_mode = #tpu.pipeline_mode<synchronous>, transform_indices = @transform_36, window_bounds = array<i64: 1, 192>}, {pipeline_mode = #tpu.pipeline_mode<synchronous>, transform_indices = @transform_37, window_bounds = array<i64: 64, 128>}, {pipeline_mode = #tpu.pipeline_mode<synchronous>, transform_indices = @transform_38, window_bounds = array<i64: 1, 128>}, {pipeline_mode = #tpu.pipeline_mode<synchronous>, transform_indices = @transform_39, window_bounds = array<i64: 64, 64>}, {pipeline_mode = #tpu.pipeline_mode<synchronous>, transform_indices = @transform_40, window_bounds = array<i64: 1, 64>}, {pipeline_mode = #tpu.pipeline_mode<synchronous>, transform_indices = @transform_41, window_bounds = array<i64: 64, 128>}, {pipeline_mode = #tpu.pipeline_mode<synchronous>, transform_indices = @transform_42, window_bounds = array<i64: 1, 128>}, {pipeline_mode = #tpu.pipeline_mode<synchronous>, transform_indices = @transform_43, window_bounds = array<i64: 51, 1, 64>}, {transform_indices = @transform_44, window_bounds = array<i64: 1, 4, 1, 128>}, {transform_indices = @transform_45, window_bounds = array<i64: 1, 1, 128>}]} {
    %c0 = arith.constant 0 : index
    %c0_0 = arith.constant 0 : index
    %0 = vector.load %arg6[%c0, %c0_0] : memref<1x64xf32, #tpu.memory_space<vmem>>, vector<1x64xf32>
    %c0_1 = arith.constant 0 : index
    %c0_2 = arith.constant 0 : index
    %1 = vector.load %arg7[%c0_1, %c0_2] : memref<1x64xf32, #tpu.memory_space<vmem>>, vector<1x64xf32>
    %c0_3 = arith.constant 0 : index
    %c0_4 = arith.constant 0 : index
    %c0_5 = arith.constant 0 : index
    %2 = vector.load %arg1[%c0_3, %c0_4, %c0_5] : memref<1x8x64xf32, #tpu.memory_space<vmem>>, vector<1x8x64xf32>
    %3 = vector.shape_cast %2 : vector<1x8x64xf32> to vector<8x64xf32>
    %cst = arith.constant dense<0.000000e+00> : vector<8xf32>
    %4 = vector.multi_reduction <add>, %3, %cst [1] : vector<8x64xf32> to vector<8xf32>
    %5 = vector.shape_cast %4 : vector<8xf32> to vector<8x1xf32>
    %cst_6 = arith.constant 6.400000e+01 : f32
    %6 = vector.broadcast %cst_6 : f32 to vector<8x1xf32>
    %7 = arith.divf %5, %6 : vector<8x1xf32>
    %8 = vector.broadcast %7 : vector<8x1xf32> to vector<8x64xf32>
    %9 = arith.subf %3, %8 : vector<8x64xf32>
    %10 = arith.mulf %9, %9 : vector<8x64xf32>
    %cst_7 = arith.constant dense<0.000000e+00> : vector<8xf32>
    %11 = vector.multi_reduction <add>, %10, %cst_7 [1] : vector<8x64xf32> to vector<8xf32>
    %12 = vector.shape_cast %11 : vector<8xf32> to vector<8x1xf32>
    %cst_8 = arith.constant 6.400000e+01 : f32
    %13 = vector.broadcast %cst_8 : f32 to vector<8x1xf32>
    %14 = arith.divf %12, %13 : vector<8x1xf32>
    %cst_9 = arith.constant 9.99999996E-13 : f32
    %15 = vector.broadcast %cst_9 : f32 to vector<8x1xf32>
    %16 = arith.addf %14, %15 : vector<8x1xf32>
    %17 = math.rsqrt %16 : vector<8x1xf32>
    %18 = vector.broadcast %17 : vector<8x1xf32> to vector<8x64xf32>
    %19 = arith.mulf %9, %18 : vector<8x64xf32>
    %20 = vector.broadcast %0 : vector<1x64xf32> to vector<8x64xf32>
    %21 = arith.mulf %19, %20 : vector<8x64xf32>
    %22 = vector.broadcast %1 : vector<1x64xf32> to vector<8x64xf32>
    %23 = arith.addf %21, %22 : vector<8x64xf32>
    %c0_10 = arith.constant 0 : index
    %c0_11 = arith.constant 0 : index
    %c0_12 = arith.constant 0 : index
    %24 = vector.load %arg2[%c0_10, %c0_11, %c0_12] : memref<1x8x128xf32, #tpu.memory_space<vmem>>, vector<1x8x128xf32>
    %25 = vector.shape_cast %24 : vector<1x8x128xf32> to vector<8x128xf32>
    %c0_13 = arith.constant 0 : index
    %c0_14 = arith.constant 0 : index
    %26 = vector.load %arg4[%c0_13, %c0_14] : memref<128x64xbf16, #tpu.memory_space<vmem>>, vector<128x64xbf16>
    %27 = arith.truncf %25 : vector<8x128xf32> to vector<8x128xbf16>
    %cst_15 = arith.constant dense<0.000000e+00> : vector<8x64xf32>
    %28 = tpu.matmul %27, %26, %cst_15 {dimension_numbers = #tpu.dot_dimension_numbers<[1], [0], [0], [1], [0, 0, 1, 1], [], []>} : vector<8x128xbf16>, vector<128x64xbf16>, vector<8x64xf32> -> vector<8x64xf32>
    %c0_16 = arith.constant 0 : index
    %c0_17 = arith.constant 0 : index
    %29 = vector.load %arg5[%c0_16, %c0_17] : memref<1x64xf32, #tpu.memory_space<vmem>>, vector<1x64xf32>
    %30 = vector.broadcast %29 : vector<1x64xf32> to vector<8x64xf32>
    %31 = arith.addf %28, %30 : vector<8x64xf32>
    %cst_18 = arith.constant dense<0.000000e+00> : vector<8xf32>
    %32 = vector.multi_reduction <add>, %31, %cst_18 [1] : vector<8x64xf32> to vector<8xf32>
    %33 = vector.shape_cast %32 : vector<8xf32> to vector<8x1xf32>
    %cst_19 = arith.constant 6.400000e+01 : f32
    %34 = vector.broadcast %cst_19 : f32 to vector<8x1xf32>
    %35 = arith.divf %33, %34 : vector<8x1xf32>
    %36 = vector.broadcast %35 : vector<8x1xf32> to vector<8x64xf32>
    %37 = arith.subf %31, %36 : vector<8x64xf32>
    %38 = arith.mulf %37, %37 : vector<8x64xf32>
    %cst_20 = arith.constant dense<0.000000e+00> : vector<8xf32>
    %39 = vector.multi_reduction <add>, %38, %cst_20 [1] : vector<8x64xf32> to vector<8xf32>
    %40 = vector.shape_cast %39 : vector<8xf32> to vector<8x1xf32>
    %cst_21 = arith.constant 6.400000e+01 : f32
    %41 = vector.broadcast %cst_21 : f32 to vector<8x1xf32>
    %42 = arith.divf %40, %41 : vector<8x1xf32>
    %cst_22 = arith.constant 9.99999996E-13 : f32
    %43 = vector.broadcast %cst_22 : f32 to vector<8x1xf32>
    %44 = arith.addf %42, %43 : vector<8x1xf32>
    %45 = math.rsqrt %44 : vector<8x1xf32>
    %46 = vector.broadcast %45 : vector<8x1xf32> to vector<8x64xf32>
    %47 = arith.mulf %37, %46 : vector<8x64xf32>
    %48 = vector.broadcast %0 : vector<1x64xf32> to vector<8x64xf32>
    %49 = arith.mulf %47, %48 : vector<8x64xf32>
    %50 = vector.broadcast %1 : vector<1x64xf32> to vector<8x64xf32>
    %51 = arith.addf %49, %50 : vector<8x64xf32>
    %52 = tpu.concatenate %23, %51 in 0 : vector<8x64xf32>, vector<8x64xf32> -> vector<16x64xf32>
    %c0_23 = arith.constant 0 : index
    %c0_24 = arith.constant 0 : index
    %c0_25 = arith.constant 0 : index
    %53 = vector.load %arg3[%c0_23, %c0_24, %c0_25] : memref<1x1x16xf32, #tpu.memory_space<vmem>>, vector<1x1x16xf32>
    %54 = vector.shape_cast %53 : vector<1x1x16xf32> to vector<1x16xf32>
    %c0_26 = arith.constant 0 : index
    %c0_27 = arith.constant 0 : index
    %c0_28 = arith.constant 0 : index
    %55 = vector.load %arg8[%c0_26, %c0_27, %c0_28] : memref<2x64x192xbf16, #tpu.memory_space<vmem>>, vector<1x64x192xbf16>
    %56 = vector.shape_cast %55 : vector<1x64x192xbf16> to vector<64x192xbf16>
    %57 = arith.truncf %52 : vector<16x64xf32> to vector<16x64xbf16>
    %cst_29 = arith.constant dense<0.000000e+00> : vector<16x192xf32>
    %58 = tpu.matmul %57, %56, %cst_29 {dimension_numbers = #tpu.dot_dimension_numbers<[1], [0], [0], [1], [0, 0, 1, 1], [], []>} : vector<16x64xbf16>, vector<64x192xbf16>, vector<16x192xf32> -> vector<16x192xf32>
    %c0_30 = arith.constant 0 : index
    %c0_31 = arith.constant 0 : index
    %c0_32 = arith.constant 0 : index
    %59 = vector.load %arg9[%c0_30, %c0_31, %c0_32] : memref<2x1x192xf32, #tpu.memory_space<vmem>>, vector<1x1x192xf32>
    %60 = vector.shape_cast %59 : vector<1x1x192xf32> to vector<1x192xf32>
    %61 = vector.broadcast %60 : vector<1x192xf32> to vector<16x192xf32>
    %62 = arith.addf %58, %61 : vector<16x192xf32>
    %63 = vector.extract_strided_slice %62 {offsets = [0, 0], sizes = [16, 16], strides = [1, 1]} : vector<16x192xf32> to vector<16x16xf32>
    %64 = vector.extract_strided_slice %62 {offsets = [0, 64], sizes = [16, 16], strides = [1, 1]} : vector<16x192xf32> to vector<16x16xf32>
    %65 = vector.extract_strided_slice %62 {offsets = [0, 128], sizes = [16, 16], strides = [1, 1]} : vector<16x192xf32> to vector<16x16xf32>
    %66 = arith.truncf %63 : vector<16x16xf32> to vector<16x16xbf16>
    %67 = arith.truncf %64 : vector<16x16xf32> to vector<16x16xbf16>
    %cst_33 = arith.constant dense<0.000000e+00> : vector<16x16xf32>
    %68 = tpu.matmul %66, %67, %cst_33 {dimension_numbers = #tpu.dot_dimension_numbers<[1], [1], [0], [0], [0, 0, 1, 0], [], []>} : vector<16x16xbf16>, vector<16x16xbf16>, vector<16x16xf32> -> vector<16x16xf32>
    %cst_34 = arith.constant 2.500000e-01 : f32
    %69 = vector.broadcast %cst_34 : f32 to vector<16x16xf32>
    %70 = arith.mulf %68, %69 : vector<16x16xf32>
    %71 = vector.broadcast %54 : vector<1x16xf32> to vector<16x16xf32>
    %72 = arith.addf %70, %71 : vector<16x16xf32>
    %cst_35 = arith.constant dense<0xFF800000> : vector<16xf32>
    %73 = vector.multi_reduction <maximumf>, %72, %cst_35 [1] : vector<16x16xf32> to vector<16xf32>
    %74 = vector.shape_cast %73 : vector<16xf32> to vector<16x1xf32>
    %75 = vector.broadcast %74 : vector<16x1xf32> to vector<16x16xf32>
    %76 = arith.subf %72, %75 : vector<16x16xf32>
    %77 = math.exp %76 : vector<16x16xf32>
    %cst_36 = arith.constant dense<0.000000e+00> : vector<16xf32>
    %78 = vector.multi_reduction <add>, %77, %cst_36 [1] : vector<16x16xf32> to vector<16xf32>
    %79 = vector.shape_cast %78 : vector<16xf32> to vector<16x1xf32>
    %80 = tpu.reciprocal %79 {approx = true} : vector<16x1xf32> -> vector<16x1xf32>
    %81 = vector.broadcast %80 : vector<16x1xf32> to vector<16x16xf32>
    %82 = arith.mulf %77, %81 : vector<16x16xf32>
    %83 = arith.truncf %65 : vector<16x16xf32> to vector<16x16xbf16>
    %84 = arith.truncf %82 : vector<16x16xf32> to vector<16x16xbf16>
    %cst_37 = arith.constant dense<0.000000e+00> : vector<16x16xf32>
    %85 = tpu.matmul %84, %83, %cst_37 {dimension_numbers = #tpu.dot_dimension_numbers<[1], [0], [0], [1], [0, 0, 1, 1], [], []>} : vector<16x16xbf16>, vector<16x16xbf16>, vector<16x16xf32> -> vector<16x16xf32>
    %86 = vector.extract_strided_slice %62 {offsets = [0, 16], sizes = [16, 16], strides = [1, 1]} : vector<16x192xf32> to vector<16x16xf32>
    %87 = vector.extract_strided_slice %62 {offsets = [0, 80], sizes = [16, 16], strides = [1, 1]} : vector<16x192xf32> to vector<16x16xf32>
    %88 = vector.extract_strided_slice %62 {offsets = [0, 144], sizes = [16, 16], strides = [1, 1]} : vector<16x192xf32> to vector<16x16xf32>
    %89 = arith.truncf %86 : vector<16x16xf32> to vector<16x16xbf16>
    %90 = arith.truncf %87 : vector<16x16xf32> to vector<16x16xbf16>
    %cst_38 = arith.constant dense<0.000000e+00> : vector<16x16xf32>
    %91 = tpu.matmul %89, %90, %cst_38 {dimension_numbers = #tpu.dot_dimension_numbers<[1], [1], [0], [0], [0, 0, 1, 0], [], []>} : vector<16x16xbf16>, vector<16x16xbf16>, vector<16x16xf32> -> vector<16x16xf32>
    %cst_39 = arith.constant 2.500000e-01 : f32
    %92 = vector.broadcast %cst_39 : f32 to vector<16x16xf32>
    %93 = arith.mulf %91, %92 : vector<16x16xf32>
    %94 = vector.broadcast %54 : vector<1x16xf32> to vector<16x16xf32>
    %95 = arith.addf %93, %94 : vector<16x16xf32>
    %cst_40 = arith.constant dense<0xFF800000> : vector<16xf32>
    %96 = vector.multi_reduction <maximumf>, %95, %cst_40 [1] : vector<16x16xf32> to vector<16xf32>
    %97 = vector.shape_cast %96 : vector<16xf32> to vector<16x1xf32>
    %98 = vector.broadcast %97 : vector<16x1xf32> to vector<16x16xf32>
    %99 = arith.subf %95, %98 : vector<16x16xf32>
    %100 = math.exp %99 : vector<16x16xf32>
    %cst_41 = arith.constant dense<0.000000e+00> : vector<16xf32>
    %101 = vector.multi_reduction <add>, %100, %cst_41 [1] : vector<16x16xf32> to vector<16xf32>
    %102 = vector.shape_cast %101 : vector<16xf32> to vector<16x1xf32>
    %103 = tpu.reciprocal %102 {approx = true} : vector<16x1xf32> -> vector<16x1xf32>
    %104 = vector.broadcast %103 : vector<16x1xf32> to vector<16x16xf32>
    %105 = arith.mulf %100, %104 : vector<16x16xf32>
    %106 = arith.truncf %88 : vector<16x16xf32> to vector<16x16xbf16>
    %107 = arith.truncf %105 : vector<16x16xf32> to vector<16x16xbf16>
    %cst_42 = arith.constant dense<0.000000e+00> : vector<16x16xf32>
    %108 = tpu.matmul %107, %106, %cst_42 {dimension_numbers = #tpu.dot_dimension_numbers<[1], [0], [0], [1], [0, 0, 1, 1], [], []>} : vector<16x16xbf16>, vector<16x16xbf16>, vector<16x16xf32> -> vector<16x16xf32>
    %109 = vector.extract_strided_slice %62 {offsets = [0, 32], sizes = [16, 16], strides = [1, 1]} : vector<16x192xf32> to vector<16x16xf32>
    %110 = vector.extract_strided_slice %62 {offsets = [0, 96], sizes = [16, 16], strides = [1, 1]} : vector<16x192xf32> to vector<16x16xf32>
    %111 = vector.extract_strided_slice %62 {offsets = [0, 160], sizes = [16, 16], strides = [1, 1]} : vector<16x192xf32> to vector<16x16xf32>
    %112 = arith.truncf %109 : vector<16x16xf32> to vector<16x16xbf16>
    %113 = arith.truncf %110 : vector<16x16xf32> to vector<16x16xbf16>
    %cst_43 = arith.constant dense<0.000000e+00> : vector<16x16xf32>
    %114 = tpu.matmul %112, %113, %cst_43 {dimension_numbers = #tpu.dot_dimension_numbers<[1], [1], [0], [0], [0, 0, 1, 0], [], []>} : vector<16x16xbf16>, vector<16x16xbf16>, vector<16x16xf32> -> vector<16x16xf32>
    %cst_44 = arith.constant 2.500000e-01 : f32
    %115 = vector.broadcast %cst_44 : f32 to vector<16x16xf32>
    %116 = arith.mulf %114, %115 : vector<16x16xf32>
    %117 = vector.broadcast %54 : vector<1x16xf32> to vector<16x16xf32>
    %118 = arith.addf %116, %117 : vector<16x16xf32>
    %cst_45 = arith.constant dense<0xFF800000> : vector<16xf32>
    %119 = vector.multi_reduction <maximumf>, %118, %cst_45 [1] : vector<16x16xf32> to vector<16xf32>
    %120 = vector.shape_cast %119 : vector<16xf32> to vector<16x1xf32>
    %121 = vector.broadcast %120 : vector<16x1xf32> to vector<16x16xf32>
    %122 = arith.subf %118, %121 : vector<16x16xf32>
    %123 = math.exp %122 : vector<16x16xf32>
    %cst_46 = arith.constant dense<0.000000e+00> : vector<16xf32>
    %124 = vector.multi_reduction <add>, %123, %cst_46 [1] : vector<16x16xf32> to vector<16xf32>
    %125 = vector.shape_cast %124 : vector<16xf32> to vector<16x1xf32>
    %126 = tpu.reciprocal %125 {approx = true} : vector<16x1xf32> -> vector<16x1xf32>
    %127 = vector.broadcast %126 : vector<16x1xf32> to vector<16x16xf32>
    %128 = arith.mulf %123, %127 : vector<16x16xf32>
    %129 = arith.truncf %111 : vector<16x16xf32> to vector<16x16xbf16>
    %130 = arith.truncf %128 : vector<16x16xf32> to vector<16x16xbf16>
    %cst_47 = arith.constant dense<0.000000e+00> : vector<16x16xf32>
    %131 = tpu.matmul %130, %129, %cst_47 {dimension_numbers = #tpu.dot_dimension_numbers<[1], [0], [0], [1], [0, 0, 1, 1], [], []>} : vector<16x16xbf16>, vector<16x16xbf16>, vector<16x16xf32> -> vector<16x16xf32>
    %132 = vector.extract_strided_slice %62 {offsets = [0, 48], sizes = [16, 16], strides = [1, 1]} : vector<16x192xf32> to vector<16x16xf32>
    %133 = vector.extract_strided_slice %62 {offsets = [0, 112], sizes = [16, 16], strides = [1, 1]} : vector<16x192xf32> to vector<16x16xf32>
    %134 = vector.extract_strided_slice %62 {offsets = [0, 176], sizes = [16, 16], strides = [1, 1]} : vector<16x192xf32> to vector<16x16xf32>
    %135 = arith.truncf %132 : vector<16x16xf32> to vector<16x16xbf16>
    %136 = arith.truncf %133 : vector<16x16xf32> to vector<16x16xbf16>
    %cst_48 = arith.constant dense<0.000000e+00> : vector<16x16xf32>
    %137 = tpu.matmul %135, %136, %cst_48 {dimension_numbers = #tpu.dot_dimension_numbers<[1], [1], [0], [0], [0, 0, 1, 0], [], []>} : vector<16x16xbf16>, vector<16x16xbf16>, vector<16x16xf32> -> vector<16x16xf32>
    %cst_49 = arith.constant 2.500000e-01 : f32
    %138 = vector.broadcast %cst_49 : f32 to vector<16x16xf32>
    %139 = arith.mulf %137, %138 : vector<16x16xf32>
    %140 = vector.broadcast %54 : vector<1x16xf32> to vector<16x16xf32>
    %141 = arith.addf %139, %140 : vector<16x16xf32>
    %cst_50 = arith.constant dense<0xFF800000> : vector<16xf32>
    %142 = vector.multi_reduction <maximumf>, %141, %cst_50 [1] : vector<16x16xf32> to vector<16xf32>
    %143 = vector.shape_cast %142 : vector<16xf32> to vector<16x1xf32>
    %144 = vector.broadcast %143 : vector<16x1xf32> to vector<16x16xf32>
    %145 = arith.subf %141, %144 : vector<16x16xf32>
    %146 = math.exp %145 : vector<16x16xf32>
    %cst_51 = arith.constant dense<0.000000e+00> : vector<16xf32>
    %147 = vector.multi_reduction <add>, %146, %cst_51 [1] : vector<16x16xf32> to vector<16xf32>
    %148 = vector.shape_cast %147 : vector<16xf32> to vector<16x1xf32>
    %149 = tpu.reciprocal %148 {approx = true} : vector<16x1xf32> -> vector<16x1xf32>
    %150 = vector.broadcast %149 : vector<16x1xf32> to vector<16x16xf32>
    %151 = arith.mulf %146, %150 : vector<16x16xf32>
    %152 = arith.truncf %134 : vector<16x16xf32> to vector<16x16xbf16>
    %153 = arith.truncf %151 : vector<16x16xf32> to vector<16x16xbf16>
    %cst_52 = arith.constant dense<0.000000e+00> : vector<16x16xf32>
    %154 = tpu.matmul %153, %152, %cst_52 {dimension_numbers = #tpu.dot_dimension_numbers<[1], [0], [0], [1], [0, 0, 1, 1], [], []>} : vector<16x16xbf16>, vector<16x16xbf16>, vector<16x16xf32> -> vector<16x16xf32>
    %155 = tpu.concatenate %85, %108, %131, %154 in 1 : vector<16x16xf32>, vector<16x16xf32>, vector<16x16xf32>, vector<16x16xf32> -> vector<16x64xf32>
    %c0_53 = arith.constant 0 : index
    %c0_54 = arith.constant 0 : index
    %c0_55 = arith.constant 0 : index
    %156 = vector.load %arg10[%c0_53, %c0_54, %c0_55] : memref<2x64x64xbf16, #tpu.memory_space<vmem>>, vector<1x64x64xbf16>
    %157 = vector.shape_cast %156 : vector<1x64x64xbf16> to vector<64x64xbf16>
    %158 = arith.truncf %155 : vector<16x64xf32> to vector<16x64xbf16>
    %cst_56 = arith.constant dense<0.000000e+00> : vector<16x64xf32>
    %159 = tpu.matmul %158, %157, %cst_56 {dimension_numbers = #tpu.dot_dimension_numbers<[1], [0], [0], [1], [0, 0, 1, 1], [], []>} : vector<16x64xbf16>, vector<64x64xbf16>, vector<16x64xf32> -> vector<16x64xf32>
    %c0_57 = arith.constant 0 : index
    %c0_58 = arith.constant 0 : index
    %c0_59 = arith.constant 0 : index
    %160 = vector.load %arg11[%c0_57, %c0_58, %c0_59] : memref<2x1x64xf32, #tpu.memory_space<vmem>>, vector<1x1x64xf32>
    %161 = vector.shape_cast %160 : vector<1x1x64xf32> to vector<1x64xf32>
    %162 = vector.broadcast %161 : vector<1x64xf32> to vector<16x64xf32>
    %163 = arith.addf %159, %162 : vector<16x64xf32>
    %164 = arith.addf %163, %52 : vector<16x64xf32>
    %c0_60 = arith.constant 0 : index
    %c0_61 = arith.constant 0 : index
    %c0_62 = arith.constant 0 : index
    %165 = vector.load %arg12[%c0_60, %c0_61, %c0_62] : memref<2x1x64xf32, #tpu.memory_space<vmem>>, vector<1x1x64xf32>
    %166 = vector.shape_cast %165 : vector<1x1x64xf32> to vector<1x64xf32>
    %c0_63 = arith.constant 0 : index
    %c0_64 = arith.constant 0 : index
    %c0_65 = arith.constant 0 : index
    %167 = vector.load %arg13[%c0_63, %c0_64, %c0_65] : memref<2x1x64xf32, #tpu.memory_space<vmem>>, vector<1x1x64xf32>
    %168 = vector.shape_cast %167 : vector<1x1x64xf32> to vector<1x64xf32>
    %cst_66 = arith.constant dense<0.000000e+00> : vector<16xf32>
    %169 = vector.multi_reduction <add>, %164, %cst_66 [1] : vector<16x64xf32> to vector<16xf32>
    %170 = vector.shape_cast %169 : vector<16xf32> to vector<16x1xf32>
    %cst_67 = arith.constant 6.400000e+01 : f32
    %171 = vector.broadcast %cst_67 : f32 to vector<16x1xf32>
    %172 = arith.divf %170, %171 : vector<16x1xf32>
    %173 = vector.broadcast %172 : vector<16x1xf32> to vector<16x64xf32>
    %174 = arith.subf %164, %173 : vector<16x64xf32>
    %175 = arith.mulf %174, %174 : vector<16x64xf32>
    %cst_68 = arith.constant dense<0.000000e+00> : vector<16xf32>
    %176 = vector.multi_reduction <add>, %175, %cst_68 [1] : vector<16x64xf32> to vector<16xf32>
    %177 = vector.shape_cast %176 : vector<16xf32> to vector<16x1xf32>
    %cst_69 = arith.constant 6.400000e+01 : f32
    %178 = vector.broadcast %cst_69 : f32 to vector<16x1xf32>
    %179 = arith.divf %177, %178 : vector<16x1xf32>
    %cst_70 = arith.constant 9.99999996E-13 : f32
    %180 = vector.broadcast %cst_70 : f32 to vector<16x1xf32>
    %181 = arith.addf %179, %180 : vector<16x1xf32>
    %182 = math.rsqrt %181 : vector<16x1xf32>
    %183 = vector.broadcast %182 : vector<16x1xf32> to vector<16x64xf32>
    %184 = arith.mulf %174, %183 : vector<16x64xf32>
    %185 = vector.broadcast %166 : vector<1x64xf32> to vector<16x64xf32>
    %186 = arith.mulf %184, %185 : vector<16x64xf32>
    %187 = vector.broadcast %168 : vector<1x64xf32> to vector<16x64xf32>
    %188 = arith.addf %186, %187 : vector<16x64xf32>
    %c0_71 = arith.constant 0 : index
    %c0_72 = arith.constant 0 : index
    %c0_73 = arith.constant 0 : index
    %189 = vector.load %arg14[%c0_71, %c0_72, %c0_73] : memref<2x64x256xbf16, #tpu.memory_space<vmem>>, vector<1x64x256xbf16>
    %190 = vector.shape_cast %189 : vector<1x64x256xbf16> to vector<64x256xbf16>
    %191 = arith.truncf %188 : vector<16x64xf32> to vector<16x64xbf16>
    %cst_74 = arith.constant dense<0.000000e+00> : vector<16x256xf32>
    %192 = tpu.matmul %191, %190, %cst_74 {dimension_numbers = #tpu.dot_dimension_numbers<[1], [0], [0], [1], [0, 0, 1, 1], [], []>} : vector<16x64xbf16>, vector<64x256xbf16>, vector<16x256xf32> -> vector<16x256xf32>
    %c0_75 = arith.constant 0 : index
    %c0_76 = arith.constant 0 : index
    %c0_77 = arith.constant 0 : index
    %193 = vector.load %arg15[%c0_75, %c0_76, %c0_77] : memref<2x1x256xf32, #tpu.memory_space<vmem>>, vector<1x1x256xf32>
    %194 = vector.shape_cast %193 : vector<1x1x256xf32> to vector<1x256xf32>
    %195 = vector.broadcast %194 : vector<1x256xf32> to vector<16x256xf32>
    %196 = arith.addf %192, %195 : vector<16x256xf32>
    %cst_78 = arith.constant 5.000000e-01 : f32
    %197 = vector.broadcast %cst_78 : f32 to vector<16x256xf32>
    %198 = arith.mulf %197, %196 : vector<16x256xf32>
    %cst_79 = arith.constant 4.471500e-02 : f32
    %199 = vector.broadcast %cst_79 : f32 to vector<16x256xf32>
    %200 = arith.mulf %199, %196 : vector<16x256xf32>
    %201 = arith.mulf %200, %196 : vector<16x256xf32>
    %202 = arith.mulf %201, %196 : vector<16x256xf32>
    %203 = arith.addf %196, %202 : vector<16x256xf32>
    %cst_80 = arith.constant 0.797884583 : f32
    %204 = vector.broadcast %cst_80 : f32 to vector<16x256xf32>
    %205 = arith.mulf %204, %203 : vector<16x256xf32>
    %206 = math.tanh %205 : vector<16x256xf32>
    %cst_81 = arith.constant 1.000000e+00 : f32
    %207 = vector.broadcast %cst_81 : f32 to vector<16x256xf32>
    %208 = arith.addf %207, %206 : vector<16x256xf32>
    %209 = arith.mulf %198, %208 : vector<16x256xf32>
    %c0_82 = arith.constant 0 : index
    %c0_83 = arith.constant 0 : index
    %c0_84 = arith.constant 0 : index
    %210 = vector.load %arg16[%c0_82, %c0_83, %c0_84] : memref<2x256x64xbf16, #tpu.memory_space<vmem>>, vector<1x256x64xbf16>
    %211 = vector.shape_cast %210 : vector<1x256x64xbf16> to vector<256x64xbf16>
    %212 = arith.truncf %209 : vector<16x256xf32> to vector<16x256xbf16>
    %cst_85 = arith.constant dense<0.000000e+00> : vector<16x64xf32>
    %213 = tpu.matmul %212, %211, %cst_85 {dimension_numbers = #tpu.dot_dimension_numbers<[1], [0], [0], [1], [0, 0, 1, 1], [], []>} : vector<16x256xbf16>, vector<256x64xbf16>, vector<16x64xf32> -> vector<16x64xf32>
    %c0_86 = arith.constant 0 : index
    %c0_87 = arith.constant 0 : index
    %c0_88 = arith.constant 0 : index
    %214 = vector.load %arg17[%c0_86, %c0_87, %c0_88] : memref<2x1x64xf32, #tpu.memory_space<vmem>>, vector<1x1x64xf32>
    %215 = vector.shape_cast %214 : vector<1x1x64xf32> to vector<1x64xf32>
    %216 = vector.broadcast %215 : vector<1x64xf32> to vector<16x64xf32>
    %217 = arith.addf %213, %216 : vector<16x64xf32>
    %218 = arith.addf %217, %188 : vector<16x64xf32>
    %c0_89 = arith.constant 0 : index
    %c0_90 = arith.constant 0 : index
    %c0_91 = arith.constant 0 : index
    %219 = vector.load %arg18[%c0_89, %c0_90, %c0_91] : memref<2x1x64xf32, #tpu.memory_space<vmem>>, vector<1x1x64xf32>
    %220 = vector.shape_cast %219 : vector<1x1x64xf32> to vector<1x64xf32>
    %c0_92 = arith.constant 0 : index
    %c0_93 = arith.constant 0 : index
    %c0_94 = arith.constant 0 : index
    %221 = vector.load %arg19[%c0_92, %c0_93, %c0_94] : memref<2x1x64xf32, #tpu.memory_space<vmem>>, vector<1x1x64xf32>
    %222 = vector.shape_cast %221 : vector<1x1x64xf32> to vector<1x64xf32>
    %cst_95 = arith.constant dense<0.000000e+00> : vector<16xf32>
    %223 = vector.multi_reduction <add>, %218, %cst_95 [1] : vector<16x64xf32> to vector<16xf32>
    %224 = vector.shape_cast %223 : vector<16xf32> to vector<16x1xf32>
    %cst_96 = arith.constant 6.400000e+01 : f32
    %225 = vector.broadcast %cst_96 : f32 to vector<16x1xf32>
    %226 = arith.divf %224, %225 : vector<16x1xf32>
    %227 = vector.broadcast %226 : vector<16x1xf32> to vector<16x64xf32>
    %228 = arith.subf %218, %227 : vector<16x64xf32>
    %229 = arith.mulf %228, %228 : vector<16x64xf32>
    %cst_97 = arith.constant dense<0.000000e+00> : vector<16xf32>
    %230 = vector.multi_reduction <add>, %229, %cst_97 [1] : vector<16x64xf32> to vector<16xf32>
    %231 = vector.shape_cast %230 : vector<16xf32> to vector<16x1xf32>
    %cst_98 = arith.constant 6.400000e+01 : f32
    %232 = vector.broadcast %cst_98 : f32 to vector<16x1xf32>
    %233 = arith.divf %231, %232 : vector<16x1xf32>
    %cst_99 = arith.constant 9.99999996E-13 : f32
    %234 = vector.broadcast %cst_99 : f32 to vector<16x1xf32>
    %235 = arith.addf %233, %234 : vector<16x1xf32>
    %236 = math.rsqrt %235 : vector<16x1xf32>
    %237 = vector.broadcast %236 : vector<16x1xf32> to vector<16x64xf32>
    %238 = arith.mulf %228, %237 : vector<16x64xf32>
    %239 = vector.broadcast %220 : vector<1x64xf32> to vector<16x64xf32>
    %240 = arith.mulf %238, %239 : vector<16x64xf32>
    %241 = vector.broadcast %222 : vector<1x64xf32> to vector<16x64xf32>
    %242 = arith.addf %240, %241 : vector<16x64xf32>
    %c1 = arith.constant 1 : index
    %c0_100 = arith.constant 0 : index
    %c0_101 = arith.constant 0 : index
    %243 = vector.load %arg8[%c1, %c0_100, %c0_101] : memref<2x64x192xbf16, #tpu.memory_space<vmem>>, vector<1x64x192xbf16>
    %244 = vector.shape_cast %243 : vector<1x64x192xbf16> to vector<64x192xbf16>
    %245 = arith.truncf %242 : vector<16x64xf32> to vector<16x64xbf16>
    %cst_102 = arith.constant dense<0.000000e+00> : vector<16x192xf32>
    %246 = tpu.matmul %245, %244, %cst_102 {dimension_numbers = #tpu.dot_dimension_numbers<[1], [0], [0], [1], [0, 0, 1, 1], [], []>} : vector<16x64xbf16>, vector<64x192xbf16>, vector<16x192xf32> -> vector<16x192xf32>
    %c1_103 = arith.constant 1 : index
    %c0_104 = arith.constant 0 : index
    %c0_105 = arith.constant 0 : index
    %247 = vector.load %arg9[%c1_103, %c0_104, %c0_105] : memref<2x1x192xf32, #tpu.memory_space<vmem>>, vector<1x1x192xf32>
    %248 = vector.shape_cast %247 : vector<1x1x192xf32> to vector<1x192xf32>
    %249 = vector.broadcast %248 : vector<1x192xf32> to vector<16x192xf32>
    %250 = arith.addf %246, %249 : vector<16x192xf32>
    %251 = vector.extract_strided_slice %250 {offsets = [0, 0], sizes = [16, 16], strides = [1, 1]} : vector<16x192xf32> to vector<16x16xf32>
    %252 = vector.extract_strided_slice %250 {offsets = [0, 64], sizes = [16, 16], strides = [1, 1]} : vector<16x192xf32> to vector<16x16xf32>
    %253 = vector.extract_strided_slice %250 {offsets = [0, 128], sizes = [16, 16], strides = [1, 1]} : vector<16x192xf32> to vector<16x16xf32>
    %254 = arith.truncf %251 : vector<16x16xf32> to vector<16x16xbf16>
    %255 = arith.truncf %252 : vector<16x16xf32> to vector<16x16xbf16>
    %cst_106 = arith.constant dense<0.000000e+00> : vector<16x16xf32>
    %256 = tpu.matmul %254, %255, %cst_106 {dimension_numbers = #tpu.dot_dimension_numbers<[1], [1], [0], [0], [0, 0, 1, 0], [], []>} : vector<16x16xbf16>, vector<16x16xbf16>, vector<16x16xf32> -> vector<16x16xf32>
    %cst_107 = arith.constant 2.500000e-01 : f32
    %257 = vector.broadcast %cst_107 : f32 to vector<16x16xf32>
    %258 = arith.mulf %256, %257 : vector<16x16xf32>
    %259 = vector.broadcast %54 : vector<1x16xf32> to vector<16x16xf32>
    %260 = arith.addf %258, %259 : vector<16x16xf32>
    %cst_108 = arith.constant dense<0xFF800000> : vector<16xf32>
    %261 = vector.multi_reduction <maximumf>, %260, %cst_108 [1] : vector<16x16xf32> to vector<16xf32>
    %262 = vector.shape_cast %261 : vector<16xf32> to vector<16x1xf32>
    %263 = vector.broadcast %262 : vector<16x1xf32> to vector<16x16xf32>
    %264 = arith.subf %260, %263 : vector<16x16xf32>
    %265 = math.exp %264 : vector<16x16xf32>
    %cst_109 = arith.constant dense<0.000000e+00> : vector<16xf32>
    %266 = vector.multi_reduction <add>, %265, %cst_109 [1] : vector<16x16xf32> to vector<16xf32>
    %267 = vector.shape_cast %266 : vector<16xf32> to vector<16x1xf32>
    %268 = tpu.reciprocal %267 {approx = true} : vector<16x1xf32> -> vector<16x1xf32>
    %269 = vector.broadcast %268 : vector<16x1xf32> to vector<16x16xf32>
    %270 = arith.mulf %265, %269 : vector<16x16xf32>
    %271 = arith.truncf %253 : vector<16x16xf32> to vector<16x16xbf16>
    %272 = arith.truncf %270 : vector<16x16xf32> to vector<16x16xbf16>
    %cst_110 = arith.constant dense<0.000000e+00> : vector<16x16xf32>
    %273 = tpu.matmul %272, %271, %cst_110 {dimension_numbers = #tpu.dot_dimension_numbers<[1], [0], [0], [1], [0, 0, 1, 1], [], []>} : vector<16x16xbf16>, vector<16x16xbf16>, vector<16x16xf32> -> vector<16x16xf32>
    %274 = vector.extract_strided_slice %250 {offsets = [0, 16], sizes = [16, 16], strides = [1, 1]} : vector<16x192xf32> to vector<16x16xf32>
    %275 = vector.extract_strided_slice %250 {offsets = [0, 80], sizes = [16, 16], strides = [1, 1]} : vector<16x192xf32> to vector<16x16xf32>
    %276 = vector.extract_strided_slice %250 {offsets = [0, 144], sizes = [16, 16], strides = [1, 1]} : vector<16x192xf32> to vector<16x16xf32>
    %277 = arith.truncf %274 : vector<16x16xf32> to vector<16x16xbf16>
    %278 = arith.truncf %275 : vector<16x16xf32> to vector<16x16xbf16>
    %cst_111 = arith.constant dense<0.000000e+00> : vector<16x16xf32>
    %279 = tpu.matmul %277, %278, %cst_111 {dimension_numbers = #tpu.dot_dimension_numbers<[1], [1], [0], [0], [0, 0, 1, 0], [], []>} : vector<16x16xbf16>, vector<16x16xbf16>, vector<16x16xf32> -> vector<16x16xf32>
    %cst_112 = arith.constant 2.500000e-01 : f32
    %280 = vector.broadcast %cst_112 : f32 to vector<16x16xf32>
    %281 = arith.mulf %279, %280 : vector<16x16xf32>
    %282 = vector.broadcast %54 : vector<1x16xf32> to vector<16x16xf32>
    %283 = arith.addf %281, %282 : vector<16x16xf32>
    %cst_113 = arith.constant dense<0xFF800000> : vector<16xf32>
    %284 = vector.multi_reduction <maximumf>, %283, %cst_113 [1] : vector<16x16xf32> to vector<16xf32>
    %285 = vector.shape_cast %284 : vector<16xf32> to vector<16x1xf32>
    %286 = vector.broadcast %285 : vector<16x1xf32> to vector<16x16xf32>
    %287 = arith.subf %283, %286 : vector<16x16xf32>
    %288 = math.exp %287 : vector<16x16xf32>
    %cst_114 = arith.constant dense<0.000000e+00> : vector<16xf32>
    %289 = vector.multi_reduction <add>, %288, %cst_114 [1] : vector<16x16xf32> to vector<16xf32>
    %290 = vector.shape_cast %289 : vector<16xf32> to vector<16x1xf32>
    %291 = tpu.reciprocal %290 {approx = true} : vector<16x1xf32> -> vector<16x1xf32>
    %292 = vector.broadcast %291 : vector<16x1xf32> to vector<16x16xf32>
    %293 = arith.mulf %288, %292 : vector<16x16xf32>
    %294 = arith.truncf %276 : vector<16x16xf32> to vector<16x16xbf16>
    %295 = arith.truncf %293 : vector<16x16xf32> to vector<16x16xbf16>
    %cst_115 = arith.constant dense<0.000000e+00> : vector<16x16xf32>
    %296 = tpu.matmul %295, %294, %cst_115 {dimension_numbers = #tpu.dot_dimension_numbers<[1], [0], [0], [1], [0, 0, 1, 1], [], []>} : vector<16x16xbf16>, vector<16x16xbf16>, vector<16x16xf32> -> vector<16x16xf32>
    %297 = vector.extract_strided_slice %250 {offsets = [0, 32], sizes = [16, 16], strides = [1, 1]} : vector<16x192xf32> to vector<16x16xf32>
    %298 = vector.extract_strided_slice %250 {offsets = [0, 96], sizes = [16, 16], strides = [1, 1]} : vector<16x192xf32> to vector<16x16xf32>
    %299 = vector.extract_strided_slice %250 {offsets = [0, 160], sizes = [16, 16], strides = [1, 1]} : vector<16x192xf32> to vector<16x16xf32>
    %300 = arith.truncf %297 : vector<16x16xf32> to vector<16x16xbf16>
    %301 = arith.truncf %298 : vector<16x16xf32> to vector<16x16xbf16>
    %cst_116 = arith.constant dense<0.000000e+00> : vector<16x16xf32>
    %302 = tpu.matmul %300, %301, %cst_116 {dimension_numbers = #tpu.dot_dimension_numbers<[1], [1], [0], [0], [0, 0, 1, 0], [], []>} : vector<16x16xbf16>, vector<16x16xbf16>, vector<16x16xf32> -> vector<16x16xf32>
    %cst_117 = arith.constant 2.500000e-01 : f32
    %303 = vector.broadcast %cst_117 : f32 to vector<16x16xf32>
    %304 = arith.mulf %302, %303 : vector<16x16xf32>
    %305 = vector.broadcast %54 : vector<1x16xf32> to vector<16x16xf32>
    %306 = arith.addf %304, %305 : vector<16x16xf32>
    %cst_118 = arith.constant dense<0xFF800000> : vector<16xf32>
    %307 = vector.multi_reduction <maximumf>, %306, %cst_118 [1] : vector<16x16xf32> to vector<16xf32>
    %308 = vector.shape_cast %307 : vector<16xf32> to vector<16x1xf32>
    %309 = vector.broadcast %308 : vector<16x1xf32> to vector<16x16xf32>
    %310 = arith.subf %306, %309 : vector<16x16xf32>
    %311 = math.exp %310 : vector<16x16xf32>
    %cst_119 = arith.constant dense<0.000000e+00> : vector<16xf32>
    %312 = vector.multi_reduction <add>, %311, %cst_119 [1] : vector<16x16xf32> to vector<16xf32>
    %313 = vector.shape_cast %312 : vector<16xf32> to vector<16x1xf32>
    %314 = tpu.reciprocal %313 {approx = true} : vector<16x1xf32> -> vector<16x1xf32>
    %315 = vector.broadcast %314 : vector<16x1xf32> to vector<16x16xf32>
    %316 = arith.mulf %311, %315 : vector<16x16xf32>
    %317 = arith.truncf %299 : vector<16x16xf32> to vector<16x16xbf16>
    %318 = arith.truncf %316 : vector<16x16xf32> to vector<16x16xbf16>
    %cst_120 = arith.constant dense<0.000000e+00> : vector<16x16xf32>
    %319 = tpu.matmul %318, %317, %cst_120 {dimension_numbers = #tpu.dot_dimension_numbers<[1], [0], [0], [1], [0, 0, 1, 1], [], []>} : vector<16x16xbf16>, vector<16x16xbf16>, vector<16x16xf32> -> vector<16x16xf32>
    %320 = vector.extract_strided_slice %250 {offsets = [0, 48], sizes = [16, 16], strides = [1, 1]} : vector<16x192xf32> to vector<16x16xf32>
    %321 = vector.extract_strided_slice %250 {offsets = [0, 112], sizes = [16, 16], strides = [1, 1]} : vector<16x192xf32> to vector<16x16xf32>
    %322 = vector.extract_strided_slice %250 {offsets = [0, 176], sizes = [16, 16], strides = [1, 1]} : vector<16x192xf32> to vector<16x16xf32>
    %323 = arith.truncf %320 : vector<16x16xf32> to vector<16x16xbf16>
    %324 = arith.truncf %321 : vector<16x16xf32> to vector<16x16xbf16>
    %cst_121 = arith.constant dense<0.000000e+00> : vector<16x16xf32>
    %325 = tpu.matmul %323, %324, %cst_121 {dimension_numbers = #tpu.dot_dimension_numbers<[1], [1], [0], [0], [0, 0, 1, 0], [], []>} : vector<16x16xbf16>, vector<16x16xbf16>, vector<16x16xf32> -> vector<16x16xf32>
    %cst_122 = arith.constant 2.500000e-01 : f32
    %326 = vector.broadcast %cst_122 : f32 to vector<16x16xf32>
    %327 = arith.mulf %325, %326 : vector<16x16xf32>
    %328 = vector.broadcast %54 : vector<1x16xf32> to vector<16x16xf32>
    %329 = arith.addf %327, %328 : vector<16x16xf32>
    %cst_123 = arith.constant dense<0xFF800000> : vector<16xf32>
    %330 = vector.multi_reduction <maximumf>, %329, %cst_123 [1] : vector<16x16xf32> to vector<16xf32>
    %331 = vector.shape_cast %330 : vector<16xf32> to vector<16x1xf32>
    %332 = vector.broadcast %331 : vector<16x1xf32> to vector<16x16xf32>
    %333 = arith.subf %329, %332 : vector<16x16xf32>
    %334 = math.exp %333 : vector<16x16xf32>
    %cst_124 = arith.constant dense<0.000000e+00> : vector<16xf32>
    %335 = vector.multi_reduction <add>, %334, %cst_124 [1] : vector<16x16xf32> to vector<16xf32>
    %336 = vector.shape_cast %335 : vector<16xf32> to vector<16x1xf32>
    %337 = tpu.reciprocal %336 {approx = true} : vector<16x1xf32> -> vector<16x1xf32>
    %338 = vector.broadcast %337 : vector<16x1xf32> to vector<16x16xf32>
    %339 = arith.mulf %334, %338 : vector<16x16xf32>
    %340 = arith.truncf %322 : vector<16x16xf32> to vector<16x16xbf16>
    %341 = arith.truncf %339 : vector<16x16xf32> to vector<16x16xbf16>
    %cst_125 = arith.constant dense<0.000000e+00> : vector<16x16xf32>
    %342 = tpu.matmul %341, %340, %cst_125 {dimension_numbers = #tpu.dot_dimension_numbers<[1], [0], [0], [1], [0, 0, 1, 1], [], []>} : vector<16x16xbf16>, vector<16x16xbf16>, vector<16x16xf32> -> vector<16x16xf32>
    %343 = tpu.concatenate %273, %296, %319, %342 in 1 : vector<16x16xf32>, vector<16x16xf32>, vector<16x16xf32>, vector<16x16xf32> -> vector<16x64xf32>
    %c1_126 = arith.constant 1 : index
    %c0_127 = arith.constant 0 : index
    %c0_128 = arith.constant 0 : index
    %344 = vector.load %arg10[%c1_126, %c0_127, %c0_128] : memref<2x64x64xbf16, #tpu.memory_space<vmem>>, vector<1x64x64xbf16>
    %345 = vector.shape_cast %344 : vector<1x64x64xbf16> to vector<64x64xbf16>
    %346 = arith.truncf %343 : vector<16x64xf32> to vector<16x64xbf16>
    %cst_129 = arith.constant dense<0.000000e+00> : vector<16x64xf32>
    %347 = tpu.matmul %346, %345, %cst_129 {dimension_numbers = #tpu.dot_dimension_numbers<[1], [0], [0], [1], [0, 0, 1, 1], [], []>} : vector<16x64xbf16>, vector<64x64xbf16>, vector<16x64xf32> -> vector<16x64xf32>
    %c1_130 = arith.constant 1 : index
    %c0_131 = arith.constant 0 : index
    %c0_132 = arith.constant 0 : index
    %348 = vector.load %arg11[%c1_130, %c0_131, %c0_132] : memref<2x1x64xf32, #tpu.memory_space<vmem>>, vector<1x1x64xf32>
    %349 = vector.shape_cast %348 : vector<1x1x64xf32> to vector<1x64xf32>
    %350 = vector.broadcast %349 : vector<1x64xf32> to vector<16x64xf32>
    %351 = arith.addf %347, %350 : vector<16x64xf32>
    %352 = arith.addf %351, %242 : vector<16x64xf32>
    %c1_133 = arith.constant 1 : index
    %c0_134 = arith.constant 0 : index
    %c0_135 = arith.constant 0 : index
    %353 = vector.load %arg12[%c1_133, %c0_134, %c0_135] : memref<2x1x64xf32, #tpu.memory_space<vmem>>, vector<1x1x64xf32>
    %354 = vector.shape_cast %353 : vector<1x1x64xf32> to vector<1x64xf32>
    %c1_136 = arith.constant 1 : index
    %c0_137 = arith.constant 0 : index
    %c0_138 = arith.constant 0 : index
    %355 = vector.load %arg13[%c1_136, %c0_137, %c0_138] : memref<2x1x64xf32, #tpu.memory_space<vmem>>, vector<1x1x64xf32>
    %356 = vector.shape_cast %355 : vector<1x1x64xf32> to vector<1x64xf32>
    %cst_139 = arith.constant dense<0.000000e+00> : vector<16xf32>
    %357 = vector.multi_reduction <add>, %352, %cst_139 [1] : vector<16x64xf32> to vector<16xf32>
    %358 = vector.shape_cast %357 : vector<16xf32> to vector<16x1xf32>
    %cst_140 = arith.constant 6.400000e+01 : f32
    %359 = vector.broadcast %cst_140 : f32 to vector<16x1xf32>
    %360 = arith.divf %358, %359 : vector<16x1xf32>
    %361 = vector.broadcast %360 : vector<16x1xf32> to vector<16x64xf32>
    %362 = arith.subf %352, %361 : vector<16x64xf32>
    %363 = arith.mulf %362, %362 : vector<16x64xf32>
    %cst_141 = arith.constant dense<0.000000e+00> : vector<16xf32>
    %364 = vector.multi_reduction <add>, %363, %cst_141 [1] : vector<16x64xf32> to vector<16xf32>
    %365 = vector.shape_cast %364 : vector<16xf32> to vector<16x1xf32>
    %cst_142 = arith.constant 6.400000e+01 : f32
    %366 = vector.broadcast %cst_142 : f32 to vector<16x1xf32>
    %367 = arith.divf %365, %366 : vector<16x1xf32>
    %cst_143 = arith.constant 9.99999996E-13 : f32
    %368 = vector.broadcast %cst_143 : f32 to vector<16x1xf32>
    %369 = arith.addf %367, %368 : vector<16x1xf32>
    %370 = math.rsqrt %369 : vector<16x1xf32>
    %371 = vector.broadcast %370 : vector<16x1xf32> to vector<16x64xf32>
    %372 = arith.mulf %362, %371 : vector<16x64xf32>
    %373 = vector.broadcast %354 : vector<1x64xf32> to vector<16x64xf32>
    %374 = arith.mulf %372, %373 : vector<16x64xf32>
    %375 = vector.broadcast %356 : vector<1x64xf32> to vector<16x64xf32>
    %376 = arith.addf %374, %375 : vector<16x64xf32>
    %c1_144 = arith.constant 1 : index
    %c0_145 = arith.constant 0 : index
    %c0_146 = arith.constant 0 : index
    %377 = vector.load %arg14[%c1_144, %c0_145, %c0_146] : memref<2x64x256xbf16, #tpu.memory_space<vmem>>, vector<1x64x256xbf16>
    %378 = vector.shape_cast %377 : vector<1x64x256xbf16> to vector<64x256xbf16>
    %379 = arith.truncf %376 : vector<16x64xf32> to vector<16x64xbf16>
    %cst_147 = arith.constant dense<0.000000e+00> : vector<16x256xf32>
    %380 = tpu.matmul %379, %378, %cst_147 {dimension_numbers = #tpu.dot_dimension_numbers<[1], [0], [0], [1], [0, 0, 1, 1], [], []>} : vector<16x64xbf16>, vector<64x256xbf16>, vector<16x256xf32> -> vector<16x256xf32>
    %c1_148 = arith.constant 1 : index
    %c0_149 = arith.constant 0 : index
    %c0_150 = arith.constant 0 : index
    %381 = vector.load %arg15[%c1_148, %c0_149, %c0_150] : memref<2x1x256xf32, #tpu.memory_space<vmem>>, vector<1x1x256xf32>
    %382 = vector.shape_cast %381 : vector<1x1x256xf32> to vector<1x256xf32>
    %383 = vector.broadcast %382 : vector<1x256xf32> to vector<16x256xf32>
    %384 = arith.addf %380, %383 : vector<16x256xf32>
    %cst_151 = arith.constant 5.000000e-01 : f32
    %385 = vector.broadcast %cst_151 : f32 to vector<16x256xf32>
    %386 = arith.mulf %385, %384 : vector<16x256xf32>
    %cst_152 = arith.constant 4.471500e-02 : f32
    %387 = vector.broadcast %cst_152 : f32 to vector<16x256xf32>
    %388 = arith.mulf %387, %384 : vector<16x256xf32>
    %389 = arith.mulf %388, %384 : vector<16x256xf32>
    %390 = arith.mulf %389, %384 : vector<16x256xf32>
    %391 = arith.addf %384, %390 : vector<16x256xf32>
    %cst_153 = arith.constant 0.797884583 : f32
    %392 = vector.broadcast %cst_153 : f32 to vector<16x256xf32>
    %393 = arith.mulf %392, %391 : vector<16x256xf32>
    %394 = math.tanh %393 : vector<16x256xf32>
    %cst_154 = arith.constant 1.000000e+00 : f32
    %395 = vector.broadcast %cst_154 : f32 to vector<16x256xf32>
    %396 = arith.addf %395, %394 : vector<16x256xf32>
    %397 = arith.mulf %386, %396 : vector<16x256xf32>
    %c1_155 = arith.constant 1 : index
    %c0_156 = arith.constant 0 : index
    %c0_157 = arith.constant 0 : index
    %398 = vector.load %arg16[%c1_155, %c0_156, %c0_157] : memref<2x256x64xbf16, #tpu.memory_space<vmem>>, vector<1x256x64xbf16>
    %399 = vector.shape_cast %398 : vector<1x256x64xbf16> to vector<256x64xbf16>
    %400 = arith.truncf %397 : vector<16x256xf32> to vector<16x256xbf16>
    %cst_158 = arith.constant dense<0.000000e+00> : vector<16x64xf32>
    %401 = tpu.matmul %400, %399, %cst_158 {dimension_numbers = #tpu.dot_dimension_numbers<[1], [0], [0], [1], [0, 0, 1, 1], [], []>} : vector<16x256xbf16>, vector<256x64xbf16>, vector<16x64xf32> -> vector<16x64xf32>
    %c1_159 = arith.constant 1 : index
    %c0_160 = arith.constant 0 : index
    %c0_161 = arith.constant 0 : index
    %402 = vector.load %arg17[%c1_159, %c0_160, %c0_161] : memref<2x1x64xf32, #tpu.memory_space<vmem>>, vector<1x1x64xf32>
    %403 = vector.shape_cast %402 : vector<1x1x64xf32> to vector<1x64xf32>
    %404 = vector.broadcast %403 : vector<1x64xf32> to vector<16x64xf32>
    %405 = arith.addf %401, %404 : vector<16x64xf32>
    %406 = arith.addf %405, %376 : vector<16x64xf32>
    %c1_162 = arith.constant 1 : index
    %c0_163 = arith.constant 0 : index
    %c0_164 = arith.constant 0 : index
    %407 = vector.load %arg18[%c1_162, %c0_163, %c0_164] : memref<2x1x64xf32, #tpu.memory_space<vmem>>, vector<1x1x64xf32>
    %408 = vector.shape_cast %407 : vector<1x1x64xf32> to vector<1x64xf32>
    %c1_165 = arith.constant 1 : index
    %c0_166 = arith.constant 0 : index
    %c0_167 = arith.constant 0 : index
    %409 = vector.load %arg19[%c1_165, %c0_166, %c0_167] : memref<2x1x64xf32, #tpu.memory_space<vmem>>, vector<1x1x64xf32>
    %410 = vector.shape_cast %409 : vector<1x1x64xf32> to vector<1x64xf32>
    %cst_168 = arith.constant dense<0.000000e+00> : vector<16xf32>
    %411 = vector.multi_reduction <add>, %406, %cst_168 [1] : vector<16x64xf32> to vector<16xf32>
    %412 = vector.shape_cast %411 : vector<16xf32> to vector<16x1xf32>
    %cst_169 = arith.constant 6.400000e+01 : f32
    %413 = vector.broadcast %cst_169 : f32 to vector<16x1xf32>
    %414 = arith.divf %412, %413 : vector<16x1xf32>
    %415 = vector.broadcast %414 : vector<16x1xf32> to vector<16x64xf32>
    %416 = arith.subf %406, %415 : vector<16x64xf32>
    %417 = arith.mulf %416, %416 : vector<16x64xf32>
    %cst_170 = arith.constant dense<0.000000e+00> : vector<16xf32>
    %418 = vector.multi_reduction <add>, %417, %cst_170 [1] : vector<16x64xf32> to vector<16xf32>
    %419 = vector.shape_cast %418 : vector<16xf32> to vector<16x1xf32>
    %cst_171 = arith.constant 6.400000e+01 : f32
    %420 = vector.broadcast %cst_171 : f32 to vector<16x1xf32>
    %421 = arith.divf %419, %420 : vector<16x1xf32>
    %cst_172 = arith.constant 9.99999996E-13 : f32
    %422 = vector.broadcast %cst_172 : f32 to vector<16x1xf32>
    %423 = arith.addf %421, %422 : vector<16x1xf32>
    %424 = math.rsqrt %423 : vector<16x1xf32>
    %425 = vector.broadcast %424 : vector<16x1xf32> to vector<16x64xf32>
    %426 = arith.mulf %416, %425 : vector<16x64xf32>
    %427 = vector.broadcast %408 : vector<1x64xf32> to vector<16x64xf32>
    %428 = arith.mulf %426, %427 : vector<16x64xf32>
    %429 = vector.broadcast %410 : vector<1x64xf32> to vector<16x64xf32>
    %430 = arith.addf %428, %429 : vector<16x64xf32>
    %431 = vector.extract_strided_slice %430 {offsets = [0, 0], sizes = [1, 64], strides = [1, 1]} : vector<16x64xf32> to vector<1x64xf32>
    %c0_173 = arith.constant 0 : index
    %c0_174 = arith.constant 0 : index
    %432 = vector.load %arg22[%c0_173, %c0_174] : memref<64x256xbf16, #tpu.memory_space<vmem>>, vector<64x256xbf16>
    %433 = arith.truncf %431 : vector<1x64xf32> to vector<1x64xbf16>
    %cst_175 = arith.constant dense<0.000000e+00> : vector<1x256xf32>
    %434 = tpu.matmul %433, %432, %cst_175 {dimension_numbers = #tpu.dot_dimension_numbers<[1], [0], [0], [1], [0, 0, 1, 1], [], []>} : vector<1x64xbf16>, vector<64x256xbf16>, vector<1x256xf32> -> vector<1x256xf32>
    %c0_176 = arith.constant 0 : index
    %c0_177 = arith.constant 0 : index
    %435 = vector.load %arg23[%c0_176, %c0_177] : memref<1x256xf32, #tpu.memory_space<vmem>>, vector<1x256xf32>
    %436 = arith.addf %434, %435 : vector<1x256xf32>
    %437 = vector.extract_strided_slice %436 {offsets = [0, 0], sizes = [1, 64], strides = [1, 1]} : vector<1x256xf32> to vector<1x64xf32>
    %438 = math.tanh %437 : vector<1x64xf32>
    %439 = vector.extract_strided_slice %436 {offsets = [0, 64], sizes = [1, 64], strides = [1, 1]} : vector<1x256xf32> to vector<1x64xf32>
    %440 = math.tanh %439 : vector<1x64xf32>
    %441 = vector.extract_strided_slice %436 {offsets = [0, 128], sizes = [1, 128], strides = [1, 1]} : vector<1x256xf32> to vector<1x128xf32>
    %cst_178 = arith.constant dense<0xFF800000> : vector<1xf32>
    %442 = vector.multi_reduction <maximumf>, %441, %cst_178 [1] : vector<1x128xf32> to vector<1xf32>
    %443 = vector.shape_cast %442 : vector<1xf32> to vector<1x1xf32>
    %444 = vector.broadcast %443 : vector<1x1xf32> to vector<1x128xf32>
    %445 = arith.subf %441, %444 : vector<1x128xf32>
    %446 = math.exp %445 : vector<1x128xf32>
    %cst_179 = arith.constant dense<0.000000e+00> : vector<1xf32>
    %447 = vector.multi_reduction <add>, %446, %cst_179 [1] : vector<1x128xf32> to vector<1xf32>
    %448 = vector.shape_cast %447 : vector<1xf32> to vector<1x1xf32>
    %449 = vector.broadcast %448 : vector<1x1xf32> to vector<1x128xf32>
    %450 = arith.divf %446, %449 : vector<1x128xf32>
    %c0_180 = arith.constant 0 : index
    %c0_181 = arith.constant 0 : index
    %c0_182 = arith.constant 0 : index
    %451 = vector.load %arg46[%c0_180, %c0_181, %c0_182] : memref<1x1x128xf32, #tpu.memory_space<vmem>>, vector<1x1x128xf32>
    %452 = vector.shape_cast %451 : vector<1x1x128xf32> to vector<1x128xf32>
    %453 = vector.shape_cast %450 : vector<1x128xf32> to vector<1x1x128xf32>
    tpu.vector_store %arg46[%c0_180, %c0_181, %c0_182], %453 {strides = array<i32>} : memref<1x1x128xf32, #tpu.memory_space<vmem>>, vector<1x1x128xf32>,
    %c0_183 = arith.constant 0 : index
    %c0_184 = arith.constant 0 : index
    %c0_185 = arith.constant 0 : index
    %454 = vector.load %arg2[%c0_183, %c0_184, %c0_185] : memref<1x8x128xf32, #tpu.memory_space<vmem>>, vector<1x8x128xf32>
    %455 = vector.shape_cast %454 : vector<1x8x128xf32> to vector<8x128xf32>
    %c0_186 = arith.constant 0 : index
    %c0_187 = arith.constant 0 : index
    %456 = vector.load %arg20[%c0_186, %c0_187] : memref<128x64xbf16, #tpu.memory_space<vmem>>, vector<128x64xbf16>
    %457 = arith.truncf %455 : vector<8x128xf32> to vector<8x128xbf16>
    %cst_188 = arith.constant dense<0.000000e+00> : vector<8x64xf32>
    %458 = tpu.matmul %457, %456, %cst_188 {dimension_numbers = #tpu.dot_dimension_numbers<[1], [0], [0], [1], [0, 0, 1, 1], [], []>} : vector<8x128xbf16>, vector<128x64xbf16>, vector<8x64xf32> -> vector<8x64xf32>
    %c0_189 = arith.constant 0 : index
    %c0_190 = arith.constant 0 : index
    %459 = vector.load %arg21[%c0_189, %c0_190] : memref<1x64xf32, #tpu.memory_space<vmem>>, vector<1x64xf32>
    %460 = vector.broadcast %459 : vector<1x64xf32> to vector<8x64xf32>
    %461 = arith.addf %458, %460 : vector<8x64xf32>
    %462 = math.tanh %461 : vector<8x64xf32>
    %463 = vector.broadcast %438 : vector<1x64xf32> to vector<8x64xf32>
    %464 = arith.mulf %462, %463 : vector<8x64xf32>
    %cst_191 = arith.constant dense<0.000000e+00> : vector<64xf32>
    %465 = vector.multi_reduction <add>, %464, %cst_191 [0] : vector<8x64xf32> to vector<64xf32>
    %466 = vector.shape_cast %465 : vector<64xf32> to vector<1x64xf32>
    %cst_192 = arith.constant 8.000000e+00 : f32
    %467 = vector.broadcast %cst_192 : f32 to vector<1x64xf32>
    %468 = arith.divf %466, %467 : vector<1x64xf32>
    %cst_193 = arith.constant dense<0.000000e+00> : vector<64xf32>
    %469 = vector.multi_reduction <add>, %464, %cst_193 [0] : vector<8x64xf32> to vector<64xf32>
    %470 = vector.shape_cast %469 : vector<64xf32> to vector<1x64xf32>
    %471 = tpu.iota {dimensions = array<i32: 1>} : vector<1x128xi32>
    %cst_194 = arith.constant 0.000000e+00 : f32
    %472 = vector.broadcast %cst_194 : f32 to vector<1x64xf32>
    %c0_i32 = arith.constant 0 : i32
    %c4_i32 = arith.constant 4 : i32
    %473 = arith.addi %c0_i32, %c4_i32 : i32
    %c1_i32 = arith.constant 1 : i32
    %474:2 = scf.for %arg47 = %c0_i32 to %473 step %c1_i32 iter_args(%arg48 = %472, %arg49 = %472) -> (vector<1x64xf32>, vector<1x64xf32>)  : i32 {
      %c0_i32_196 = arith.constant 0 : i32
      %475 = arith.cmpi eq, %arg47, %c0_i32_196 : i32
      %476 = arith.select %475, %468, %470 : vector<1x64xf32>
      %477 = tpu.concatenate %476, %arg48, %arg49 in 1 : vector<1x64xf32>, vector<1x64xf32>, vector<1x64xf32> -> vector<1x192xf32>
      %c0_197 = arith.constant 0 : index
      %c0_198 = arith.constant 0 : index
      %478 = vector.load %arg28[%c0_197, %c0_198] : memref<192x192xbf16, #tpu.memory_space<vmem>>, vector<192x192xbf16>
      %479 = arith.truncf %477 : vector<1x192xf32> to vector<1x192xbf16>
      %cst_199 = arith.constant dense<0.000000e+00> : vector<1x192xf32>
      %480 = tpu.matmul %479, %478, %cst_199 {dimension_numbers = #tpu.dot_dimension_numbers<[1], [0], [0], [1], [0, 0, 1, 1], [], []>} : vector<1x192xbf16>, vector<192x192xbf16>, vector<1x192xf32> -> vector<1x192xf32>
      %c0_200 = arith.constant 0 : index
      %c0_201 = arith.constant 0 : index
      %481 = vector.load %arg29[%c0_200, %c0_201] : memref<1x192xf32, #tpu.memory_space<vmem>>, vector<1x192xf32>
      %482 = arith.addf %480, %481 : vector<1x192xf32>
      %c0_202 = arith.constant 0 : index
      %c0_203 = arith.constant 0 : index
      %483 = vector.load %arg30[%c0_202, %c0_203] : memref<64x128xbf16, #tpu.memory_space<vmem>>, vector<64x128xbf16>
      %484 = arith.truncf %arg48 : vector<1x64xf32> to vector<1x64xbf16>
      %cst_204 = arith.constant dense<0.000000e+00> : vector<1x128xf32>
      %485 = tpu.matmul %484, %483, %cst_204 {dimension_numbers = #tpu.dot_dimension_numbers<[1], [0], [0], [1], [0, 0, 1, 1], [], []>} : vector<1x64xbf16>, vector<64x128xbf16>, vector<1x128xf32> -> vector<1x128xf32>
      %c0_205 = arith.constant 0 : index
      %c0_206 = arith.constant 0 : index
      %486 = vector.load %arg31[%c0_205, %c0_206] : memref<1x128xf32, #tpu.memory_space<vmem>>, vector<1x128xf32>
      %487 = arith.addf %485, %486 : vector<1x128xf32>
      %488 = vector.extract_strided_slice %482 {offsets = [0, 0], sizes = [1, 64], strides = [1, 1]} : vector<1x192xf32> to vector<1x64xf32>
      %489 = vector.extract_strided_slice %487 {offsets = [0, 0], sizes = [1, 64], strides = [1, 1]} : vector<1x128xf32> to vector<1x64xf32>
      %490 = arith.addf %488, %489 : vector<1x64xf32>
      %491 = arith.negf %490 : vector<1x64xf32>
      %492 = math.exp %491 : vector<1x64xf32>
      %cst_207 = arith.constant 1.000000e+00 : f32
      %493 = vector.broadcast %cst_207 : f32 to vector<1x64xf32>
      %494 = arith.addf %493, %492 : vector<1x64xf32>
      %495 = arith.divf %493, %494 : vector<1x64xf32>
      %496 = vector.extract_strided_slice %482 {offsets = [0, 64], sizes = [1, 64], strides = [1, 1]} : vector<1x192xf32> to vector<1x64xf32>
      %497 = vector.extract_strided_slice %487 {offsets = [0, 64], sizes = [1, 64], strides = [1, 1]} : vector<1x128xf32> to vector<1x64xf32>
      %498 = arith.addf %496, %497 : vector<1x64xf32>
      %499 = arith.negf %498 : vector<1x64xf32>
      %500 = math.exp %499 : vector<1x64xf32>
      %cst_208 = arith.constant 1.000000e+00 : f32
      %501 = vector.broadcast %cst_208 : f32 to vector<1x64xf32>
      %502 = arith.addf %501, %500 : vector<1x64xf32>
      %503 = arith.divf %501, %502 : vector<1x64xf32>
      %504 = vector.extract_strided_slice %482 {offsets = [0, 128], sizes = [1, 64], strides = [1, 1]} : vector<1x192xf32> to vector<1x64xf32>
      %505 = arith.mulf %503, %arg48 : vector<1x64xf32>
      %c0_209 = arith.constant 0 : index
      %c0_210 = arith.constant 0 : index
      %506 = vector.load %arg32[%c0_209, %c0_210] : memref<64x64xbf16, #tpu.memory_space<vmem>>, vector<64x64xbf16>
      %507 = arith.truncf %505 : vector<1x64xf32> to vector<1x64xbf16>
      %cst_211 = arith.constant dense<0.000000e+00> : vector<1x64xf32>
      %508 = tpu.matmul %507, %506, %cst_211 {dimension_numbers = #tpu.dot_dimension_numbers<[1], [0], [0], [1], [0, 0, 1, 1], [], []>} : vector<1x64xbf16>, vector<64x64xbf16>, vector<1x64xf32> -> vector<1x64xf32>
      %509 = arith.addf %504, %508 : vector<1x64xf32>
      %c0_212 = arith.constant 0 : index
      %c0_213 = arith.constant 0 : index
      %510 = vector.load %arg33[%c0_212, %c0_213] : memref<1x64xf32, #tpu.memory_space<vmem>>, vector<1x64xf32>
      %511 = arith.addf %509, %510 : vector<1x64xf32>
      %512 = math.tanh %511 : vector<1x64xf32>
      %cst_214 = arith.constant 1.000000e+00 : f32
      %513 = vector.broadcast %cst_214 : f32 to vector<1x64xf32>
      %514 = arith.subf %513, %495 : vector<1x64xf32>
      %515 = arith.mulf %514, %arg48 : vector<1x64xf32>
      %516 = arith.mulf %495, %512 : vector<1x64xf32>
      %517 = arith.addf %515, %516 : vector<1x64xf32>
      %c0_215 = arith.constant 0 : index
      %c0_216 = arith.constant 0 : index
      %518 = vector.load %arg24[%c0_215, %c0_216] : memref<64x64xbf16, #tpu.memory_space<vmem>>, vector<64x64xbf16>
      %519 = arith.truncf %517 : vector<1x64xf32> to vector<1x64xbf16>
      %cst_217 = arith.constant dense<0.000000e+00> : vector<1x64xf32>
      %520 = tpu.matmul %519, %518, %cst_217 {dimension_numbers = #tpu.dot_dimension_numbers<[1], [0], [0], [1], [0, 0, 1, 1], [], []>} : vector<1x64xbf16>, vector<64x64xbf16>, vector<1x64xf32> -> vector<1x64xf32>
      %c0_218 = arith.constant 0 : index
      %c0_219 = arith.constant 0 : index
      %521 = vector.load %arg25[%c0_218, %c0_219] : memref<1x64xf32, #tpu.memory_space<vmem>>, vector<1x64xf32>
      %522 = arith.addf %520, %521 : vector<1x64xf32>
      %523 = vector.broadcast %522 : vector<1x64xf32> to vector<8x64xf32>
      %524 = arith.addf %523, %464 : vector<8x64xf32>
      %525 = math.tanh %524 : vector<8x64xf32>
      %c0_220 = arith.constant 0 : index
      %c0_221 = arith.constant 0 : index
      %526 = vector.load %arg26[%c0_220, %c0_221] : memref<1x64xf32, #tpu.memory_space<vmem>>, vector<1x64xf32>
      %527 = vector.broadcast %526 : vector<1x64xf32> to vector<8x64xf32>
      %528 = arith.mulf %525, %527 : vector<8x64xf32>
      %cst_222 = arith.constant dense<0.000000e+00> : vector<8xf32>
      %529 = vector.multi_reduction <add>, %528, %cst_222 [1] : vector<8x64xf32> to vector<8xf32>
      %530 = vector.shape_cast %529 : vector<8xf32> to vector<8x1xf32>
      %c0_223 = arith.constant 0 : index
      %c0_224 = arith.constant 0 : index
      %531 = vector.load %arg27[%c0_223, %c0_224] : memref<1x1xf32, #tpu.memory_space<vmem>>, vector<1x1xf32>
      %532 = vector.broadcast %531 : vector<1x1xf32> to vector<8x1xf32>
      %533 = arith.addf %530, %532 : vector<8x1xf32>
      %cst_225 = arith.constant dense<0xFF800000> : vector<1xf32>
      %534 = vector.multi_reduction <maximumf>, %533, %cst_225 [0] : vector<8x1xf32> to vector<1xf32>
      %535 = vector.shape_cast %534 : vector<1xf32> to vector<1x1xf32>
      %536 = vector.broadcast %535 : vector<1x1xf32> to vector<8x1xf32>
      %537 = arith.subf %533, %536 : vector<8x1xf32>
      %538 = math.exp %537 : vector<8x1xf32>
      %cst_226 = arith.constant dense<0.000000e+00> : vector<1xf32>
      %539 = vector.multi_reduction <add>, %538, %cst_226 [0] : vector<8x1xf32> to vector<1xf32>
      %540 = vector.shape_cast %539 : vector<1xf32> to vector<1x1xf32>
      %541 = tpu.reciprocal %540 {approx = true} : vector<1x1xf32> -> vector<1x1xf32>
      %542 = vector.broadcast %541 : vector<1x1xf32> to vector<8x1xf32>
      %543 = arith.mulf %538, %542 : vector<8x1xf32>
      %544 = vector.broadcast %543 : vector<8x1xf32> to vector<8x128xf32>
      %545 = arith.mulf %544, %455 : vector<8x128xf32>
      %cst_227 = arith.constant dense<0.000000e+00> : vector<128xf32>
      %546 = vector.multi_reduction <add>, %545, %cst_227 [0] : vector<8x128xf32> to vector<128xf32>
      %547 = vector.shape_cast %546 : vector<128xf32> to vector<1x128xf32>
      %c0_228 = arith.constant 0 : index
      %c0_229 = arith.constant 0 : index
      %548 = vector.load %arg34[%c0_228, %c0_229] : memref<128x64xbf16, #tpu.memory_space<vmem>>, vector<128x64xbf16>
      %549 = arith.truncf %547 : vector<1x128xf32> to vector<1x128xbf16>
      %cst_230 = arith.constant dense<0.000000e+00> : vector<1x64xf32>
      %550 = tpu.matmul %549, %548, %cst_230 {dimension_numbers = #tpu.dot_dimension_numbers<[1], [0], [0], [1], [0, 0, 1, 1], [], []>} : vector<1x128xbf16>, vector<128x64xbf16>, vector<1x64xf32> -> vector<1x64xf32>
      %c0_231 = arith.constant 0 : index
      %c0_232 = arith.constant 0 : index
      %551 = vector.load %arg35[%c0_231, %c0_232] : memref<1x64xf32, #tpu.memory_space<vmem>>, vector<1x64xf32>
      %552 = arith.addf %550, %551 : vector<1x64xf32>
      %553 = math.tanh %552 : vector<1x64xf32>
      %554 = arith.mulf %553, %440 : vector<1x64xf32>
      %555 = tpu.concatenate %554, %517 in 1 : vector<1x64xf32>, vector<1x64xf32> -> vector<1x128xf32>
      %c0_233 = arith.constant 0 : index
      %c0_234 = arith.constant 0 : index
      %556 = vector.load %arg36[%c0_233, %c0_234] : memref<128x192xbf16, #tpu.memory_space<vmem>>, vector<128x192xbf16>
      %557 = arith.truncf %555 : vector<1x128xf32> to vector<1x128xbf16>
      %cst_235 = arith.constant dense<0.000000e+00> : vector<1x192xf32>
      %558 = tpu.matmul %557, %556, %cst_235 {dimension_numbers = #tpu.dot_dimension_numbers<[1], [0], [0], [1], [0, 0, 1, 1], [], []>} : vector<1x128xbf16>, vector<128x192xbf16>, vector<1x192xf32> -> vector<1x192xf32>
      %c0_236 = arith.constant 0 : index
      %c0_237 = arith.constant 0 : index
      %559 = vector.load %arg37[%c0_236, %c0_237] : memref<1x192xf32, #tpu.memory_space<vmem>>, vector<1x192xf32>
      %560 = arith.addf %558, %559 : vector<1x192xf32>
      %c0_238 = arith.constant 0 : index
      %c0_239 = arith.constant 0 : index
      %561 = vector.load %arg38[%c0_238, %c0_239] : memref<64x128xbf16, #tpu.memory_space<vmem>>, vector<64x128xbf16>
      %562 = arith.truncf %arg48 : vector<1x64xf32> to vector<1x64xbf16>
      %cst_240 = arith.constant dense<0.000000e+00> : vector<1x128xf32>
      %563 = tpu.matmul %562, %561, %cst_240 {dimension_numbers = #tpu.dot_dimension_numbers<[1], [0], [0], [1], [0, 0, 1, 1], [], []>} : vector<1x64xbf16>, vector<64x128xbf16>, vector<1x128xf32> -> vector<1x128xf32>
      %c0_241 = arith.constant 0 : index
      %c0_242 = arith.constant 0 : index
      %564 = vector.load %arg39[%c0_241, %c0_242] : memref<1x128xf32, #tpu.memory_space<vmem>>, vector<1x128xf32>
      %565 = arith.addf %563, %564 : vector<1x128xf32>
      %566 = vector.extract_strided_slice %560 {offsets = [0, 0], sizes = [1, 64], strides = [1, 1]} : vector<1x192xf32> to vector<1x64xf32>
      %567 = vector.extract_strided_slice %565 {offsets = [0, 0], sizes = [1, 64], strides = [1, 1]} : vector<1x128xf32> to vector<1x64xf32>
      %568 = arith.addf %566, %567 : vector<1x64xf32>
      %569 = arith.negf %568 : vector<1x64xf32>
      %570 = math.exp %569 : vector<1x64xf32>
      %cst_243 = arith.constant 1.000000e+00 : f32
      %571 = vector.broadcast %cst_243 : f32 to vector<1x64xf32>
      %572 = arith.addf %571, %570 : vector<1x64xf32>
      %573 = arith.divf %571, %572 : vector<1x64xf32>
      %574 = vector.extract_strided_slice %560 {offsets = [0, 64], sizes = [1, 64], strides = [1, 1]} : vector<1x192xf32> to vector<1x64xf32>
      %575 = vector.extract_strided_slice %565 {offsets = [0, 64], sizes = [1, 64], strides = [1, 1]} : vector<1x128xf32> to vector<1x64xf32>
      %576 = arith.addf %574, %575 : vector<1x64xf32>
      %577 = arith.negf %576 : vector<1x64xf32>
      %578 = math.exp %577 : vector<1x64xf32>
      %cst_244 = arith.constant 1.000000e+00 : f32
      %579 = vector.broadcast %cst_244 : f32 to vector<1x64xf32>
      %580 = arith.addf %579, %578 : vector<1x64xf32>
      %581 = arith.divf %579, %580 : vector<1x64xf32>
      %582 = vector.extract_strided_slice %560 {offsets = [0, 128], sizes = [1, 64], strides = [1, 1]} : vector<1x192xf32> to vector<1x64xf32>
      %583 = arith.mulf %581, %arg48 : vector<1x64xf32>
      %c0_245 = arith.constant 0 : index
      %c0_246 = arith.constant 0 : index
      %584 = vector.load %arg40[%c0_245, %c0_246] : memref<64x64xbf16, #tpu.memory_space<vmem>>, vector<64x64xbf16>
      %585 = arith.truncf %583 : vector<1x64xf32> to vector<1x64xbf16>
      %cst_247 = arith.constant dense<0.000000e+00> : vector<1x64xf32>
      %586 = tpu.matmul %585, %584, %cst_247 {dimension_numbers = #tpu.dot_dimension_numbers<[1], [0], [0], [1], [0, 0, 1, 1], [], []>} : vector<1x64xbf16>, vector<64x64xbf16>, vector<1x64xf32> -> vector<1x64xf32>
      %587 = arith.addf %582, %586 : vector<1x64xf32>
      %c0_248 = arith.constant 0 : index
      %c0_249 = arith.constant 0 : index
      %588 = vector.load %arg41[%c0_248, %c0_249] : memref<1x64xf32, #tpu.memory_space<vmem>>, vector<1x64xf32>
      %589 = arith.addf %587, %588 : vector<1x64xf32>
      %590 = math.tanh %589 : vector<1x64xf32>
      %cst_250 = arith.constant 1.000000e+00 : f32
      %591 = vector.broadcast %cst_250 : f32 to vector<1x64xf32>
      %592 = arith.subf %591, %573 : vector<1x64xf32>
      %593 = arith.mulf %592, %arg48 : vector<1x64xf32>
      %594 = arith.mulf %573, %590 : vector<1x64xf32>
      %595 = arith.addf %593, %594 : vector<1x64xf32>
      %c0_251 = arith.constant 0 : index
      %c0_252 = arith.constant 0 : index
      %596 = vector.load %arg42[%c0_251, %c0_252] : memref<64x128xbf16, #tpu.memory_space<vmem>>, vector<64x128xbf16>
      %597 = arith.truncf %595 : vector<1x64xf32> to vector<1x64xbf16>
      %cst_253 = arith.constant dense<0.000000e+00> : vector<1x128xf32>
      %598 = tpu.matmul %597, %596, %cst_253 {dimension_numbers = #tpu.dot_dimension_numbers<[1], [0], [0], [1], [0, 0, 1, 1], [], []>} : vector<1x64xbf16>, vector<64x128xbf16>, vector<1x128xf32> -> vector<1x128xf32>
      %c0_254 = arith.constant 0 : index
      %c0_255 = arith.constant 0 : index
      %599 = vector.load %arg43[%c0_254, %c0_255] : memref<1x128xf32, #tpu.memory_space<vmem>>, vector<1x128xf32>
      %600 = arith.addf %598, %599 : vector<1x128xf32>
      %cst_256 = arith.constant dense<0xFF800000> : vector<1xf32>
      %601 = vector.multi_reduction <maximumf>, %600, %cst_256 [1] : vector<1x128xf32> to vector<1xf32>
      %602 = vector.shape_cast %601 : vector<1xf32> to vector<1x1xf32>
      %603 = vector.broadcast %602 : vector<1x1xf32> to vector<1x128xf32>
      %604 = arith.subf %600, %603 : vector<1x128xf32>
      %605 = math.exp %604 : vector<1x128xf32>
      %cst_257 = arith.constant dense<0.000000e+00> : vector<1xf32>
      %606 = vector.multi_reduction <add>, %605, %cst_257 [1] : vector<1x128xf32> to vector<1xf32>
      %607 = vector.shape_cast %606 : vector<1xf32> to vector<1x1xf32>
      %608 = vector.broadcast %607 : vector<1x1xf32> to vector<1x128xf32>
      %609 = arith.divf %605, %608 : vector<1x128xf32>
      %c0_258 = arith.constant 0 : index
      %610 = arith.index_cast %arg47 : i32 to index
      %c0_259 = arith.constant 0 : index
      %c0_260 = arith.constant 0 : index
      %611 = vector.load %arg45[%c0_258, %610, %c0_259, %c0_260] : memref<1x4x1x128xf32, #tpu.memory_space<vmem>>, vector<1x1x1x128xf32>
      %612 = vector.shape_cast %611 : vector<1x1x1x128xf32> to vector<1x128xf32>
      %613 = vector.shape_cast %609 : vector<1x128xf32> to vector<1x1x1x128xf32>
      tpu.vector_store %arg45[%c0_258, %610, %c0_259, %c0_260], %613 {strides = array<i32>} : memref<1x4x1x128xf32, #tpu.memory_space<vmem>>, vector<1x1x1x128xf32>,
      %cst_261 = arith.constant dense<0xFF800000> : vector<1xf32>
      %614 = vector.multi_reduction <maximumf>, %609, %cst_261 [1] : vector<1x128xf32> to vector<1xf32>
      %615 = vector.shape_cast %614 : vector<1xf32> to vector<1x1xf32>
      %616 = vector.broadcast %615 : vector<1x1xf32> to vector<1x128xf32>
      %617 = arith.cmpf oeq, %609, %616 : vector<1x128xf32>
      %c128_i32 = arith.constant 128 : i32
      %618 = vector.broadcast %c128_i32 : i32 to vector<1x128xi32>
      %619 = arith.select %617, %471, %618 : vector<1x128xi1>, vector<1x128xi32>
      %620 = vector.shape_cast %619 : vector<1x128xi32> to vector<1x1x128xi32>
      %cst_262 = arith.constant dense<2147483647> : vector<1xi32>
      %621 = vector.multi_reduction <minsi>, %620, %cst_262 [1, 2] : vector<1x1x128xi32> to vector<1xi32>
      %622 = vector.shape_cast %621 : vector<1xi32> to vector<1x1x1xi32>
      %623 = vector.extract %622[0, 0, 0] : i32 from vector<1x1x1xi32>
      %c50_i32 = arith.constant 50 : i32
      %624 = arith.minsi %623, %c50_i32 : i32
      %625 = arith.index_cast %624 : i32 to index
      %c0_263 = arith.constant 0 : index
      %c0_264 = arith.constant 0 : index
      %626 = vector.load %arg44[%625, %c0_263, %c0_264] : memref<51x1x64xf32, #tpu.memory_space<vmem>>, vector<1x1x64xf32>
      %627 = vector.shape_cast %626 : vector<1x1x64xf32> to vector<1x64xf32>
      scf.yield %595, %627 : vector<1x64xf32>, vector<1x64xf32>
    }
    %c4_i32_195 = arith.constant 4 : i32
    return
  }
  func.func @transform_0(%arg0: i32) -> (i32, i32, i32) {
    %c0_i32 = arith.constant 0 : i32
    %c0_i32_0 = arith.constant 0 : i32
    %c0_i32_1 = arith.constant 0 : i32
    return %arg0, %c0_i32, %c0_i32_0 : i32, i32, i32
  }
  func.func @transform_1(%arg0: i32) -> (i32, i32, i32) {
    %c0_i32 = arith.constant 0 : i32
    %c0_i32_0 = arith.constant 0 : i32
    %c0_i32_1 = arith.constant 0 : i32
    return %arg0, %c0_i32, %c0_i32_0 : i32, i32, i32
  }
  func.func @transform_2(%arg0: i32) -> (i32, i32, i32) {
    %c0_i32 = arith.constant 0 : i32
    %c0_i32_0 = arith.constant 0 : i32
    %c0_i32_1 = arith.constant 0 : i32
    return %arg0, %c0_i32, %c0_i32_0 : i32, i32, i32
  }
  func.func @transform_3(%arg0: i32) -> (i32, i32) {
    %c0_i32 = arith.constant 0 : i32
    %c0_i32_0 = arith.constant 0 : i32
    %c0_i32_1 = arith.constant 0 : i32
    return %c0_i32, %c0_i32_0 : i32, i32
  }
  func.func @transform_4(%arg0: i32) -> (i32, i32) {
    %c0_i32 = arith.constant 0 : i32
    %c0_i32_0 = arith.constant 0 : i32
    %c0_i32_1 = arith.constant 0 : i32
    return %c0_i32, %c0_i32_0 : i32, i32
  }
  func.func @transform_5(%arg0: i32) -> (i32, i32) {
    %c0_i32 = arith.constant 0 : i32
    %c0_i32_0 = arith.constant 0 : i32
    %c0_i32_1 = arith.constant 0 : i32
    return %c0_i32, %c0_i32_0 : i32, i32
  }
  func.func @transform_6(%arg0: i32) -> (i32, i32) {
    %c0_i32 = arith.constant 0 : i32
    %c0_i32_0 = arith.constant 0 : i32
    %c0_i32_1 = arith.constant 0 : i32
    return %c0_i32, %c0_i32_0 : i32, i32
  }
  func.func @transform_7(%arg0: i32) -> (i32, i32, i32) {
    %c0_i32 = arith.constant 0 : i32
    %c0_i32_0 = arith.constant 0 : i32
    %c0_i32_1 = arith.constant 0 : i32
    %c0_i32_2 = arith.constant 0 : i32
    return %c0_i32, %c0_i32_0, %c0_i32_1 : i32, i32, i32
  }
  func.func @transform_8(%arg0: i32) -> (i32, i32, i32) {
    %c0_i32 = arith.constant 0 : i32
    %c0_i32_0 = arith.constant 0 : i32
    %c0_i32_1 = arith.constant 0 : i32
    %c0_i32_2 = arith.constant 0 : i32
    return %c0_i32, %c0_i32_0, %c0_i32_1 : i32, i32, i32
  }
  func.func @transform_9(%arg0: i32) -> (i32, i32, i32) {
    %c0_i32 = arith.constant 0 : i32
    %c0_i32_0 = arith.constant 0 : i32
    %c0_i32_1 = arith.constant 0 : i32
    %c0_i32_2 = arith.constant 0 : i32
    return %c0_i32, %c0_i32_0, %c0_i32_1 : i32, i32, i32
  }
  func.func @transform_10(%arg0: i32) -> (i32, i32, i32) {
    %c0_i32 = arith.constant 0 : i32
    %c0_i32_0 = arith.constant 0 : i32
    %c0_i32_1 = arith.constant 0 : i32
    %c0_i32_2 = arith.constant 0 : i32
    return %c0_i32, %c0_i32_0, %c0_i32_1 : i32, i32, i32
  }
  func.func @transform_11(%arg0: i32) -> (i32, i32, i32) {
    %c0_i32 = arith.constant 0 : i32
    %c0_i32_0 = arith.constant 0 : i32
    %c0_i32_1 = arith.constant 0 : i32
    %c0_i32_2 = arith.constant 0 : i32
    return %c0_i32, %c0_i32_0, %c0_i32_1 : i32, i32, i32
  }
  func.func @transform_12(%arg0: i32) -> (i32, i32, i32) {
    %c0_i32 = arith.constant 0 : i32
    %c0_i32_0 = arith.constant 0 : i32
    %c0_i32_1 = arith.constant 0 : i32
    %c0_i32_2 = arith.constant 0 : i32
    return %c0_i32, %c0_i32_0, %c0_i32_1 : i32, i32, i32
  }
  func.func @transform_13(%arg0: i32) -> (i32, i32, i32) {
    %c0_i32 = arith.constant 0 : i32
    %c0_i32_0 = arith.constant 0 : i32
    %c0_i32_1 = arith.constant 0 : i32
    %c0_i32_2 = arith.constant 0 : i32
    return %c0_i32, %c0_i32_0, %c0_i32_1 : i32, i32, i32
  }
  func.func @transform_14(%arg0: i32) -> (i32, i32, i32) {
    %c0_i32 = arith.constant 0 : i32
    %c0_i32_0 = arith.constant 0 : i32
    %c0_i32_1 = arith.constant 0 : i32
    %c0_i32_2 = arith.constant 0 : i32
    return %c0_i32, %c0_i32_0, %c0_i32_1 : i32, i32, i32
  }
  func.func @transform_15(%arg0: i32) -> (i32, i32, i32) {
    %c0_i32 = arith.constant 0 : i32
    %c0_i32_0 = arith.constant 0 : i32
    %c0_i32_1 = arith.constant 0 : i32
    %c0_i32_2 = arith.constant 0 : i32
    return %c0_i32, %c0_i32_0, %c0_i32_1 : i32, i32, i32
  }
  func.func @transform_16(%arg0: i32) -> (i32, i32, i32) {
    %c0_i32 = arith.constant 0 : i32
    %c0_i32_0 = arith.constant 0 : i32
    %c0_i32_1 = arith.constant 0 : i32
    %c0_i32_2 = arith.constant 0 : i32
    return %c0_i32, %c0_i32_0, %c0_i32_1 : i32, i32, i32
  }
  func.func @transform_17(%arg0: i32) -> (i32, i32, i32) {
    %c0_i32 = arith.constant 0 : i32
    %c0_i32_0 = arith.constant 0 : i32
    %c0_i32_1 = arith.constant 0 : i32
    %c0_i32_2 = arith.constant 0 : i32
    return %c0_i32, %c0_i32_0, %c0_i32_1 : i32, i32, i32
  }
  func.func @transform_18(%arg0: i32) -> (i32, i32, i32) {
    %c0_i32 = arith.constant 0 : i32
    %c0_i32_0 = arith.constant 0 : i32
    %c0_i32_1 = arith.constant 0 : i32
    %c0_i32_2 = arith.constant 0 : i32
    return %c0_i32, %c0_i32_0, %c0_i32_1 : i32, i32, i32
  }
  func.func @transform_19(%arg0: i32) -> (i32, i32) {
    %c0_i32 = arith.constant 0 : i32
    %c0_i32_0 = arith.constant 0 : i32
    %c0_i32_1 = arith.constant 0 : i32
    return %c0_i32, %c0_i32_0 : i32, i32
  }
  func.func @transform_20(%arg0: i32) -> (i32, i32) {
    %c0_i32 = arith.constant 0 : i32
    %c0_i32_0 = arith.constant 0 : i32
    %c0_i32_1 = arith.constant 0 : i32
    return %c0_i32, %c0_i32_0 : i32, i32
  }
  func.func @transform_21(%arg0: i32) -> (i32, i32) {
    %c0_i32 = arith.constant 0 : i32
    %c0_i32_0 = arith.constant 0 : i32
    %c0_i32_1 = arith.constant 0 : i32
    return %c0_i32, %c0_i32_0 : i32, i32
  }
  func.func @transform_22(%arg0: i32) -> (i32, i32) {
    %c0_i32 = arith.constant 0 : i32
    %c0_i32_0 = arith.constant 0 : i32
    %c0_i32_1 = arith.constant 0 : i32
    return %c0_i32, %c0_i32_0 : i32, i32
  }
  func.func @transform_23(%arg0: i32) -> (i32, i32) {
    %c0_i32 = arith.constant 0 : i32
    %c0_i32_0 = arith.constant 0 : i32
    %c0_i32_1 = arith.constant 0 : i32
    return %c0_i32, %c0_i32_0 : i32, i32
  }
  func.func @transform_24(%arg0: i32) -> (i32, i32) {
    %c0_i32 = arith.constant 0 : i32
    %c0_i32_0 = arith.constant 0 : i32
    %c0_i32_1 = arith.constant 0 : i32
    return %c0_i32, %c0_i32_0 : i32, i32
  }
  func.func @transform_25(%arg0: i32) -> (i32, i32) {
    %c0_i32 = arith.constant 0 : i32
    %c0_i32_0 = arith.constant 0 : i32
    %c0_i32_1 = arith.constant 0 : i32
    return %c0_i32, %c0_i32_0 : i32, i32
  }
  func.func @transform_26(%arg0: i32) -> (i32, i32) {
    %c0_i32 = arith.constant 0 : i32
    %c0_i32_0 = arith.constant 0 : i32
    %c0_i32_1 = arith.constant 0 : i32
    return %c0_i32, %c0_i32_0 : i32, i32
  }
  func.func @transform_27(%arg0: i32) -> (i32, i32) {
    %c0_i32 = arith.constant 0 : i32
    %c0_i32_0 = arith.constant 0 : i32
    %c0_i32_1 = arith.constant 0 : i32
    return %c0_i32, %c0_i32_0 : i32, i32
  }
  func.func @transform_28(%arg0: i32) -> (i32, i32) {
    %c0_i32 = arith.constant 0 : i32
    %c0_i32_0 = arith.constant 0 : i32
    %c0_i32_1 = arith.constant 0 : i32
    return %c0_i32, %c0_i32_0 : i32, i32
  }
  func.func @transform_29(%arg0: i32) -> (i32, i32) {
    %c0_i32 = arith.constant 0 : i32
    %c0_i32_0 = arith.constant 0 : i32
    %c0_i32_1 = arith.constant 0 : i32
    return %c0_i32, %c0_i32_0 : i32, i32
  }
  func.func @transform_30(%arg0: i32) -> (i32, i32) {
    %c0_i32 = arith.constant 0 : i32
    %c0_i32_0 = arith.constant 0 : i32
    %c0_i32_1 = arith.constant 0 : i32
    return %c0_i32, %c0_i32_0 : i32, i32
  }
  func.func @transform_31(%arg0: i32) -> (i32, i32) {
    %c0_i32 = arith.constant 0 : i32
    %c0_i32_0 = arith.constant 0 : i32
    %c0_i32_1 = arith.constant 0 : i32
    return %c0_i32, %c0_i32_0 : i32, i32
  }
  func.func @transform_32(%arg0: i32) -> (i32, i32) {
    %c0_i32 = arith.constant 0 : i32
    %c0_i32_0 = arith.constant 0 : i32
    %c0_i32_1 = arith.constant 0 : i32
    return %c0_i32, %c0_i32_0 : i32, i32
  }
  func.func @transform_33(%arg0: i32) -> (i32, i32) {
    %c0_i32 = arith.constant 0 : i32
    %c0_i32_0 = arith.constant 0 : i32
    %c0_i32_1 = arith.constant 0 : i32
    return %c0_i32, %c0_i32_0 : i32, i32
  }
  func.func @transform_34(%arg0: i32) -> (i32, i32) {
    %c0_i32 = arith.constant 0 : i32
    %c0_i32_0 = arith.constant 0 : i32
    %c0_i32_1 = arith.constant 0 : i32
    return %c0_i32, %c0_i32_0 : i32, i32
  }
  func.func @transform_35(%arg0: i32) -> (i32, i32) {
    %c0_i32 = arith.constant 0 : i32
    %c0_i32_0 = arith.constant 0 : i32
    %c0_i32_1 = arith.constant 0 : i32
    return %c0_i32, %c0_i32_0 : i32, i32
  }
  func.func @transform_36(%arg0: i32) -> (i32, i32) {
    %c0_i32 = arith.constant 0 : i32
    %c0_i32_0 = arith.constant 0 : i32
    %c0_i32_1 = arith.constant 0 : i32
    return %c0_i32, %c0_i32_0 : i32, i32
  }
  func.func @transform_37(%arg0: i32) -> (i32, i32) {
    %c0_i32 = arith.constant 0 : i32
    %c0_i32_0 = arith.constant 0 : i32
    %c0_i32_1 = arith.constant 0 : i32
    return %c0_i32, %c0_i32_0 : i32, i32
  }
  func.func @transform_38(%arg0: i32) -> (i32, i32) {
    %c0_i32 = arith.constant 0 : i32
    %c0_i32_0 = arith.constant 0 : i32
    %c0_i32_1 = arith.constant 0 : i32
    return %c0_i32, %c0_i32_0 : i32, i32
  }
  func.func @transform_39(%arg0: i32) -> (i32, i32) {
    %c0_i32 = arith.constant 0 : i32
    %c0_i32_0 = arith.constant 0 : i32
    %c0_i32_1 = arith.constant 0 : i32
    return %c0_i32, %c0_i32_0 : i32, i32
  }
  func.func @transform_40(%arg0: i32) -> (i32, i32) {
    %c0_i32 = arith.constant 0 : i32
    %c0_i32_0 = arith.constant 0 : i32
    %c0_i32_1 = arith.constant 0 : i32
    return %c0_i32, %c0_i32_0 : i32, i32
  }
  func.func @transform_41(%arg0: i32) -> (i32, i32) {
    %c0_i32 = arith.constant 0 : i32
    %c0_i32_0 = arith.constant 0 : i32
    %c0_i32_1 = arith.constant 0 : i32
    return %c0_i32, %c0_i32_0 : i32, i32
  }
  func.func @transform_42(%arg0: i32) -> (i32, i32) {
    %c0_i32 = arith.constant 0 : i32
    %c0_i32_0 = arith.constant 0 : i32
    %c0_i32_1 = arith.constant 0 : i32
    return %c0_i32, %c0_i32_0 : i32, i32
  }
  func.func @transform_43(%arg0: i32) -> (i32, i32, i32) {
    %c0_i32 = arith.constant 0 : i32
    %c0_i32_0 = arith.constant 0 : i32
    %c0_i32_1 = arith.constant 0 : i32
    %c0_i32_2 = arith.constant 0 : i32
    return %c0_i32, %c0_i32_0, %c0_i32_1 : i32, i32, i32
  }
  func.func @transform_44(%arg0: i32) -> (i32, i32, i32, i32) {
    %c0_i32 = arith.constant 0 : i32
    %c0_i32_0 = arith.constant 0 : i32
    %c0_i32_1 = arith.constant 0 : i32
    %c0_i32_2 = arith.constant 0 : i32
    return %arg0, %c0_i32, %c0_i32_0, %c0_i32_1 : i32, i32, i32, i32
  }
  func.func @transform_45(%arg0: i32) -> (i32, i32, i32) {
    %c0_i32 = arith.constant 0 : i32
    %c0_i32_0 = arith.constant 0 : i32
    %c0_i32_1 = arith.constant 0 : i32
    return %arg0, %c0_i32, %c0_i32_0 : i32, i32, i32
  }
}

</mosaic_0001>

<llo_original>
// kernel: visualbert_rex_forward.1
$region0: #{visualbert_rex_forward.1}
  #allocation0 [shape = 'u32[]', space=smem, size = 0x4, offset = 0x4, fixed_abs, tag = 'smem constant byte address 0x4 - core index']
  #allocation1 [shape = 'u32[72,128]{1,0:T(1,128)}', space=vmem, size = 0x9000, scoped, tag = 'internal scratch']
  #allocation2 [shape = 'f32[1,1]{1,0:T(1,128)S(1)}', space=vmem, size = 0x200, scoped, tag = 'scoped memory for visualbert_rex_forward.1']
  %s0 = inlined_call_operand.smem [shape: u32[46], index: -1, kind: input, shape index: {}]
  %s1 = sld [smem:[%s0]]
  %s2 = scalar_lea.smem %s0, 1
  %s3 = sld [smem:[%s2]]
  %s4 = scalar_lea.smem %s0, 2
  %s5 = sld [smem:[%s4]]
  %s6 = scalar_lea.smem %s0, 3
  %s7 = sld [smem:[%s6]]
  %s8 = scalar_lea.smem %s0, 4
  %s9 = sld [smem:[%s8]]
  %s10 = scalar_lea.smem %s0, 5
  %s11 = sld [smem:[%s10]]
  %s12 = scalar_lea.smem %s0, 6
  %s13 = sld [smem:[%s12]]
  %s14 = scalar_lea.smem %s0, 7
  %s15 = sld [smem:[%s14]]
  %s16 = scalar_lea.smem %s0, 8
  %s17 = sld [smem:[%s16]]
  %s18 = scalar_lea.smem %s0, 9
  %s19 = sld [smem:[%s18]]
  %s20 = scalar_lea.smem %s0, 10
  %s21 = sld [smem:[%s20]]
  %s22 = scalar_lea.smem %s0, 11
  %s23 = sld [smem:[%s22]]
  %s24 = scalar_lea.smem %s0, 12
  %s25 = sld [smem:[%s24]]
  %s26 = scalar_lea.smem %s0, 13
  %s27 = sld [smem:[%s26]]
  %s28 = scalar_lea.smem %s0, 14
  %s29 = sld [smem:[%s28]]
  %s30 = scalar_lea.smem %s0, 15
  %s31 = sld [smem:[%s30]]
  %s32 = scalar_lea.smem %s0, 16
  %s33 = sld [smem:[%s32]]
  %s34 = scalar_lea.smem %s0, 17
  %s35 = sld [smem:[%s34]]
  %s36 = scalar_lea.smem %s0, 18
  %s37 = sld [smem:[%s36]]
  %s38 = scalar_lea.smem %s0, 19
  %s39 = sld [smem:[%s38]]
  %s40 = scalar_lea.smem %s0, 20
  %s41 = sld [smem:[%s40]]
  %s42 = scalar_lea.smem %s0, 21
  %s43 = sld [smem:[%s42]]
  %s44 = scalar_lea.smem %s0, 22
  %s45 = sld [smem:[%s44]]
  %s46 = scalar_lea.smem %s0, 23
  %s47 = sld [smem:[%s46]]
  %s48 = scalar_lea.smem %s0, 24
  %s49 = sld [smem:[%s48]]
  %s50 = scalar_lea.smem %s0, 25
  %s51 = sld [smem:[%s50]]
  %s52 = scalar_lea.smem %s0, 26
  %s53 = sld [smem:[%s52]]
  %s54 = scalar_lea.smem %s0, 27
  %s55 = sld [smem:[%s54]]
  %s56 = scalar_lea.smem %s0, 28
  %s57 = sld [smem:[%s56]]
  %s58 = scalar_lea.smem %s0, 29
  %s59 = sld [smem:[%s58]]
  %s60 = scalar_lea.smem %s0, 30
  %s61 = sld [smem:[%s60]]
  %s62 = scalar_lea.smem %s0, 31
  %s63 = sld [smem:[%s62]]
  %s64 = scalar_lea.smem %s0, 32
  %s65 = sld [smem:[%s64]]
  %s66 = scalar_lea.smem %s0, 33
  %s67 = sld [smem:[%s66]]
  %s68 = scalar_lea.smem %s0, 34
  %s69 = sld [smem:[%s68]]
  %s70 = scalar_lea.smem %s0, 35
  %s71 = sld [smem:[%s70]]
  %s72 = scalar_lea.smem %s0, 36
  %s73 = sld [smem:[%s72]]
  %s74 = scalar_lea.smem %s0, 37
  %s75 = sld [smem:[%s74]]
  %s76 = scalar_lea.smem %s0, 38
  %s77 = sld [smem:[%s76]]
  %s78 = scalar_lea.smem %s0, 39
  %s79 = sld [smem:[%s78]]
  %s80 = scalar_lea.smem %s0, 40
  %s81 = sld [smem:[%s80]]
  %s82 = scalar_lea.smem %s0, 41
  %s83 = sld [smem:[%s82]]
  %s84 = scalar_lea.smem %s0, 42
  %s85 = sld [smem:[%s84]]
  %s86 = scalar_lea.smem %s0, 43
  %s87 = sld [smem:[%s86]]
  %s88 = scalar_lea.smem %s0, 44
  %s89 = sld [smem:[%s88]]
  %s90 = scalar_lea.smem %s0, 45
  %s91 = sld [smem:[%s90]]
  %92 = xla_tuple %s89, %s91
  %s93 = sld [smem:[#allocation0]]
  $region236: #{visualbert_rex_forward.1} parent=0
    _
  %s95 = ssub.s32 1, %s93
  %s96 = scalar_select 0, %s95, %s93
  %v97 = vstv %s53
  %98 = vst [vmem:[#allocation2] sm:$0x1] %v97
  $region1: #{visualbert_rex_forward.1} parent=0
    #allocation3 [shape = 'u8[512]{0}', space=vmem, size = 0x400, scoped, tag = 'input window, operand 38, single buffered']
    #allocation4 [shape = 's32[2]{0}', space=sflag, size = 0x8, scoped, tag = 'scoped memory for visualbert_rex_forward.1']
    #allocation5 [shape = 's32[2]{0}', space=sflag, size = 0x8, scoped, tag = 'scoped memory for visualbert_rex_forward.1']
    #allocation6 [shape = 'u8[512]{0}', space=vmem, size = 0x400, scoped, tag = 'input window, operand 40, single buffered']
    #allocation7 [shape = 's32[1]{0}', space=sflag, size = 0x4, scoped, tag = 'scoped memory for visualbert_rex_forward.1']
    #allocation8 [shape = 'u8[512]{0}', space=vmem, size = 0x400, scoped, tag = 'input window, operand 42, single buffered']
    #allocation9 [shape = 'u8[4096]{0}', space=vmem, size = 0x1000, scoped, tag = 'output window, operand 0']
    #allocation10 [shape = 'u8[1024]{0}', space=vmem, size = 0x400, scoped, tag = 'output window, operand 1']
    #allocation11 [shape = 's32[2]{0}', space=sflag, size = 0x8, scoped, tag = 'scoped memory for visualbert_rex_forward.1']
    %99 = vsyncpa [#allocation4], 0
    %100 = vsyncpa [#allocation7], 0
    %101 = vsyncpa [#allocation5], 0
    %s102 = scalar_lea.sflag [#allocation5], 1
    %103 = vsyncpa %s102, 0
    %104 = vsyncpa [#allocation11], 0
    %s105 = scalar_lea.sflag [#allocation11], 1
    %106 = vsyncpa %s105, 0
    loop: start=0, step=1, limit=4
    $region2: #{visualbert_rex_forward.1} parent=1 // loop_pre_header
      _
    $region3: #{visualbert_rex_forward.1} parent=1 // loop_header
      %s108 = sphi 0, %s112
      %p109 = scmp.ge.s32.totalorder %s108, 4
      %s118 = sphi 0, %s120
      %s121 = sphi 0, %s118
      %s122 = sphi 0, %s121
      %s138 = sphi 0, %s122
      %s144 = sphi 0, %s146
      %s147 = sphi 0, %s144
      %s148 = sphi 0, %s147
      %s164 = sphi 0, %s148
      %s170 = sphi 0, %s172
      %s173 = sphi 0, %s170
      %s174 = sphi 0, %s173
      %s190 = sphi 0, %s174
      %s194 = sphi 0, %s194
      %s196 = sphi 0, %s194
      %s197 = sphi 0, %s196
      %s211 = sphi 0, %s197
      %s215 = sphi 0, %s215
      %s217 = sphi 0, %s215
      %s218 = sphi 0, %s217
      %s232 = sphi 0, %s218
      %s236 = sphi 0, %s236
      %s238 = sphi 0, %s236
      %s239 = sphi 0, %s238
      %s253 = sphi 0, %s239
      %s257 = sphi 0, %s257
      %s259 = sphi 0, %s257
      %s260 = sphi 0, %s259
      %s274 = sphi 0, %s260
      %s278 = sphi 0, %s278
      %s280 = sphi 0, %s278
      %s281 = sphi 0, %s280
      %s295 = sphi 0, %s281
      %s299 = sphi 0, %s299
      %s301 = sphi 0, %s299
      %s302 = sphi 0, %s301
      %s316 = sphi 0, %s302
      %s320 = sphi 0, %s320
      %s322 = sphi 0, %s320
      %s323 = sphi 0, %s322
      %s337 = sphi 0, %s323
      %s341 = sphi 0, %s341
      %s343 = sphi 0, %s341
      %s344 = sphi 0, %s343
      %s358 = sphi 0, %s344
      %s362 = sphi 0, %s362
      %s364 = sphi 0, %s362
      %s365 = sphi 0, %s364
      %s379 = sphi 0, %s365
      %s383 = sphi 0, %s383
      %s385 = sphi 0, %s383
      %s386 = sphi 0, %s385
      %s400 = sphi 0, %s386
      %s404 = sphi 0, %s404
      %s406 = sphi 0, %s404
      %s407 = sphi 0, %s406
      %s421 = sphi 0, %s407
      %s425 = sphi 0, %s425
      %s427 = sphi 0, %s425
      %s428 = sphi 0, %s427
      %s442 = sphi 0, %s428
      %s446 = sphi 0, %s446
      %s448 = sphi 0, %s446
      %s449 = sphi 0, %s448
      %s463 = sphi 0, %s449
      %s467 = sphi 0, %s467
      %s469 = sphi 0, %s467
      %s470 = sphi 0, %s469
      %s484 = sphi 0, %s470
      %s488 = sphi 0, %s488
      %s490 = sphi 0, %s488
      %s491 = sphi 0, %s490
      %s505 = sphi 0, %s491
      %s509 = sphi 0, %s509
      %s511 = sphi 0, %s509
      %s512 = sphi 0, %s511
      %s526 = sphi 0, %s512
      %s530 = sphi 0, %s530
      %s532 = sphi 0, %s530
      %s533 = sphi 0, %s532
      %s547 = sphi 0, %s533
      %s551 = sphi 0, %s551
      %s553 = sphi 0, %s551
      %s554 = sphi 0, %s553
      %s568 = sphi 0, %s554
      %s572 = sphi 0, %s572
      %s574 = sphi 0, %s572
      %s575 = sphi 0, %s574
      %s589 = sphi 0, %s575
      %s593 = sphi 0, %s593
      %s595 = sphi 0, %s593
      %s596 = sphi 0, %s595
      %s610 = sphi 0, %s596
      %s614 = sphi 0, %s614
      %s616 = sphi 0, %s614
      %s617 = sphi 0, %s616
      %s631 = sphi 0, %s617
      %s635 = sphi 0, %s635
      %s637 = sphi 0, %s635
      %s638 = sphi 0, %s637
      %s652 = sphi 0, %s638
      %s656 = sphi 0, %s656
      %s658 = sphi 0, %s656
      %s659 = sphi 0, %s658
      %s673 = sphi 0, %s659
      %s677 = sphi 0, %s677
      %s679 = sphi 0, %s677
      %s680 = sphi 0, %s679
      %s694 = sphi 0, %s680
      %s698 = sphi 0, %s698
      %s700 = sphi 0, %s698
      %s701 = sphi 0, %s700
      %s715 = sphi 0, %s701
      %s719 = sphi 0, %s719
      %s721 = sphi 0, %s719
      %s722 = sphi 0, %s721
      %s736 = sphi 0, %s722
      %s740 = sphi 0, %s740
      %s742 = sphi 0, %s740
      %s743 = sphi 0, %s742
      %s757 = sphi 0, %s743
      %s761 = sphi 0, %s761
      %s763 = sphi 0, %s761
      %s764 = sphi 0, %s763
      %s778 = sphi 0, %s764
      %s782 = sphi 0, %s782
      %s784 = sphi 0, %s782
      %s785 = sphi 0, %s784
      %s799 = sphi 0, %s785
      %s803 = sphi 0, %s803
      %s805 = sphi 0, %s803
      %s806 = sphi 0, %s805
      %s820 = sphi 0, %s806
      %s824 = sphi 0, %s824
      %s826 = sphi 0, %s824
      %s827 = sphi 0, %s826
      %s841 = sphi 0, %s827
      %s845 = sphi 0, %s845
      %s847 = sphi 0, %s845
      %s848 = sphi 0, %s847
      %s862 = sphi 0, %s848
      %s866 = sphi 0, %s866
      %s868 = sphi 0, %s866
      %s869 = sphi 0, %s868
      %s883 = sphi 0, %s869
      %s887 = sphi 0, %s887
      %s889 = sphi 0, %s887
      %s890 = sphi 0, %s889
      %s904 = sphi 0, %s890
      %s908 = sphi 0, %s908
      %s910 = sphi 0, %s908
      %s911 = sphi 0, %s910
      %s925 = sphi 0, %s911
      %s929 = sphi 0, %s929
      %s931 = sphi 0, %s929
      %s932 = sphi 0, %s931
      %s946 = sphi 0, %s932
      %s950 = sphi 0, %s950
      %s952 = sphi 0, %s950
      %s953 = sphi 0, %s952
      %s967 = sphi 0, %s953
      %s971 = sphi 0, %s971
      %s973 = sphi 0, %s971
      %s974 = sphi 0, %s973
      %s988 = sphi 0, %s974
      %s992 = sphi 0, %s992
      %s994 = sphi 0, %s992
      %s995 = sphi 0, %s994
      %s1009 = sphi 0, %s995
      %s1013 = sphi 0, %s1013
      %s1015 = sphi 0, %s1013
      %s1016 = sphi 0, %s1015
      %s1030 = sphi 0, %s1016
      %s1034 = sphi 0, %s1034
      %s1036 = sphi 0, %s1034
      %s1037 = sphi 0, %s1036
      %s1051 = sphi 0, %s1037
      %s1057 = sphi 0, %s1059
      %s1060 = sphi 0, %s1057
      %s1061 = sphi 0, %s1060
      %s1077 = sphi 0, %s1061
      %s1083 = sphi 0, %s1085
      %s1086 = sphi 0, %s1083
      %s1087 = sphi 0, %s1086
      %s1103 = sphi 0, %s1087
    $region4: #{visualbert_rex_forward.1} parent=1 // loop_header_branch
      %111 = sbr.rel (%p109) target = $region8
    $region5: #{visualbert_rex_forward.1} parent=1 // loop_body
      %s113 = ssub.s32 %s108, 1
      %s114 = ssub.s32 %s108, 2
      %s115 = sadd.s32 %s108, 1
      %s116 = ssub.s32 %s108, %s115
      %p117 = scmp.eq.s32.totalorder %s116, 0
      %s119 = sadd.s32 %s118, 1
      %s120 = scalar_select %p117, %s118, %s119
      %p123 = pneg %p117
      %p124 = scmp.eq.s32.totalorder %s108, 1
      %p125 = por %p123, %p124
      %p126 = scmp.ne.s32.totalorder %s118, %s121
      %p127 = scmp.eq.s32.totalorder %s108, 0
      %p128 = por %p126, %p127
      %p129 = scmp.ne.s32.totalorder %s118, %s121
      %p130 = scmp.eq.s32.totalorder %s113, 1
      %p131 = por %p129, %p130
      %p132 = scmp.ne.s32.totalorder %s121, %s122
      %p133 = scmp.eq.s32.totalorder %s113, 0
      %p134 = por %p132, %p133
      %p135 = scmp.ne.s32.totalorder %s121, %s122
      %p136 = scmp.eq.s32.totalorder %s114, 1
      %p137 = por %p135, %p136
      %p139 = scmp.ne.s32.totalorder %s122, %s138
      %p140 = scmp.eq.s32.totalorder %s114, 0
      %p141 = por %p139, %p140
      %s142 = ssub.s32 %s108, %s115
      %p143 = scmp.eq.s32.totalorder %s142, 0
      %s145 = sadd.s32 %s144, 1
      %s146 = scalar_select %p143, %s144, %s145
      %p149 = pneg %p143
      %p150 = scmp.eq.s32.totalorder %s108, 1
      %p151 = por %p149, %p150
      %p152 = scmp.ne.s32.totalorder %s144, %s147
      %p153 = scmp.eq.s32.totalorder %s108, 0
      %p154 = por %p152, %p153
      %p155 = scmp.ne.s32.totalorder %s144, %s147
      %p156 = scmp.eq.s32.totalorder %s113, 1
      %p157 = por %p155, %p156
      %p158 = scmp.ne.s32.totalorder %s147, %s148
      %p159 = scmp.eq.s32.totalorder %s113, 0
      %p160 = por %p158, %p159
      %p161 = scmp.ne.s32.totalorder %s147, %s148
      %p162 = scmp.eq.s32.totalorder %s114, 1
      %p163 = por %p161, %p162
      %p165 = scmp.ne.s32.totalorder %s148, %s164
      %p166 = scmp.eq.s32.totalorder %s114, 0
      %p167 = por %p165, %p166
      %s168 = ssub.s32 %s108, %s115
      %p169 = scmp.eq.s32.totalorder %s168, 0
      %s171 = sadd.s32 %s170, 1
      %s172 = scalar_select %p169, %s170, %s171
      %p175 = pneg %p169
      %p176 = scmp.eq.s32.totalorder %s108, 1
      %p177 = por %p175, %p176
      %p178 = scmp.ne.s32.totalorder %s170, %s173
      %p179 = scmp.eq.s32.totalorder %s108, 0
      %p180 = por %p178, %p179
      %p181 = scmp.ne.s32.totalorder %s170, %s173
      %p182 = scmp.eq.s32.totalorder %s113, 1
      %p183 = por %p181, %p182
      %p184 = scmp.ne.s32.totalorder %s173, %s174
      %p185 = scmp.eq.s32.totalorder %s113, 0
      %p186 = por %p184, %p185
      %p187 = scmp.ne.s32.totalorder %s173, %s174
      %p188 = scmp.eq.s32.totalorder %s114, 1
      %p189 = por %p187, %p188
      %p191 = scmp.ne.s32.totalorder %s174, %s190
      %p192 = scmp.eq.s32.totalorder %s114, 0
      %p193 = por %p191, %p192
      %s195 = sadd.s32 %s194, 1
      %p198 = scmp.eq.s32.totalorder %s108, 1
      %p199 = scmp.ne.s32.totalorder %s194, %s196
      %p200 = scmp.eq.s32.totalorder %s108, 0
      %p201 = por %p199, %p200
      %p202 = scmp.ne.s32.totalorder %s194, %s196
      %p203 = scmp.eq.s32.totalorder %s113, 1
      %p204 = por %p202, %p203
      %p205 = scmp.ne.s32.totalorder %s196, %s197
      %p206 = scmp.eq.s32.totalorder %s113, 0
      %p207 = por %p205, %p206
      %p208 = scmp.ne.s32.totalorder %s196, %s197
      %p209 = scmp.eq.s32.totalorder %s114, 1
      %p210 = por %p208, %p209
      %p212 = scmp.ne.s32.totalorder %s197, %s211
      %p213 = scmp.eq.s32.totalorder %s114, 0
      %p214 = por %p212, %p213
      %s216 = sadd.s32 %s215, 1
      %p219 = scmp.eq.s32.totalorder %s108, 1
      %p220 = scmp.ne.s32.totalorder %s215, %s217
      %p221 = scmp.eq.s32.totalorder %s108, 0
      %p222 = por %p220, %p221
      %p223 = scmp.ne.s32.totalorder %s215, %s217
      %p224 = scmp.eq.s32.totalorder %s113, 1
      %p225 = por %p223, %p224
      %p226 = scmp.ne.s32.totalorder %s217, %s218
      %p227 = scmp.eq.s32.totalorder %s113, 0
      %p228 = por %p226, %p227
      %p229 = scmp.ne.s32.totalorder %s217, %s218
      %p230 = scmp.eq.s32.totalorder %s114, 1
      %p231 = por %p229, %p230
      %p233 = scmp.ne.s32.totalorder %s218, %s232
      %p234 = scmp.eq.s32.totalorder %s114, 0
      %p235 = por %p233, %p234
      %s237 = sadd.s32 %s236, 1
      %p240 = scmp.eq.s32.totalorder %s108, 1
      %p241 = scmp.ne.s32.totalorder %s236, %s238
      %p242 = scmp.eq.s32.totalorder %s108, 0
      %p243 = por %p241, %p242
      %p244 = scmp.ne.s32.totalorder %s236, %s238
      %p245 = scmp.eq.s32.totalorder %s113, 1
      %p246 = por %p244, %p245
      %p247 = scmp.ne.s32.totalorder %s238, %s239
      %p248 = scmp.eq.s32.totalorder %s113, 0
      %p249 = por %p247, %p248
      %p250 = scmp.ne.s32.totalorder %s238, %s239
      %p251 = scmp.eq.s32.totalorder %s114, 1
      %p252 = por %p250, %p251
      %p254 = scmp.ne.s32.totalorder %s239, %s253
      %p255 = scmp.eq.s32.totalorder %s114, 0
      %p256 = por %p254, %p255
      %s258 = sadd.s32 %s257, 1
      %p261 = scmp.eq.s32.totalorder %s108, 1
      %p262 = scmp.ne.s32.totalorder %s257, %s259
      %p263 = scmp.eq.s32.totalorder %s108, 0
      %p264 = por %p262, %p263
      %p265 = scmp.ne.s32.totalorder %s257, %s259
      %p266 = scmp.eq.s32.totalorder %s113, 1
      %p267 = por %p265, %p266
      %p268 = scmp.ne.s32.totalorder %s259, %s260
      %p269 = scmp.eq.s32.totalorder %s113, 0
      %p270 = por %p268, %p269
      %p271 = scmp.ne.s32.totalorder %s259, %s260
      %p272 = scmp.eq.s32.totalorder %s114, 1
      %p273 = por %p271, %p272
      %p275 = scmp.ne.s32.totalorder %s260, %s274
      %p276 = scmp.eq.s32.totalorder %s114, 0
      %p277 = por %p275, %p276
      %s279 = sadd.s32 %s278, 1
      %p282 = scmp.eq.s32.totalorder %s108, 1
      %p283 = scmp.ne.s32.totalorder %s278, %s280
      %p284 = scmp.eq.s32.totalorder %s108, 0
      %p285 = por %p283, %p284
      %p286 = scmp.ne.s32.totalorder %s278, %s280
      %p287 = scmp.eq.s32.totalorder %s113, 1
      %p288 = por %p286, %p287
      %p289 = scmp.ne.s32.totalorder %s280, %s281
      %p290 = scmp.eq.s32.totalorder %s113, 0
      %p291 = por %p289, %p290
      %p292 = scmp.ne.s32.totalorder %s280, %s281
      %p293 = scmp.eq.s32.totalorder %s114, 1
      %p294 = por %p292, %p293
      %p296 = scmp.ne.s32.totalorder %s281, %s295
      %p297 = scmp.eq.s32.totalorder %s114, 0
      %p298 = por %p296, %p297
      %s300 = sadd.s32 %s299, 1
      %p303 = scmp.eq.s32.totalorder %s108, 1
      %p304 = scmp.ne.s32.totalorder %s299, %s301
      %p305 = scmp.eq.s32.totalorder %s108, 0
      %p306 = por %p304, %p305
      %p307 = scmp.ne.s32.totalorder %s299, %s301
      %p308 = scmp.eq.s32.totalorder %s113, 1
      %p309 = por %p307, %p308
      %p310 = scmp.ne.s32.totalorder %s301, %s302
      %p311 = scmp.eq.s32.totalorder %s113, 0
      %p312 = por %p310, %p311
      %p313 = scmp.ne.s32.totalorder %s301, %s302
      %p314 = scmp.eq.s32.totalorder %s114, 1
      %p315 = por %p313, %p314
      %p317 = scmp.ne.s32.totalorder %s302, %s316
      %p318 = scmp.eq.s32.totalorder %s114, 0
      %p319 = por %p317, %p318
      %s321 = sadd.s32 %s320, 1
      %p324 = scmp.eq.s32.totalorder %s108, 1
      %p325 = scmp.ne.s32.totalorder %s320, %s322
      %p326 = scmp.eq.s32.totalorder %s108, 0
      %p327 = por %p325, %p326
      %p328 = scmp.ne.s32.totalorder %s320, %s322
      %p329 = scmp.eq.s32.totalorder %s113, 1
      %p330 = por %p328, %p329
      %p331 = scmp.ne.s32.totalorder %s322, %s323
      %p332 = scmp.eq.s32.totalorder %s113, 0
      %p333 = por %p331, %p332
      %p334 = scmp.ne.s32.totalorder %s322, %s323
      %p335 = scmp.eq.s32.totalorder %s114, 1
      %p336 = por %p334, %p335
      %p338 = scmp.ne.s32.totalorder %s323, %s337
      %p339 = scmp.eq.s32.totalorder %s114, 0
      %p340 = por %p338, %p339
      %s342 = sadd.s32 %s341, 1
      %p345 = scmp.eq.s32.totalorder %s108, 1
      %p346 = scmp.ne.s32.totalorder %s341, %s343
      %p347 = scmp.eq.s32.totalorder %s108, 0
      %p348 = por %p346, %p347
      %p349 = scmp.ne.s32.totalorder %s341, %s343
      %p350 = scmp.eq.s32.totalorder %s113, 1
      %p351 = por %p349, %p350
      %p352 = scmp.ne.s32.totalorder %s343, %s344
      %p353 = scmp.eq.s32.totalorder %s113, 0
      %p354 = por %p352, %p353
      %p355 = scmp.ne.s32.totalorder %s343, %s344
      %p356 = scmp.eq.s32.totalorder %s114, 1
      %p357 = por %p355, %p356
      %p359 = scmp.ne.s32.totalorder %s344, %s358
      %p360 = scmp.eq.s32.totalorder %s114, 0
      %p361 = por %p359, %p360
      %s363 = sadd.s32 %s362, 1
      %p366 = scmp.eq.s32.totalorder %s108, 1
      %p367 = scmp.ne.s32.totalorder %s362, %s364
      %p368 = scmp.eq.s32.totalorder %s108, 0
      %p369 = por %p367, %p368
      %p370 = scmp.ne.s32.totalorder %s362, %s364
      %p371 = scmp.eq.s32.totalorder %s113, 1
      %p372 = por %p370, %p371
      %p373 = scmp.ne.s32.totalorder %s364, %s365
      %p374 = scmp.eq.s32.totalorder %s113, 0
      %p375 = por %p373, %p374
      %p376 = scmp.ne.s32.totalorder %s364, %s365
      %p377 = scmp.eq.s32.totalorder %s114, 1
      %p378 = por %p376, %p377
      %p380 = scmp.ne.s32.totalorder %s365, %s379
      %p381 = scmp.eq.s32.totalorder %s114, 0
      %p382 = por %p380, %p381
      %s384 = sadd.s32 %s383, 1
      %p387 = scmp.eq.s32.totalorder %s108, 1
      %p388 = scmp.ne.s32.totalorder %s383, %s385
      %p389 = scmp.eq.s32.totalorder %s108, 0
      %p390 = por %p388, %p389
      %p391 = scmp.ne.s32.totalorder %s383, %s385
      %p392 = scmp.eq.s32.totalorder %s113, 1
      %p393 = por %p391, %p392
      %p394 = scmp.ne.s32.totalorder %s385, %s386
      %p395 = scmp.eq.s32.totalorder %s113, 0
      %p396 = por %p394, %p395
      %p397 = scmp.ne.s32.totalorder %s385, %s386
      %p398 = scmp.eq.s32.totalorder %s114, 1
      %p399 = por %p397, %p398
      %p401 = scmp.ne.s32.totalorder %s386, %s400
      %p402 = scmp.eq.s32.totalorder %s114, 0
      %p403 = por %p401, %p402
      %s405 = sadd.s32 %s404, 1
      %p408 = scmp.eq.s32.totalorder %s108, 1
      %p409 = scmp.ne.s32.totalorder %s404, %s406
      %p410 = scmp.eq.s32.totalorder %s108, 0
      %p411 = por %p409, %p410
      %p412 = scmp.ne.s32.totalorder %s404, %s406
      %p413 = scmp.eq.s32.totalorder %s113, 1
      %p414 = por %p412, %p413
      %p415 = scmp.ne.s32.totalorder %s406, %s407
      %p416 = scmp.eq.s32.totalorder %s113, 0
      %p417 = por %p415, %p416
      %p418 = scmp.ne.s32.totalorder %s406, %s407
      %p419 = scmp.eq.s32.totalorder %s114, 1
      %p420 = por %p418, %p419
      %p422 = scmp.ne.s32.totalorder %s407, %s421
      %p423 = scmp.eq.s32.totalorder %s114, 0
      %p424 = por %p422, %p423
      %s426 = sadd.s32 %s425, 1
      %p429 = scmp.eq.s32.totalorder %s108, 1
      %p430 = scmp.ne.s32.totalorder %s425, %s427
      %p431 = scmp.eq.s32.totalorder %s108, 0
      %p432 = por %p430, %p431
      %p433 = scmp.ne.s32.totalorder %s425, %s427
      %p434 = scmp.eq.s32.totalorder %s113, 1
      %p435 = por %p433, %p434
      %p436 = scmp.ne.s32.totalorder %s427, %s428
      %p437 = scmp.eq.s32.totalorder %s113, 0
      %p438 = por %p436, %p437
      %p439 = scmp.ne.s32.totalorder %s427, %s428
      %p440 = scmp.eq.s32.totalorder %s114, 1
      %p441 = por %p439, %p440
      %p443 = scmp.ne.s32.totalorder %s428, %s442
      %p444 = scmp.eq.s32.totalorder %s114, 0
      %p445 = por %p443, %p444
      %s447 = sadd.s32 %s446, 1
      %p450 = scmp.eq.s32.totalorder %s108, 1
      %p451 = scmp.ne.s32.totalorder %s446, %s448
      %p452 = scmp.eq.s32.totalorder %s108, 0
      %p453 = por %p451, %p452
      %p454 = scmp.ne.s32.totalorder %s446, %s448
      %p455 = scmp.eq.s32.totalorder %s113, 1
      %p456 = por %p454, %p455
      %p457 = scmp.ne.s32.totalorder %s448, %s449
      %p458 = scmp.eq.s32.totalorder %s113, 0
      %p459 = por %p457, %p458
      %p460 = scmp.ne.s32.totalorder %s448, %s449
      %p461 = scmp.eq.s32.totalorder %s114, 1
      %p462 = por %p460, %p461
      %p464 = scmp.ne.s32.totalorder %s449, %s463
      %p465 = scmp.eq.s32.totalorder %s114, 0
      %p466 = por %p464, %p465
      %s468 = sadd.s32 %s467, 1
      %p471 = scmp.eq.s32.totalorder %s108, 1
      %p472 = scmp.ne.s32.totalorder %s467, %s469
      %p473 = scmp.eq.s32.totalorder %s108, 0
      %p474 = por %p472, %p473
      %p475 = scmp.ne.s32.totalorder %s467, %s469
      %p476 = scmp.eq.s32.totalorder %s113, 1
      %p477 = por %p475, %p476
      %p478 = scmp.ne.s32.totalorder %s469, %s470
      %p479 = scmp.eq.s32.totalorder %s113, 0
      %p480 = por %p478, %p479
      %p481 = scmp.ne.s32.totalorder %s469, %s470
      %p482 = scmp.eq.s32.totalorder %s114, 1
      %p483 = por %p481, %p482
      %p485 = scmp.ne.s32.totalorder %s470, %s484
      %p486 = scmp.eq.s32.totalorder %s114, 0
      %p487 = por %p485, %p486
      %s489 = sadd.s32 %s488, 1
      %p492 = scmp.eq.s32.totalorder %s108, 1
      %p493 = scmp.ne.s32.totalorder %s488, %s490
      %p494 = scmp.eq.s32.totalorder %s108, 0
      %p495 = por %p493, %p494
      %p496 = scmp.ne.s32.totalorder %s488, %s490
      %p497 = scmp.eq.s32.totalorder %s113, 1
      %p498 = por %p496, %p497
      %p499 = scmp.ne.s32.totalorder %s490, %s491
      %p500 = scmp.eq.s32.totalorder %s113, 0
      %p501 = por %p499, %p500
      %p502 = scmp.ne.s32.totalorder %s490, %s491
      %p503 = scmp.eq.s32.totalorder %s114, 1
      %p504 = por %p502, %p503
      %p506 = scmp.ne.s32.totalorder %s491, %s505
      %p507 = scmp.eq.s32.totalorder %s114, 0
      %p508 = por %p506, %p507
      %s510 = sadd.s32 %s509, 1
      %p513 = scmp.eq.s32.totalorder %s108, 1
      %p514 = scmp.ne.s32.totalorder %s509, %s511
      %p515 = scmp.eq.s32.totalorder %s108, 0
      %p516 = por %p514, %p515
      %p517 = scmp.ne.s32.totalorder %s509, %s511
      %p518 = scmp.eq.s32.totalorder %s113, 1
      %p519 = por %p517, %p518
      %p520 = scmp.ne.s32.totalorder %s511, %s512
      %p521 = scmp.eq.s32.totalorder %s113, 0
      %p522 = por %p520, %p521
      %p523 = scmp.ne.s32.totalorder %s511, %s512
      %p524 = scmp.eq.s32.totalorder %s114, 1
      %p525 = por %p523, %p524
      %p527 = scmp.ne.s32.totalorder %s512, %s526
      %p528 = scmp.eq.s32.totalorder %s114, 0
      %p529 = por %p527, %p528
      %s531 = sadd.s32 %s530, 1
      %p534 = scmp.eq.s32.totalorder %s108, 1
      %p535 = scmp.ne.s32.totalorder %s530, %s532
      %p536 = scmp.eq.s32.totalorder %s108, 0
      %p537 = por %p535, %p536
      %p538 = scmp.ne.s32.totalorder %s530, %s532
      %p539 = scmp.eq.s32.totalorder %s113, 1
      %p540 = por %p538, %p539
      %p541 = scmp.ne.s32.totalorder %s532, %s533
      %p542 = scmp.eq.s32.totalorder %s113, 0
      %p543 = por %p541, %p542
      %p544 = scmp.ne.s32.totalorder %s532, %s533
      %p545 = scmp.eq.s32.totalorder %s114, 1
      %p546 = por %p544, %p545
      %p548 = scmp.ne.s32.totalorder %s533, %s547
      %p549 = scmp.eq.s32.totalorder %s114, 0
      %p550 = por %p548, %p549
      %s552 = sadd.s32 %s551, 1
      %p555 = scmp.eq.s32.totalorder %s108, 1
      %p556 = scmp.ne.s32.totalorder %s551, %s553
      %p557 = scmp.eq.s32.totalorder %s108, 0
      %p558 = por %p556, %p557
      %p559 = scmp.ne.s32.totalorder %s551, %s553
      %p560 = scmp.eq.s32.totalorder %s113, 1
      %p561 = por %p559, %p560
      %p562 = scmp.ne.s32.totalorder %s553, %s554
      %p563 = scmp.eq.s32.totalorder %s113, 0
      %p564 = por %p562, %p563
      %p565 = scmp.ne.s32.totalorder %s553, %s554
      %p566 = scmp.eq.s32.totalorder %s114, 1
      %p567 = por %p565, %p566
      %p569 = scmp.ne.s32.totalorder %s554, %s568
      %p570 = scmp.eq.s32.totalorder %s114, 0
      %p571 = por %p569, %p570
      %s573 = sadd.s32 %s572, 1
      %p576 = scmp.eq.s32.totalorder %s108, 1
      %p577 = scmp.ne.s32.totalorder %s572, %s574
      %p578 = scmp.eq.s32.totalorder %s108, 0
      %p579 = por %p577, %p578
      %p580 = scmp.ne.s32.totalorder %s572, %s574
      %p581 = scmp.eq.s32.totalorder %s113, 1
      %p582 = por %p580, %p581
      %p583 = scmp.ne.s32.totalorder %s574, %s575
      %p584 = scmp.eq.s32.totalorder %s113, 0
      %p585 = por %p583, %p584
      %p586 = scmp.ne.s32.totalorder %s574, %s575
      %p587 = scmp.eq.s32.totalorder %s114, 1
      %p588 = por %p586, %p587
      %p590 = scmp.ne.s32.totalorder %s575, %s589
      %p591 = scmp.eq.s32.totalorder %s114, 0
      %p592 = por %p590, %p591
      %s594 = sadd.s32 %s593, 1
      %p597 = scmp.eq.s32.totalorder %s108, 1
      %p598 = scmp.ne.s32.totalorder %s593, %s595
      %p599 = scmp.eq.s32.totalorder %s108, 0
      %p600 = por %p598, %p599
      %p601 = scmp.ne.s32.totalorder %s593, %s595
      %p602 = scmp.eq.s32.totalorder %s113, 1
      %p603 = por %p601, %p602
      %p604 = scmp.ne.s32.totalorder %s595, %s596
      %p605 = scmp.eq.s32.totalorder %s113, 0
      %p606 = por %p604, %p605
      %p607 = scmp.ne.s32.totalorder %s595, %s596
      %p608 = scmp.eq.s32.totalorder %s114, 1
      %p609 = por %p607, %p608
      %p611 = scmp.ne.s32.totalorder %s596, %s610
      %p612 = scmp.eq.s32.totalorder %s114, 0
      %p613 = por %p611, %p612
      %s615 = sadd.s32 %s614, 1
      %p618 = scmp.eq.s32.totalorder %s108, 1
      %p619 = scmp.ne.s32.totalorder %s614, %s616
      %p620 = scmp.eq.s32.totalorder %s108, 0
      %p621 = por %p619, %p620
      %p622 = scmp.ne.s32.totalorder %s614, %s616
      %p623 = scmp.eq.s32.totalorder %s113, 1
      %p624 = por %p622, %p623
      %p625 = scmp.ne.s32.totalorder %s616, %s617
      %p626 = scmp.eq.s32.totalorder %s113, 0
      %p627 = por %p625, %p626
      %p628 = scmp.ne.s32.totalorder %s616, %s617
      %p629 = scmp.eq.s32.totalorder %s114, 1
      %p630 = por %p628, %p629
      %p632 = scmp.ne.s32.totalorder %s617, %s631
      %p633 = scmp.eq.s32.totalorder %s114, 0
      %p634 = por %p632, %p633
      %s636 = sadd.s32 %s635, 1
      %p639 = scmp.eq.s32.totalorder %s108, 1
      %p640 = scmp.ne.s32.totalorder %s635, %s637
      %p641 = scmp.eq.s32.totalorder %s108, 0
      %p642 = por %p640, %p641
      %p643 = scmp.ne.s32.totalorder %s635, %s637
      %p644 = scmp.eq.s32.totalorder %s113, 1
      %p645 = por %p643, %p644
      %p646 = scmp.ne.s32.totalorder %s637, %s638
      %p647 = scmp.eq.s32.totalorder %s113, 0
      %p648 = por %p646, %p647
      %p649 = scmp.ne.s32.totalorder %s637, %s638
      %p650 = scmp.eq.s32.totalorder %s114, 1
      %p651 = por %p649, %p650
      %p653 = scmp.ne.s32.totalorder %s638, %s652
      %p654 = scmp.eq.s32.totalorder %s114, 0
      %p655 = por %p653, %p654
      %s657 = sadd.s32 %s656, 1
      %p660 = scmp.eq.s32.totalorder %s108, 1
      %p661 = scmp.ne.s32.totalorder %s656, %s658
      %p662 = scmp.eq.s32.totalorder %s108, 0
      %p663 = por %p661, %p662
      %p664 = scmp.ne.s32.totalorder %s656, %s658
      %p665 = scmp.eq.s32.totalorder %s113, 1
      %p666 = por %p664, %p665
      %p667 = scmp.ne.s32.totalorder %s658, %s659
      %p668 = scmp.eq.s32.totalorder %s113, 0
      %p669 = por %p667, %p668
      %p670 = scmp.ne.s32.totalorder %s658, %s659
      %p671 = scmp.eq.s32.totalorder %s114, 1
      %p672 = por %p670, %p671
      %p674 = scmp.ne.s32.totalorder %s659, %s673
      %p675 = scmp.eq.s32.totalorder %s114, 0
      %p676 = por %p674, %p675
      %s678 = sadd.s32 %s677, 1
      %p681 = scmp.eq.s32.totalorder %s108, 1
      %p682 = scmp.ne.s32.totalorder %s677, %s679
      %p683 = scmp.eq.s32.totalorder %s108, 0
      %p684 = por %p682, %p683
      %p685 = scmp.ne.s32.totalorder %s677, %s679
      %p686 = scmp.eq.s32.totalorder %s113, 1
      %p687 = por %p685, %p686
      %p688 = scmp.ne.s32.totalorder %s679, %s680
      %p689 = scmp.eq.s32.totalorder %s113, 0
      %p690 = por %p688, %p689
      %p691 = scmp.ne.s32.totalorder %s679, %s680
      %p692 = scmp.eq.s32.totalorder %s114, 1
      %p693 = por %p691, %p692
      %p695 = scmp.ne.s32.totalorder %s680, %s694
      %p696 = scmp.eq.s32.totalorder %s114, 0
      %p697 = por %p695, %p696
      %s699 = sadd.s32 %s698, 1
      %p702 = scmp.eq.s32.totalorder %s108, 1
      %p703 = scmp.ne.s32.totalorder %s698, %s700
      %p704 = scmp.eq.s32.totalorder %s108, 0
      %p705 = por %p703, %p704
      %p706 = scmp.ne.s32.totalorder %s698, %s700
      %p707 = scmp.eq.s32.totalorder %s113, 1
      %p708 = por %p706, %p707
      %p709 = scmp.ne.s32.totalorder %s700, %s701
      %p710 = scmp.eq.s32.totalorder %s113, 0
      %p711 = por %p709, %p710
      %p712 = scmp.ne.s32.totalorder %s700, %s701
      %p713 = scmp.eq.s32.totalorder %s114, 1
      %p714 = por %p712, %p713
      %p716 = scmp.ne.s32.totalorder %s701, %s715
      %p717 = scmp.eq.s32.totalorder %s114, 0
      %p718 = por %p716, %p717
      %s720 = sadd.s32 %s719, 1
      %p723 = scmp.eq.s32.totalorder %s108, 1
      %p724 = scmp.ne.s32.totalorder %s719, %s721
      %p725 = scmp.eq.s32.totalorder %s108, 0
      %p726 = por %p724, %p725
      %p727 = scmp.ne.s32.totalorder %s719, %s721
      %p728 = scmp.eq.s32.totalorder %s113, 1
      %p729 = por %p727, %p728
      %p730 = scmp.ne.s32.totalorder %s721, %s722
      %p731 = scmp.eq.s32.totalorder %s113, 0
      %p732 = por %p730, %p731
      %p733 = scmp.ne.s32.totalorder %s721, %s722
      %p734 = scmp.eq.s32.totalorder %s114, 1
      %p735 = por %p733, %p734
      %p737 = scmp.ne.s32.totalorder %s722, %s736
      %p738 = scmp.eq.s32.totalorder %s114, 0
      %p739 = por %p737, %p738
      %s741 = sadd.s32 %s740, 1
      %p744 = scmp.eq.s32.totalorder %s108, 1
      %p745 = scmp.ne.s32.totalorder %s740, %s742
      %p746 = scmp.eq.s32.totalorder %s108, 0
      %p747 = por %p745, %p746
      %p748 = scmp.ne.s32.totalorder %s740, %s742
      %p749 = scmp.eq.s32.totalorder %s113, 1
      %p750 = por %p748, %p749
      %p751 = scmp.ne.s32.totalorder %s742, %s743
      %p752 = scmp.eq.s32.totalorder %s113, 0
      %p753 = por %p751, %p752
      %p754 = scmp.ne.s32.totalorder %s742, %s743
      %p755 = scmp.eq.s32.totalorder %s114, 1
      %p756 = por %p754, %p755
      %p758 = scmp.ne.s32.totalorder %s743, %s757
      %p759 = scmp.eq.s32.totalorder %s114, 0
      %p760 = por %p758, %p759
      %s762 = sadd.s32 %s761, 1
      %p765 = scmp.eq.s32.totalorder %s108, 1
      %p766 = scmp.ne.s32.totalorder %s761, %s763
      %p767 = scmp.eq.s32.totalorder %s108, 0
      %p768 = por %p766, %p767
      %p769 = scmp.ne.s32.totalorder %s761, %s763
      %p770 = scmp.eq.s32.totalorder %s113, 1
      %p771 = por %p769, %p770
      %p772 = scmp.ne.s32.totalorder %s763, %s764
      %p773 = scmp.eq.s32.totalorder %s113, 0
      %p774 = por %p772, %p773
      %p775 = scmp.ne.s32.totalorder %s763, %s764
      %p776 = scmp.eq.s32.totalorder %s114, 1
      %p777 = por %p775, %p776
      %p779 = scmp.ne.s32.totalorder %s764, %s778
      %p780 = scmp.eq.s32.totalorder %s114, 0
      %p781 = por %p779, %p780
      %s783 = sadd.s32 %s782, 1
      %p786 = scmp.eq.s32.totalorder %s108, 1
      %p787 = scmp.ne.s32.totalorder %s782, %s784
      %p788 = scmp.eq.s32.totalorder %s108, 0
      %p789 = por %p787, %p788
      %p790 = scmp.ne.s32.totalorder %s782, %s784
      %p791 = scmp.eq.s32.totalorder %s113, 1
      %p792 = por %p790, %p791
      %p793 = scmp.ne.s32.totalorder %s784, %s785
      %p794 = scmp.eq.s32.totalorder %s113, 0
      %p795 = por %p793, %p794
      %p796 = scmp.ne.s32.totalorder %s784, %s785
      %p797 = scmp.eq.s32.totalorder %s114, 1
      %p798 = por %p796, %p797
      %p800 = scmp.ne.s32.totalorder %s785, %s799
      %p801 = scmp.eq.s32.totalorder %s114, 0
      %p802 = por %p800, %p801
      %s804 = sadd.s32 %s803, 1
      %p807 = scmp.eq.s32.totalorder %s108, 1
      %p808 = scmp.ne.s32.totalorder %s803, %s805
      %p809 = scmp.eq.s32.totalorder %s108, 0
      %p810 = por %p808, %p809
      %p811 = scmp.ne.s32.totalorder %s803, %s805
      %p812 = scmp.eq.s32.totalorder %s113, 1
      %p813 = por %p811, %p812
      %p814 = scmp.ne.s32.totalorder %s805, %s806
      %p815 = scmp.eq.s32.totalorder %s113, 0
      %p816 = por %p814, %p815
      %p817 = scmp.ne.s32.totalorder %s805, %s806
      %p818 = scmp.eq.s32.totalorder %s114, 1
      %p819 = por %p817, %p818
      %p821 = scmp.ne.s32.totalorder %s806, %s820
      %p822 = scmp.eq.s32.totalorder %s114, 0
      %p823 = por %p821, %p822
      %s825 = sadd.s32 %s824, 1
      %p828 = scmp.eq.s32.totalorder %s108, 1
      %p829 = scmp.ne.s32.totalorder %s824, %s826
      %p830 = scmp.eq.s32.totalorder %s108, 0
      %p831 = por %p829, %p830
      %p832 = scmp.ne.s32.totalorder %s824, %s826
      %p833 = scmp.eq.s32.totalorder %s113, 1
      %p834 = por %p832, %p833
      %p835 = scmp.ne.s32.totalorder %s826, %s827
      %p836 = scmp.eq.s32.totalorder %s113, 0
      %p837 = por %p835, %p836
      %p838 = scmp.ne.s32.totalorder %s826, %s827
      %p839 = scmp.eq.s32.totalorder %s114, 1
      %p840 = por %p838, %p839
      %p842 = scmp.ne.s32.totalorder %s827, %s841
      %p843 = scmp.eq.s32.totalorder %s114, 0
      %p844 = por %p842, %p843
      %s846 = sadd.s32 %s845, 1
      %p849 = scmp.eq.s32.totalorder %s108, 1
      %p850 = scmp.ne.s32.totalorder %s845, %s847
      %p851 = scmp.eq.s32.totalorder %s108, 0
      %p852 = por %p850, %p851
      %p853 = scmp.ne.s32.totalorder %s845, %s847
      %p854 = scmp.eq.s32.totalorder %s113, 1
      %p855 = por %p853, %p854
      %p856 = scmp.ne.s32.totalorder %s847, %s848
      %p857 = scmp.eq.s32.totalorder %s113, 0
      %p858 = por %p856, %p857
      %p859 = scmp.ne.s32.totalorder %s847, %s848
      %p860 = scmp.eq.s32.totalorder %s114, 1
      %p861 = por %p859, %p860
      %p863 = scmp.ne.s32.totalorder %s848, %s862
      %p864 = scmp.eq.s32.totalorder %s114, 0
      %p865 = por %p863, %p864
      %s867 = sadd.s32 %s866, 1
      %p870 = scmp.eq.s32.totalorder %s108, 1
      %p871 = scmp.ne.s32.totalorder %s866, %s868
      %p872 = scmp.eq.s32.totalorder %s108, 0
      %p873 = por %p871, %p872
      %p874 = scmp.ne.s32.totalorder %s866, %s868
      %p875 = scmp.eq.s32.totalorder %s113, 1
      %p876 = por %p874, %p875
      %p877 = scmp.ne.s32.totalorder %s868, %s869
      %p878 = scmp.eq.s32.totalorder %s113, 0
      %p879 = por %p877, %p878
      %p880 = scmp.ne.s32.totalorder %s868, %s869
      %p881 = scmp.eq.s32.totalorder %s114, 1
      %p882 = por %p880, %p881
      %p884 = scmp.ne.s32.totalorder %s869, %s883
      %p885 = scmp.eq.s32.totalorder %s114, 0
      %p886 = por %p884, %p885
      %s888 = sadd.s32 %s887, 1
      %p891 = scmp.eq.s32.totalorder %s108, 1
      %p892 = scmp.ne.s32.totalorder %s887, %s889
      %p893 = scmp.eq.s32.totalorder %s108, 0
      %p894 = por %p892, %p893
      %p895 = scmp.ne.s32.totalorder %s887, %s889
      %p896 = scmp.eq.s32.totalorder %s113, 1
      %p897 = por %p895, %p896
      %p898 = scmp.ne.s32.totalorder %s889, %s890
      %p899 = scmp.eq.s32.totalorder %s113, 0
      %p900 = por %p898, %p899
      %p901 = scmp.ne.s32.totalorder %s889, %s890
      %p902 = scmp.eq.s32.totalorder %s114, 1
      %p903 = por %p901, %p902
      %p905 = scmp.ne.s32.totalorder %s890, %s904
      %p906 = scmp.eq.s32.totalorder %s114, 0
      %p907 = por %p905, %p906
      %s909 = sadd.s32 %s908, 1
      %p912 = scmp.eq.s32.totalorder %s108, 1
      %p913 = scmp.ne.s32.totalorder %s908, %s910
      %p914 = scmp.eq.s32.totalorder %s108, 0
      %p915 = por %p913, %p914
      %p916 = scmp.ne.s32.totalorder %s908, %s910
      %p917 = scmp.eq.s32.totalorder %s113, 1
      %p918 = por %p916, %p917
      %p919 = scmp.ne.s32.totalorder %s910, %s911
      %p920 = scmp.eq.s32.totalorder %s113, 0
      %p921 = por %p919, %p920
      %p922 = scmp.ne.s32.totalorder %s910, %s911
      %p923 = scmp.eq.s32.totalorder %s114, 1
      %p924 = por %p922, %p923
      %p926 = scmp.ne.s32.totalorder %s911, %s925
      %p927 = scmp.eq.s32.totalorder %s114, 0
      %p928 = por %p926, %p927
      %s930 = sadd.s32 %s929, 1
      %p933 = scmp.eq.s32.totalorder %s108, 1
      %p934 = scmp.ne.s32.totalorder %s929, %s931
      %p935 = scmp.eq.s32.totalorder %s108, 0
      %p936 = por %p934, %p935
      %p937 = scmp.ne.s32.totalorder %s929, %s931
      %p938 = scmp.eq.s32.totalorder %s113, 1
      %p939 = por %p937, %p938
      %p940 = scmp.ne.s32.totalorder %s931, %s932
      %p941 = scmp.eq.s32.totalorder %s113, 0
      %p942 = por %p940, %p941
      %p943 = scmp.ne.s32.totalorder %s931, %s932
      %p944 = scmp.eq.s32.totalorder %s114, 1
      %p945 = por %p943, %p944
      %p947 = scmp.ne.s32.totalorder %s932, %s946
      %p948 = scmp.eq.s32.totalorder %s114, 0
      %p949 = por %p947, %p948
      %s951 = sadd.s32 %s950, 1
      %p954 = scmp.eq.s32.totalorder %s108, 1
      %p955 = scmp.ne.s32.totalorder %s950, %s952
      %p956 = scmp.eq.s32.totalorder %s108, 0
      %p957 = por %p955, %p956
      %p958 = scmp.ne.s32.totalorder %s950, %s952
      %p959 = scmp.eq.s32.totalorder %s113, 1
      %p960 = por %p958, %p959
      %p961 = scmp.ne.s32.totalorder %s952, %s953
      %p962 = scmp.eq.s32.totalorder %s113, 0
      %p963 = por %p961, %p962
      %p964 = scmp.ne.s32.totalorder %s952, %s953
      %p965 = scmp.eq.s32.totalorder %s114, 1
      %p966 = por %p964, %p965
      %p968 = scmp.ne.s32.totalorder %s953, %s967
      %p969 = scmp.eq.s32.totalorder %s114, 0
      %p970 = por %p968, %p969
      %s972 = sadd.s32 %s971, 1
      %p975 = scmp.eq.s32.totalorder %s108, 1
      %p976 = scmp.ne.s32.totalorder %s971, %s973
      %p977 = scmp.eq.s32.totalorder %s108, 0
      %p978 = por %p976, %p977
      %p979 = scmp.ne.s32.totalorder %s971, %s973
      %p980 = scmp.eq.s32.totalorder %s113, 1
      %p981 = por %p979, %p980
      %p982 = scmp.ne.s32.totalorder %s973, %s974
      %p983 = scmp.eq.s32.totalorder %s113, 0
      %p984 = por %p982, %p983
      %p985 = scmp.ne.s32.totalorder %s973, %s974
      %p986 = scmp.eq.s32.totalorder %s114, 1
      %p987 = por %p985, %p986
      %p989 = scmp.ne.s32.totalorder %s974, %s988
      %p990 = scmp.eq.s32.totalorder %s114, 0
      %p991 = por %p989, %p990
      %s993 = sadd.s32 %s992, 1
      %p996 = scmp.eq.s32.totalorder %s108, 1
      %p997 = scmp.ne.s32.totalorder %s992, %s994
      %p998 = scmp.eq.s32.totalorder %s108, 0
      %p999 = por %p997, %p998
      %p1000 = scmp.ne.s32.totalorder %s992, %s994
      %p1001 = scmp.eq.s32.totalorder %s113, 1
      %p1002 = por %p1000, %p1001
      %p1003 = scmp.ne.s32.totalorder %s994, %s995
      %p1004 = scmp.eq.s32.totalorder %s113, 0
      %p1005 = por %p1003, %p1004
      %p1006 = scmp.ne.s32.totalorder %s994, %s995
      %p1007 = scmp.eq.s32.totalorder %s114, 1
      %p1008 = por %p1006, %p1007
      %p1010 = scmp.ne.s32.totalorder %s995, %s1009
      %p1011 = scmp.eq.s32.totalorder %s114, 0
      %p1012 = por %p1010, %p1011
      %s1014 = sadd.s32 %s1013, 1
      %p1017 = scmp.eq.s32.totalorder %s108, 1
      %p1018 = scmp.ne.s32.totalorder %s1013, %s1015
      %p1019 = scmp.eq.s32.totalorder %s108, 0
      %p1020 = por %p1018, %p1019
      %p1021 = scmp.ne.s32.totalorder %s1013, %s1015
      %p1022 = scmp.eq.s32.totalorder %s113, 1
      %p1023 = por %p1021, %p1022
      %p1024 = scmp.ne.s32.totalorder %s1015, %s1016
      %p1025 = scmp.eq.s32.totalorder %s113, 0
      %p1026 = por %p1024, %p1025
      %p1027 = scmp.ne.s32.totalorder %s1015, %s1016
      %p1028 = scmp.eq.s32.totalorder %s114, 1
      %p1029 = por %p1027, %p1028
      %p1031 = scmp.ne.s32.totalorder %s1016, %s1030
      %p1032 = scmp.eq.s32.totalorder %s114, 0
      %p1033 = por %p1031, %p1032
      %s1035 = sadd.s32 %s1034, 1
      %p1038 = scmp.eq.s32.totalorder %s108, 1
      %p1039 = scmp.ne.s32.totalorder %s1034, %s1036
      %p1040 = scmp.eq.s32.totalorder %s108, 0
      %p1041 = por %p1039, %p1040
      %p1042 = scmp.ne.s32.totalorder %s1034, %s1036
      %p1043 = scmp.eq.s32.totalorder %s113, 1
      %p1044 = por %p1042, %p1043
      %p1045 = scmp.ne.s32.totalorder %s1036, %s1037
      %p1046 = scmp.eq.s32.totalorder %s113, 0
      %p1047 = por %p1045, %p1046
      %p1048 = scmp.ne.s32.totalorder %s1036, %s1037
      %p1049 = scmp.eq.s32.totalorder %s114, 1
      %p1050 = por %p1048, %p1049
      %p1052 = scmp.ne.s32.totalorder %s1037, %s1051
      %p1053 = scmp.eq.s32.totalorder %s114, 0
      %p1054 = por %p1052, %p1053
      %s1055 = ssub.s32 %s108, %s115
      %p1056 = scmp.eq.s32.totalorder %s1055, 0
      %s1058 = sadd.s32 %s1057, 1
      %s1059 = scalar_select %p1056, %s1057, %s1058
      %p1062 = pneg %p1056
      %p1063 = scmp.eq.s32.totalorder %s108, 1
      %p1064 = por %p1062, %p1063
      %p1065 = scmp.ne.s32.totalorder %s1057, %s1060
      %p1066 = scmp.eq.s32.totalorder %s108, 0
      %p1067 = por %p1065, %p1066
      %p1068 = scmp.ne.s32.totalorder %s1057, %s1060
      %p1069 = scmp.eq.s32.totalorder %s113, 1
      %p1070 = por %p1068, %p1069
      %p1071 = scmp.ne.s32.totalorder %s1060, %s1061
      %p1072 = scmp.eq.s32.totalorder %s113, 0
      %p1073 = por %p1071, %p1072
      %p1074 = scmp.ne.s32.totalorder %s1060, %s1061
      %p1075 = scmp.eq.s32.totalorder %s114, 1
      %p1076 = por %p1074, %p1075
      %p1078 = scmp.ne.s32.totalorder %s1061, %s1077
      %p1079 = scmp.eq.s32.totalorder %s114, 0
      %p1080 = por %p1078, %p1079
      %s1081 = ssub.s32 %s108, %s115
      %p1082 = scmp.eq.s32.totalorder %s1081, 0
      %s1084 = sadd.s32 %s1083, 1
      %s1085 = scalar_select %p1082, %s1083, %s1084
      %p1088 = pneg %p1082
      %p1089 = scmp.eq.s32.totalorder %s108, 1
      %p1090 = por %p1088, %p1089
      %p1091 = scmp.ne.s32.totalorder %s1083, %s1086
      %p1092 = scmp.eq.s32.totalorder %s108, 0
      %p1093 = por %p1091, %p1092
      %p1094 = scmp.ne.s32.totalorder %s1083, %s1086
      %p1095 = scmp.eq.s32.totalorder %s113, 1
      %p1096 = por %p1094, %p1095
      %p1097 = scmp.ne.s32.totalorder %s1086, %s1087
      %p1098 = scmp.eq.s32.totalorder %s113, 0
      %p1099 = por %p1097, %p1098
      %p1100 = scmp.ne.s32.totalorder %s1086, %s1087
      %p1101 = scmp.eq.s32.totalorder %s114, 1
      %p1102 = por %p1100, %p1101
      %p1104 = scmp.ne.s32.totalorder %s1087, %s1103
      %p1105 = scmp.eq.s32.totalorder %s114, 0
      %p1106 = por %p1104, %p1105
      %p1107 = scmp.le.s32.totalorder 1, %s108
      %p1108 = scmp.lt.s32.totalorder %s108, 3
      %p1109 = pnand %p1107, %p1108
      %p1110 = pneg %p1109
      // Predicated region
      $region9: #{visualbert_rex_forward.1} parent=5 // pred_check
        _
      $region10: #{visualbert_rex_forward.1} parent=5 // pred_check_branch
        %1112 = sbr.rel (%p1109) target = $region12
      $region11: #{visualbert_rex_forward.1} parent=5 // pred_region
        %s1113 = ssub.s32 %s108, 1
        // Predicated region
        $region13: #{visualbert_rex_forward.1} parent=11 // pred_check
          %p1114 = pneg %p207
        $region14: #{visualbert_rex_forward.1} parent=11 // pred_check_branch
          %1116 = sbr.rel (%p1114) target = $region16
        $region15: #{visualbert_rex_forward.1} parent=11 // pred_region
          _
        $region16: #{visualbert_rex_forward.1} parent=11 // pred_fallthru
          _
        // Predicated region
        $region17: #{visualbert_rex_forward.1} parent=11 // pred_check
          %p1117 = pneg %p228
        $region18: #{visualbert_rex_forward.1} parent=11 // pred_check_branch
          %1119 = sbr.rel (%p1117) target = $region20
        $region19: #{visualbert_rex_forward.1} parent=11 // pred_region
          _
        $region20: #{visualbert_rex_forward.1} parent=11 // pred_fallthru
          _
        // Predicated region
        $region21: #{visualbert_rex_forward.1} parent=11 // pred_check
          %p1120 = pneg %p249
        $region22: #{visualbert_rex_forward.1} parent=11 // pred_check_branch
          %1122 = sbr.rel (%p1120) target = $region24
        $region23: #{visualbert_rex_forward.1} parent=11 // pred_region
          _
        $region24: #{visualbert_rex_forward.1} parent=11 // pred_fallthru
          _
        // Predicated region
        $region25: #{visualbert_rex_forward.1} parent=11 // pred_check
          %p1123 = pneg %p270
        $region26: #{visualbert_rex_forward.1} parent=11 // pred_check_branch
          %1125 = sbr.rel (%p1123) target = $region28
        $region27: #{visualbert_rex_forward.1} parent=11 // pred_region
          _
        $region28: #{visualbert_rex_forward.1} parent=11 // pred_fallthru
          _
        // Predicated region
        $region29: #{visualbert_rex_forward.1} parent=11 // pred_check
          %p1126 = pneg %p291
        $region30: #{visualbert_rex_forward.1} parent=11 // pred_check_branch
          %1128 = sbr.rel (%p1126) target = $region32
        $region31: #{visualbert_rex_forward.1} parent=11 // pred_region
          _
        $region32: #{visualbert_rex_forward.1} parent=11 // pred_fallthru
          _
        // Predicated region
        $region33: #{visualbert_rex_forward.1} parent=11 // pred_check
          %p1129 = pneg %p312
        $region34: #{visualbert_rex_forward.1} parent=11 // pred_check_branch
          %1131 = sbr.rel (%p1129) target = $region36
        $region35: #{visualbert_rex_forward.1} parent=11 // pred_region
          _
        $region36: #{visualbert_rex_forward.1} parent=11 // pred_fallthru
          _
        // Predicated region
        $region37: #{visualbert_rex_forward.1} parent=11 // pred_check
          %p1132 = pneg %p333
        $region38: #{visualbert_rex_forward.1} parent=11 // pred_check_branch
          %1134 = sbr.rel (%p1132) target = $region40
        $region39: #{visualbert_rex_forward.1} parent=11 // pred_region
          _
        $region40: #{visualbert_rex_forward.1} parent=11 // pred_fallthru
          _
        // Predicated region
        $region41: #{visualbert_rex_forward.1} parent=11 // pred_check
          %p1135 = pneg %p354
        $region42: #{visualbert_rex_forward.1} parent=11 // pred_check_branch
          %1137 = sbr.rel (%p1135) target = $region44
        $region43: #{visualbert_rex_forward.1} parent=11 // pred_region
          _
        $region44: #{visualbert_rex_forward.1} parent=11 // pred_fallthru
          _
        // Predicated region
        $region45: #{visualbert_rex_forward.1} parent=11 // pred_check
          %p1138 = pneg %p375
        $region46: #{visualbert_rex_forward.1} parent=11 // pred_check_branch
          %1140 = sbr.rel (%p1138) target = $region48
        $region47: #{visualbert_rex_forward.1} parent=11 // pred_region
          _
        $region48: #{visualbert_rex_forward.1} parent=11 // pred_fallthru
          _
        // Predicated region
        $region49: #{visualbert_rex_forward.1} parent=11 // pred_check
          %p1141 = pneg %p396
        $region50: #{visualbert_rex_forward.1} parent=11 // pred_check_branch
          %1143 = sbr.rel (%p1141) target = $region52
        $region51: #{visualbert_rex_forward.1} parent=11 // pred_region
          _
        $region52: #{visualbert_rex_forward.1} parent=11 // pred_fallthru
          _
        // Predicated region
        $region53: #{visualbert_rex_forward.1} parent=11 // pred_check
          %p1144 = pneg %p417
        $region54: #{visualbert_rex_forward.1} parent=11 // pred_check_branch
          %1146 = sbr.rel (%p1144) target = $region56
        $region55: #{visualbert_rex_forward.1} parent=11 // pred_region
          _
        $region56: #{visualbert_rex_forward.1} parent=11 // pred_fallthru
          _
        // Predicated region
        $region57: #{visualbert_rex_forward.1} parent=11 // pred_check
          %p1147 = pneg %p438
        $region58: #{visualbert_rex_forward.1} parent=11 // pred_check_branch
          %1149 = sbr.rel (%p1147) target = $region60
        $region59: #{visualbert_rex_forward.1} parent=11 // pred_region
          _
        $region60: #{visualbert_rex_forward.1} parent=11 // pred_fallthru
          _
        // Predicated region
        $region61: #{visualbert_rex_forward.1} parent=11 // pred_check
          %p1150 = pneg %p459
        $region62: #{visualbert_rex_forward.1} parent=11 // pred_check_branch
          %1152 = sbr.rel (%p1150) target = $region64
        $region63: #{visualbert_rex_forward.1} parent=11 // pred_region
          _
        $region64: #{visualbert_rex_forward.1} parent=11 // pred_fallthru
          _
        // Predicated region
        $region65: #{visualbert_rex_forward.1} parent=11 // pred_check
          %p1153 = pneg %p480
        $region66: #{visualbert_rex_forward.1} parent=11 // pred_check_branch
          %1155 = sbr.rel (%p1153) target = $region68
        $region67: #{visualbert_rex_forward.1} parent=11 // pred_region
          _
        $region68: #{visualbert_rex_forward.1} parent=11 // pred_fallthru
          _
        // Predicated region
        $region69: #{visualbert_rex_forward.1} parent=11 // pred_check
          %p1156 = pneg %p501
        $region70: #{visualbert_rex_forward.1} parent=11 // pred_check_branch
          %1158 = sbr.rel (%p1156) target = $region72
        $region71: #{visualbert_rex_forward.1} parent=11 // pred_region
          _
        $region72: #{visualbert_rex_forward.1} parent=11 // pred_fallthru
          _
        // Predicated region
        $region73: #{visualbert_rex_forward.1} parent=11 // pred_check
          %p1159 = pneg %p522
        $region74: #{visualbert_rex_forward.1} parent=11 // pred_check_branch
          %1161 = sbr.rel (%p1159) target = $region76
        $region75: #{visualbert_rex_forward.1} parent=11 // pred_region
          _
        $region76: #{visualbert_rex_forward.1} parent=11 // pred_fallthru
          _
        // Predicated region
        $region77: #{visualbert_rex_forward.1} parent=11 // pred_check
          %p1162 = pneg %p543
        $region78: #{visualbert_rex_forward.1} parent=11 // pred_check_branch
          %1164 = sbr.rel (%p1162) target = $region80
        $region79: #{visualbert_rex_forward.1} parent=11 // pred_region
          _
        $region80: #{visualbert_rex_forward.1} parent=11 // pred_fallthru
          _
        // Predicated region
        $region81: #{visualbert_rex_forward.1} parent=11 // pred_check
          %p1165 = pneg %p564
        $region82: #{visualbert_rex_forward.1} parent=11 // pred_check_branch
          %1167 = sbr.rel (%p1165) target = $region84
        $region83: #{visualbert_rex_forward.1} parent=11 // pred_region
          _
        $region84: #{visualbert_rex_forward.1} parent=11 // pred_fallthru
          _
        // Predicated region
        $region85: #{visualbert_rex_forward.1} parent=11 // pred_check
          %p1168 = pneg %p585
        $region86: #{visualbert_rex_forward.1} parent=11 // pred_check_branch
          %1170 = sbr.rel (%p1168) target = $region88
        $region87: #{visualbert_rex_forward.1} parent=11 // pred_region
          _
        $region88: #{visualbert_rex_forward.1} parent=11 // pred_fallthru
          _
        // Predicated region
        $region89: #{visualbert_rex_forward.1} parent=11 // pred_check
          %p1171 = pneg %p606
        $region90: #{visualbert_rex_forward.1} parent=11 // pred_check_branch
          %1173 = sbr.rel (%p1171) target = $region92
        $region91: #{visualbert_rex_forward.1} parent=11 // pred_region
          _
        $region92: #{visualbert_rex_forward.1} parent=11 // pred_fallthru
          _
        // Predicated region
        $region93: #{visualbert_rex_forward.1} parent=11 // pred_check
          %p1174 = pneg %p627
        $region94: #{visualbert_rex_forward.1} parent=11 // pred_check_branch
          %1176 = sbr.rel (%p1174) target = $region96
        $region95: #{visualbert_rex_forward.1} parent=11 // pred_region
          _
        $region96: #{visualbert_rex_forward.1} parent=11 // pred_fallthru
          _
        // Predicated region
        $region97: #{visualbert_rex_forward.1} parent=11 // pred_check
          %p1177 = pneg %p648
        $region98: #{visualbert_rex_forward.1} parent=11 // pred_check_branch
          %1179 = sbr.rel (%p1177) target = $region100
        $region99: #{visualbert_rex_forward.1} parent=11 // pred_region
          _
        $region100: #{visualbert_rex_forward.1} parent=11 // pred_fallthru
          _
        // Predicated region
        $region101: #{visualbert_rex_forward.1} parent=11 // pred_check
          %p1180 = pneg %p669
        $region102: #{visualbert_rex_forward.1} parent=11 // pred_check_branch
          %1182 = sbr.rel (%p1180) target = $region104
        $region103: #{visualbert_rex_forward.1} parent=11 // pred_region
          _
        $region104: #{visualbert_rex_forward.1} parent=11 // pred_fallthru
          _
        // Predicated region
        $region105: #{visualbert_rex_forward.1} parent=11 // pred_check
          %p1183 = pneg %p690
        $region106: #{visualbert_rex_forward.1} parent=11 // pred_check_branch
          %1185 = sbr.rel (%p1183) target = $region108
        $region107: #{visualbert_rex_forward.1} parent=11 // pred_region
          _
        $region108: #{visualbert_rex_forward.1} parent=11 // pred_fallthru
          _
        // Predicated region
        $region109: #{visualbert_rex_forward.1} parent=11 // pred_check
          %p1186 = pneg %p711
        $region110: #{visualbert_rex_forward.1} parent=11 // pred_check_branch
          %1188 = sbr.rel (%p1186) target = $region112
        $region111: #{visualbert_rex_forward.1} parent=11 // pred_region
          _
        $region112: #{visualbert_rex_forward.1} parent=11 // pred_fallthru
          _
        // Predicated region
        $region113: #{visualbert_rex_forward.1} parent=11 // pred_check
          %p1189 = pneg %p732
        $region114: #{visualbert_rex_forward.1} parent=11 // pred_check_branch
          %1191 = sbr.rel (%p1189) target = $region116
        $region115: #{visualbert_rex_forward.1} parent=11 // pred_region
          _
        $region116: #{visualbert_rex_forward.1} parent=11 // pred_fallthru
          _
        // Predicated region
        $region117: #{visualbert_rex_forward.1} parent=11 // pred_check
          %p1192 = pneg %p753
        $region118: #{visualbert_rex_forward.1} parent=11 // pred_check_branch
          %1194 = sbr.rel (%p1192) target = $region120
        $region119: #{visualbert_rex_forward.1} parent=11 // pred_region
          _
        $region120: #{visualbert_rex_forward.1} parent=11 // pred_fallthru
          _
        // Predicated region
        $region121: #{visualbert_rex_forward.1} parent=11 // pred_check
          %p1195 = pneg %p774
        $region122: #{visualbert_rex_forward.1} parent=11 // pred_check_branch
          %1197 = sbr.rel (%p1195) target = $region124
        $region123: #{visualbert_rex_forward.1} parent=11 // pred_region
          _
        $region124: #{visualbert_rex_forward.1} parent=11 // pred_fallthru
          _
        // Predicated region
        $region125: #{visualbert_rex_forward.1} parent=11 // pred_check
          %p1198 = pneg %p795
        $region126: #{visualbert_rex_forward.1} parent=11 // pred_check_branch
          %1200 = sbr.rel (%p1198) target = $region128
        $region127: #{visualbert_rex_forward.1} parent=11 // pred_region
          _
        $region128: #{visualbert_rex_forward.1} parent=11 // pred_fallthru
          _
        // Predicated region
        $region129: #{visualbert_rex_forward.1} parent=11 // pred_check
          %p1201 = pneg %p816
        $region130: #{visualbert_rex_forward.1} parent=11 // pred_check_branch
          %1203 = sbr.rel (%p1201) target = $region132
        $region131: #{visualbert_rex_forward.1} parent=11 // pred_region
          _
        $region132: #{visualbert_rex_forward.1} parent=11 // pred_fallthru
          _
        // Predicated region
        $region133: #{visualbert_rex_forward.1} parent=11 // pred_check
          %p1204 = pneg %p837
        $region134: #{visualbert_rex_forward.1} parent=11 // pred_check_branch
          %1206 = sbr.rel (%p1204) target = $region136
        $region135: #{visualbert_rex_forward.1} parent=11 // pred_region
          _
        $region136: #{visualbert_rex_forward.1} parent=11 // pred_fallthru
          _
        // Predicated region
        $region137: #{visualbert_rex_forward.1} parent=11 // pred_check
          %p1207 = pneg %p858
        $region138: #{visualbert_rex_forward.1} parent=11 // pred_check_branch
          %1209 = sbr.rel (%p1207) target = $region140
        $region139: #{visualbert_rex_forward.1} parent=11 // pred_region
          _
        $region140: #{visualbert_rex_forward.1} parent=11 // pred_fallthru
          _
        // Predicated region
        $region141: #{visualbert_rex_forward.1} parent=11 // pred_check
          %p1210 = pneg %p879
        $region142: #{visualbert_rex_forward.1} parent=11 // pred_check_branch
          %1212 = sbr.rel (%p1210) target = $region144
        $region143: #{visualbert_rex_forward.1} parent=11 // pred_region
          _
        $region144: #{visualbert_rex_forward.1} parent=11 // pred_fallthru
          _
        // Predicated region
        $region145: #{visualbert_rex_forward.1} parent=11 // pred_check
          %p1213 = pneg %p900
        $region146: #{visualbert_rex_forward.1} parent=11 // pred_check_branch
          %1215 = sbr.rel (%p1213) target = $region148
        $region147: #{visualbert_rex_forward.1} parent=11 // pred_region
          _
        $region148: #{visualbert_rex_forward.1} parent=11 // pred_fallthru
          _
        // Predicated region
        $region149: #{visualbert_rex_forward.1} parent=11 // pred_check
          %p1216 = pneg %p921
        $region150: #{visualbert_rex_forward.1} parent=11 // pred_check_branch
          %1218 = sbr.rel (%p1216) target = $region152
        $region151: #{visualbert_rex_forward.1} parent=11 // pred_region
          _
        $region152: #{visualbert_rex_forward.1} parent=11 // pred_fallthru
          _
        // Predicated region
        $region153: #{visualbert_rex_forward.1} parent=11 // pred_check
          %p1219 = pneg %p942
        $region154: #{visualbert_rex_forward.1} parent=11 // pred_check_branch
          %1221 = sbr.rel (%p1219) target = $region156
        $region155: #{visualbert_rex_forward.1} parent=11 // pred_region
          %1223 = vsyncadd [#allocation4], 0
          %s1225 = sshll.u32 %s77, 4
          %s1226 = int_to_ptr.hbm [resolvable:$true] %s1225
          %s1227 = sshll.u32 [#allocation3], 4
          %s1228 = int_to_ptr.vmem [resolvable:$true] %s1227
          %1230 = dma.hbm_to_vmem [thread:$0]  %s1226, 16, %s1228, [#allocation4]
        $region156: #{visualbert_rex_forward.1} parent=11 // pred_fallthru
          _
        // Predicated region
        $region157: #{visualbert_rex_forward.1} parent=11 // pred_check
          %p1231 = pneg %p963
        $region158: #{visualbert_rex_forward.1} parent=11 // pred_check_branch
          %1233 = sbr.rel (%p1231) target = $region160
        $region159: #{visualbert_rex_forward.1} parent=11 // pred_region
          _
        $region160: #{visualbert_rex_forward.1} parent=11 // pred_fallthru
          _
        // Predicated region
        $region161: #{visualbert_rex_forward.1} parent=11 // pred_check
          %p1234 = pneg %p984
        $region162: #{visualbert_rex_forward.1} parent=11 // pred_check_branch
          %1236 = sbr.rel (%p1234) target = $region164
        $region163: #{visualbert_rex_forward.1} parent=11 // pred_region
          %1238 = vsyncadd [#allocation7], 0
          %s1240 = sshll.u32 %s81, 4
          %s1241 = int_to_ptr.hbm [resolvable:$true] %s1240
          %s1242 = sshll.u32 [#allocation6], 4
          %s1243 = int_to_ptr.vmem [resolvable:$true] %s1242
          %1245 = dma.hbm_to_vmem [thread:$0]  %s1241, 16, %s1243, [#allocation7]
        $region164: #{visualbert_rex_forward.1} parent=11 // pred_fallthru
          _
        // Predicated region
        $region165: #{visualbert_rex_forward.1} parent=11 // pred_check
          %p1246 = pneg %p1005
        $region166: #{visualbert_rex_forward.1} parent=11 // pred_check_branch
          %1248 = sbr.rel (%p1246) target = $region168
        $region167: #{visualbert_rex_forward.1} parent=11 // pred_region
          _
        $region168: #{visualbert_rex_forward.1} parent=11 // pred_fallthru
          _
        // Predicated region
        $region169: #{visualbert_rex_forward.1} parent=11 // pred_check
          %p1249 = pneg %p1026
        $region170: #{visualbert_rex_forward.1} parent=11 // pred_check_branch
          %1251 = sbr.rel (%p1249) target = $region172
        $region171: #{visualbert_rex_forward.1} parent=11 // pred_region
          %1253 = vsyncadd [#allocation7], 0
          %s1255 = sshll.u32 %s85, 4
          %s1256 = int_to_ptr.hbm [resolvable:$true] %s1255
          %s1257 = sshll.u32 [#allocation8], 4
          %s1258 = int_to_ptr.vmem [resolvable:$true] %s1257
          %1260 = dma.hbm_to_vmem [thread:$0]  %s1256, 16, %s1258, [#allocation7]
        $region172: #{visualbert_rex_forward.1} parent=11 // pred_fallthru
          _
        // Predicated region
        $region173: #{visualbert_rex_forward.1} parent=11 // pred_check
          %p1261 = pneg %p1047
        $region174: #{visualbert_rex_forward.1} parent=11 // pred_check_branch
          %1263 = sbr.rel (%p1261) target = $region176
        $region175: #{visualbert_rex_forward.1} parent=11 // pred_region
          _
        $region176: #{visualbert_rex_forward.1} parent=11 // pred_fallthru
          _
      $region12: #{visualbert_rex_forward.1} parent=5 // pred_fallthru
        _
      %p1264 = scmp.lt.s32.totalorder %s108, 2
      // Predicated region
      $region177: #{visualbert_rex_forward.1} parent=5 // pred_check
        %p1265 = pneg %p1264
      $region178: #{visualbert_rex_forward.1} parent=5 // pred_check_branch
        %1267 = sbr.rel (%p1265) target = $region180
      $region179: #{visualbert_rex_forward.1} parent=5 // pred_region
        // Predicated region
        $region181: #{visualbert_rex_forward.1} parent=179 // pred_check
          %p1268 = pneg %p128
        $region182: #{visualbert_rex_forward.1} parent=179 // pred_check_branch
          %1270 = sbr.rel (%p1268) target = $region184
        $region183: #{visualbert_rex_forward.1} parent=179 // pred_region
          %p1271 = scmp.lt.s32.totalorder %s108, 1
          %s1272 = scalar_select %p1271, %s108, 1
          %s1273 = smul.addr %s1272, 8
          %s1274 = scalar_lea.vmem %s1, %s1273
        $region184: #{visualbert_rex_forward.1} parent=179 // pred_fallthru
          _
        // Predicated region
        $region185: #{visualbert_rex_forward.1} parent=179 // pred_check
          %p1275 = pneg %p154
        $region186: #{visualbert_rex_forward.1} parent=179 // pred_check_branch
          %1277 = sbr.rel (%p1275) target = $region188
        $region187: #{visualbert_rex_forward.1} parent=179 // pred_region
          %p1278 = scmp.lt.s32.totalorder %s108, 1
          %s1279 = scalar_select %p1278, %s108, 1
          %s1280 = smul.addr %s1279, 8
          %s1281 = scalar_lea.vmem %s3, %s1280
        $region188: #{visualbert_rex_forward.1} parent=179 // pred_fallthru
          _
        // Predicated region
        $region189: #{visualbert_rex_forward.1} parent=179 // pred_check
          %p1282 = pneg %p180
        $region190: #{visualbert_rex_forward.1} parent=179 // pred_check_branch
          %1284 = sbr.rel (%p1282) target = $region192
        $region191: #{visualbert_rex_forward.1} parent=179 // pred_region
          %p1285 = scmp.lt.s32.totalorder %s108, 1
          %s1286 = scalar_select %p1285, %s108, 1
          %s1287 = scalar_lea.vmem %s5, %s1286
        $region192: #{visualbert_rex_forward.1} parent=179 // pred_fallthru
          _
      $region180: #{visualbert_rex_forward.1} parent=5 // pred_fallthru
        _
      %p1288 = scmp.le.s32.totalorder 1, %s108
      %p1289 = scmp.lt.s32.totalorder %s108, 3
      %p1290 = pnand %p1288, %p1289
      %p1291 = pneg %p1290
      // Predicated region
      $region193: #{visualbert_rex_forward.1} parent=5 // pred_check
        _
      $region194: #{visualbert_rex_forward.1} parent=5 // pred_check_branch
        %1293 = sbr.rel (%p1290) target = $region196
      $region195: #{visualbert_rex_forward.1} parent=5 // pred_region
        %s1294 = ssub.s32 %s108, 1
        // Predicated region
        $region197: #{visualbert_rex_forward.1} parent=195 // pred_check
          %p1295 = pneg %p942
        $region198: #{visualbert_rex_forward.1} parent=195 // pred_check_branch
          %1297 = sbr.rel (%p1295) target = $region200
        $region199: #{visualbert_rex_forward.1} parent=195 // pred_region
          %1299 = dma.done [#allocation4], 16
        $region200: #{visualbert_rex_forward.1} parent=195 // pred_fallthru
          _
        // Predicated region
        $region201: #{visualbert_rex_forward.1} parent=195 // pred_check
          %p1300 = pneg %p984
        $region202: #{visualbert_rex_forward.1} parent=195 // pred_check_branch
          %1302 = sbr.rel (%p1300) target = $region204
        $region203: #{visualbert_rex_forward.1} parent=195 // pred_region
          %1304 = dma.done [#allocation7], 16
        $region204: #{visualbert_rex_forward.1} parent=195 // pred_fallthru
          _
        // Predicated region
        $region205: #{visualbert_rex_forward.1} parent=195 // pred_check
          %p1305 = pneg %p1026
        $region206: #{visualbert_rex_forward.1} parent=195 // pred_check_branch
          %1307 = sbr.rel (%p1305) target = $region208
        $region207: #{visualbert_rex_forward.1} parent=195 // pred_region
          %1309 = dma.done [#allocation7], 16
        $region208: #{visualbert_rex_forward.1} parent=195 // pred_fallthru
          _
        %p1310 = scmp.lt.s32.totalorder %s113, 1
        %s1311 = scalar_select %p1310, %s113, 1
        %s1312 = smul.addr %s1311, 8
        %s1313 = scalar_lea.vmem %s1, %s1312
        %p1314 = pneg %p134
        %p1315 = pneg %p131
        %p1316 = scmp.lt.s32.totalorder %s113, 1
        %s1317 = scalar_select %p1316, %s113, 1
        %s1318 = smul.addr %s1317, 8
        %s1319 = scalar_lea.vmem %s3, %s1318
        %p1320 = pneg %p160
        %p1321 = pneg %p157
        %p1322 = scmp.lt.s32.totalorder %s113, 1
        %s1323 = scalar_select %p1322, %s113, 1
        %s1324 = scalar_lea.vmem %s5, %s1323
        %p1325 = pneg %p186
        %p1326 = pneg %p183
        %p1327 = pneg %p207
        %p1328 = pneg %p204
        %p1329 = pneg %p228
        %p1330 = pneg %p225
        %p1331 = pneg %p249
        %p1332 = pneg %p246
        %p1333 = pneg %p270
        %p1334 = pneg %p267
        %p1335 = pneg %p291
        %p1336 = pneg %p288
        %p1337 = pneg %p312
        %p1338 = pneg %p309
        %p1339 = pneg %p333
        %p1340 = pneg %p330
        %p1341 = pneg %p354
        %p1342 = pneg %p351
        %p1343 = pneg %p375
        %p1344 = pneg %p372
        %p1345 = pneg %p396
        %p1346 = pneg %p393
        %p1347 = pneg %p417
        %p1348 = pneg %p414
        %p1349 = pneg %p438
        %p1350 = pneg %p435
        %p1351 = pneg %p459
        %p1352 = pneg %p456
        %p1353 = pneg %p480
        %p1354 = pneg %p477
        %p1355 = pneg %p501
        %p1356 = pneg %p498
        %p1357 = pneg %p522
        %p1358 = pneg %p519
        %p1359 = pneg %p543
        %p1360 = pneg %p540
        %p1361 = pneg %p564
        %p1362 = pneg %p561
        %p1363 = pneg %p585
        %p1364 = pneg %p582
        %p1365 = pneg %p606
        %p1366 = pneg %p603
        %p1367 = pneg %p627
        %p1368 = pneg %p624
        %p1369 = pneg %p648
        %p1370 = pneg %p645
        %p1371 = pneg %p669
        %p1372 = pneg %p666
        %p1373 = pneg %p690
        %p1374 = pneg %p687
        %p1375 = pneg %p711
        %p1376 = pneg %p708
        %p1377 = pneg %p732
        %p1378 = pneg %p729
        %p1379 = pneg %p753
        %p1380 = pneg %p750
        %p1381 = pneg %p774
        %p1382 = pneg %p771
        %p1383 = pneg %p795
        %p1384 = pneg %p792
        %p1385 = pneg %p816
        %p1386 = pneg %p813
        %p1387 = pneg %p837
        %p1388 = pneg %p834
        %p1389 = pneg %p858
        %p1390 = pneg %p855
        %p1391 = pneg %p879
        %p1392 = pneg %p876
        %p1393 = pneg %p900
        %p1394 = pneg %p897
        %p1395 = pneg %p921
        %p1396 = pneg %p918
        %p1397 = pneg %p942
        %p1398 = pneg %p939
        %p1399 = pneg %p963
        %p1400 = pneg %p960
        %p1401 = pneg %p984
        %p1402 = pneg %p981
        %p1403 = pneg %p1005
        %p1404 = pneg %p1002
        %p1405 = pneg %p1026
        %p1406 = pneg %p1023
        %p1407 = pneg %p1047
        %p1408 = pneg %p1044
        %p1409 = pneg %p1073
        %p1410 = pneg %p1070
        %s1411 = sand.u32 %s1060, 1
        %s1412 = scalar_lea.sflag [#allocation5], %s1411
        %s1413 = sand.u32 %s1060, 1
        %s1414 = smul.addr %s1413, 4
        %s1415 = scalar_lea.vmem [#allocation9], %s1414
        %p1416 = pneg %p1099
        %p1417 = pneg %p1096
        %s1418 = sand.u32 %s1086, 1
        %s1419 = scalar_lea.sflag [#allocation11], %s1418
        %s1420 = sand.u32 %s1086, 1
        %s1421 = scalar_lea.vmem [#allocation10], %s1420
        %p1422 = scmp.lt.s32.totalorder %s113, 1
        %s1423 = scalar_select %p1422, %s113, 1
        %s1424 = smul.addr %s1423, 8
        %s1425 = scalar_lea.vmem %s1, %s1424
        %p1426 = scmp.lt.s32.totalorder %s113, 1
        %s1427 = scalar_select %p1426, %s113, 1
        %s1428 = smul.addr %s1427, 8
        %s1429 = scalar_lea.vmem %s3, %s1428
        %p1430 = scmp.lt.s32.totalorder %s113, 1
        %s1431 = scalar_select %p1430, %s113, 1
        %s1432 = scalar_lea.vmem %s5, %s1431
        %v1434 = vld [vmem:[%s11] sm:$0x1]
        %v1435 = vld [vmem:[%s13] sm:$0x1]
        %v1436 = vld [vmem:[%s1425] sm:$0xff]
        %vm1437 = vcmask 523264
        %v1438 = vsel %vm1437, %v1436, 0.0
        %1439 = vadd.xlane.f32.xlu0 %v1438
        %v1440 = vpop.xlane.xlu0 %1439
        %v1441 = vrcp.pop 64.0
        %v1442 = vmul.f32 64.0, %v1441
        %v1443 = vsub.f32 1.0, %v1442
        %v1444 = vmul.f32 %v1441, %v1443
        %v1445 = vadd.f32 %v1441, %v1444
        %vm1446 = vweird.f32 %v1441
        %v1447 = vsel %vm1446, %v1441, %v1445
        %v1448 = vmul.f32 %v1440, %v1447
        %v1449 = vsub.f32 %v1436, %v1448
        %v1450 = vmul.f32 %v1449, %v1449
        %v1451 = vsel %vm1437, %v1450, 0.0
        %1452 = vadd.xlane.f32.xlu0 %v1451
        %v1453 = vpop.xlane.xlu0 %1452
        %v1454 = vmul.f32 %v1453, %v1447
        %v1455 = vadd.f32 %v1454, 1e-12
        %v1456 = vrsqrt.pop %v1455
        %v1457 = vmul.f32 %v1456, %v1455
        %v1458 = vmul.f32 %v1457, %v1456
        %v1459 = vmul.f32 0.5, %v1458
        %v1460 = vsub.f32 1.5, %v1459
        %v1461 = vmul.f32 %v1456, %v1460
        %vm1462 = vweird.f32 %v1455
        %vm1463 = vweird.f32 %v1456
        %vm1464 = vmor %vm1462, %vm1463
        %v1465 = vsel %vm1464, %v1456, %v1461
        %v1466 = vmul.f32 %v1449, %v1465
        %v1468 = vperm.slane %v1434, 0
        %v1470 = vmul.f32 %v1466, %v1468
        %v1472 = vperm.slane %v1435, 0
        %v1474 = vadd.f32 %v1470, %v1472
        %v1475 = vld [vmem:[%s1429] sm:$0xff]
        %v1476 = vld [vmem:[%s7] sm:$0xf]
        %v1477 = vld [vmem:[%s7 + $0x4] sm:$0xf]
        %v1478 = vld [vmem:[%s7 + $0x8] sm:$0xf]
        %v1479 = vld [vmem:[%s7 + $0xc] sm:$0xf]
        %v1480 = vld [vmem:[%s7 + $0x10] sm:$0xf]
        %v1481 = vld [vmem:[%s7 + $0x14] sm:$0xf]
        %v1482 = vld [vmem:[%s7 + $0x18] sm:$0xf]
        %v1483 = vld [vmem:[%s7 + $0x1c] sm:$0xf]
        %v1484 = vld [vmem:[%s7 + $0x20] sm:$0xf]
        %v1485 = vld [vmem:[%s7 + $0x24] sm:$0xf]
        %v1486 = vld [vmem:[%s7 + $0x28] sm:$0xf]
        %v1487 = vld [vmem:[%s7 + $0x2c] sm:$0xf]
        %v1488 = vld [vmem:[%s7 + $0x30] sm:$0xf]
        %v1489 = vld [vmem:[%s7 + $0x34] sm:$0xf]
        %v1490 = vld [vmem:[%s7 + $0x38] sm:$0xf]
        %v1491 = vld [vmem:[%s7 + $0x3c] sm:$0xf]
        %v1492 = vpack.c.bf16 %v1475, %v1475
        %v1493 = vld [vmem:[%s9] sm:$0x1]
        %v1495 = vperm.slane %v1493, 0
        %v1513 = vunpack.c.l.b16 %v1476
        %v1514 = vunpack.c.l.b16 %v1477
        %v1515 = vunpack.c.l.b16 %v1478
        %v1516 = vunpack.c.l.b16 %v1479
        %v1517 = vunpack.c.l.b16 %v1480
        %v1518 = vunpack.c.l.b16 %v1481
        %v1519 = vunpack.c.l.b16 %v1482
        %v1520 = vunpack.c.l.b16 %v1483
        %v1521 = vunpack.c.l.b16 %v1484
        %v1522 = vunpack.c.l.b16 %v1485
        %v1523 = vunpack.c.l.b16 %v1486
        %v1524 = vunpack.c.l.b16 %v1487
        %v1525 = vunpack.c.l.b16 %v1488
        %v1526 = vunpack.c.l.b16 %v1489
        %v1527 = vunpack.c.l.b16 %v1490
        %v1528 = vunpack.c.l.b16 %v1491
        %v1529 = vpack.c.b16 %v1514, %v1513
        %v1530 = vpack.c.b16 %v1516, %v1515
        %v1531 = vpack.c.b16 %v1518, %v1517
        %v1532 = vpack.c.b16 %v1520, %v1519
        %v1533 = vpack.c.b16 %v1522, %v1521
        %v1534 = vpack.c.b16 %v1524, %v1523
        %v1535 = vpack.c.b16 %v1526, %v1525
        %v1536 = vpack.c.b16 %v1528, %v1527
        %1545 = vmatpush.bf16.msra.mxu0 %v1536
        %1546 = vmatpush.bf16.msra.mxu0 %v1535
        %1547 = vmatpush.bf16.msra.mxu0 %v1534
        %1548 = vmatpush.bf16.msra.mxu0 %v1533
        %1549 = vmatpush.bf16.msra.mxu0 %v1532
        %1550 = vmatpush.bf16.msra.mxu0 %v1531
        %1551 = vmatpush.bf16.msra.mxu0 %v1530
        %1552 = vmatpush.bf16.msra.mxu0 %v1529
        %1553 = vmatmul.bf16.gmra.mxu0 %v1492
        %v1554 = vpop.f32.mrf.mxu0
        %v1555 = vadd.f32 %v1495, %v1554
        %v1556 = vpop.f32.mrf.mxu0
        %1557 = vdwg.mxu0
        %v1558 = vsel %vm1437, %v1555, 0.0
        %1559 = vadd.xlane.f32.xlu0 %v1558
        %v1560 = vpop.xlane.xlu0 %1559
        %v1561 = vmul.f32 %v1560, %v1447
        %v1562 = vsub.f32 %v1555, %v1561
        %v1563 = vmul.f32 %v1562, %v1562
        %v1564 = vsel %vm1437, %v1563, 0.0
        %1565 = vadd.xlane.f32.xlu0 %v1564
        %v1566 = vpop.xlane.xlu0 %1565
        %v1567 = vmul.f32 %v1566, %v1447
        %v1568 = vadd.f32 %v1567, 1e-12
        %v1569 = vrsqrt.pop %v1568
        %v1570 = vmul.f32 %v1569, %v1568
        %v1571 = vmul.f32 %v1570, %v1569
        %v1572 = vmul.f32 0.5, %v1571
        %v1573 = vsub.f32 1.5, %v1572
        %v1574 = vmul.f32 %v1569, %v1573
        %vm1575 = vweird.f32 %v1568
        %vm1576 = vweird.f32 %v1569
        %vm1577 = vmor %vm1575, %vm1576
        %v1578 = vsel %vm1577, %v1569, %v1574
        %v1579 = vmul.f32 %v1562, %v1578
        %v1580 = vmul.f32 %v1579, %v1468
        %v1581 = vadd.f32 %v1580, %v1472
        %v1582 = vld [vmem:[%s1432] sm:$0x1]
        %v1583 = vld [vmem:[%s15] sm:$0xff]
        %v1584 = vld [vmem:[%s15 + $0x8] sm:$0xff]
        %v1585 = vld [vmem:[%s15 + $0x10] sm:$0xff]
        %v1586 = vld [vmem:[%s15 + $0x18] sm:$0xff]
        %v1587 = vld [vmem:[%s15 + $0x20] sm:$0xff]
        %v1588 = vld [vmem:[%s15 + $0x28] sm:$0xff]
        %v1589 = vld [vmem:[%s15 + $0x30] sm:$0xff]
        %v1590 = vld [vmem:[%s15 + $0x38] sm:$0xff]
        %v1591 = vpack.c.bf16 %v1581, %v1474
        %v1592 = vld [vmem:[%s17] sm:$0x3]
        %v1594 = vperm.slane %v1592, 0
        %v1595 = vperm.slane %v1592, 1
        %v1606 = vunpack.c.l.b16 %v1583
        %v1607 = vunpack.c.h.b16 %v1583
        %v1608 = vunpack.c.l.b16 %v1584
        %v1609 = vunpack.c.h.b16 %v1584
        %v1610 = vunpack.c.l.b16 %v1585
        %v1611 = vunpack.c.h.b16 %v1585
        %v1612 = vunpack.c.l.b16 %v1586
        %v1613 = vunpack.c.h.b16 %v1586
        %v1614 = vunpack.c.l.b16 %v1587
        %v1615 = vunpack.c.h.b16 %v1587
        %v1616 = vunpack.c.l.b16 %v1588
        %v1617 = vunpack.c.h.b16 %v1588
        %v1618 = vunpack.c.l.b16 %v1589
        %v1619 = vunpack.c.h.b16 %v1589
        %v1620 = vunpack.c.l.b16 %v1590
        %v1621 = vunpack.c.h.b16 %v1590
        %v1622 = vpack.c.b16 %v1608, %v1606
        %v1623 = vpack.c.b16 %v1609, %v1607
        %v1624 = vpack.c.b16 %v1612, %v1610
        %v1625 = vpack.c.b16 %v1613, %v1611
        %v1626 = vpack.c.b16 %v1616, %v1614
        %v1627 = vpack.c.b16 %v1617, %v1615
        %v1628 = vpack.c.b16 %v1620, %v1618
        %v1629 = vpack.c.b16 %v1621, %v1619
        %v1639 = vsel %vm1437, %v1591, 0
        %1641 = vmatpush.bf16.msra.mxu0 0
        %1642 = vmatpush.bf16.msra.mxu0 0
        %1643 = vmatpush.bf16.msra.mxu0 0
        %1644 = vmatpush.bf16.msra.mxu0 0
        %1645 = vmatpush.bf16.msra.mxu0 %v1628
        %1646 = vmatpush.bf16.msra.mxu0 %v1626
        %1647 = vmatpush.bf16.msra.mxu0 %v1624
        %1648 = vmatpush.bf16.msra.mxu0 %v1622
        %1649 = vmatmul.bf16.gmra.mxu0 %v1639
        %v1650 = vpop.f32.mrf.mxu0
        %v1651 = vadd.f32 %v1594, %v1650
        %v1652 = vpop.f32.mrf.mxu0
        %v1653 = vadd.f32 %v1594, %v1652
        %1654 = vdwg.mxu0
        %1655 = vmatpush.bf16.msra.mxu0 0
        %1656 = vmatpush.bf16.msra.mxu0 0
        %1657 = vmatpush.bf16.msra.mxu0 0
        %1658 = vmatpush.bf16.msra.mxu0 0
        %1659 = vmatpush.bf16.msra.mxu0 %v1629
        %1660 = vmatpush.bf16.msra.mxu0 %v1627
        %1661 = vmatpush.bf16.msra.mxu0 %v1625
        %1662 = vmatpush.bf16.msra.mxu0 %v1623
        %1663 = vmatmul.bf16.gmra.mxu0 %v1639
        %v1664 = vpop.f32.mrf.mxu0
        %v1665 = vadd.f32 %v1595, %v1664
        %v1666 = vpop.f32.mrf.mxu0
        %v1667 = vadd.f32 %v1595, %v1666
        %1668 = vdwg.mxu0
        %v1669 = vpack.c.bf16 %v1653, %v1651
        %1671 = vrot.lane.b32.xlu0 %v1669, 64
        %v1672 = vpop.permute.xlu0 %1671
        %vm1673 = vcmask 130048
        %v1675 = vsel %vm1673, %v1669, 0
        %v1678 = vsel %vm1673, %v1672, 0
        %1680 = vmatpush.bf16.xpose.msra.mxu0 0
        %1681 = vmatpush.bf16.xpose.msra.mxu0 0
        %1682 = vmatpush.bf16.xpose.msra.mxu0 0
        %1683 = vmatpush.bf16.xpose.msra.mxu0 0
        %1684 = vmatpush.bf16.xpose.msra.mxu0 0
        %1685 = vmatpush.bf16.xpose.msra.mxu0 0
        %1686 = vmatpush.bf16.xpose.msra.mxu0 0
        %1687 = vmatpush.bf16.xpose.msra.mxu0 %v1678
        %1688 = vmatmul.bf16.gmra.mxu0 %v1675
        %v1689 = vpop.f32.mrf.mxu0
        %v1690 = vadd.f32 0.0, %v1689
        %v1691 = vpop.f32.mrf.mxu0
        %v1692 = vadd.f32 0.0, %v1691
        %1693 = vdwg.mxu0
        %v1694 = vmul.f32 %v1690, 0.25
        %v1695 = vmul.f32 %v1692, 0.25
        %v1697 = vperm.slane %v1582, 0
        %v1699 = vadd.f32 %v1694, %v1697
        %v1700 = vadd.f32 %v1695, %v1697
        %v1701 = vsel %vm1673, %v1699, -inf
        %1702 = vmax.xlane.f32.xlu0 %v1701
        %v1703 = vpop.xlane.xlu0 %1702
        %v1704 = vsel %vm1673, %v1700, -inf
        %1705 = vmax.xlane.f32.xlu0 %v1704
        %v1706 = vpop.xlane.xlu0 %1705
        %v1707 = vsub.f32 %v1699, %v1703
        %v1708 = vsub.f32 %v1700, %v1706
        %v1709 = vmul.f32 %v1707, 1.442695
        %v1710 = vpow.pop %v1709
        %v1711 = vmul.f32 %v1708, 1.442695
        %v1712 = vpow.pop %v1711
        %v1713 = vsel %vm1673, %v1710, 0.0
        %1714 = vadd.xlane.f32.xlu0 %v1713
        %v1715 = vpop.xlane.xlu0 %1714
        %v1716 = vsel %vm1673, %v1712, 0.0
        %1717 = vadd.xlane.f32.xlu0 %v1716
        %v1718 = vpop.xlane.xlu0 %1717
        %v1719 = vrcp.pop %v1715
        %v1720 = vrcp.pop %v1718
        %v1721 = vmul.f32 %v1710, %v1719
        %v1722 = vmul.f32 %v1712, %v1720
        %v1723 = vpack.c.bf16 %v1667, %v1665
        %v1724 = vpack.c.bf16 %v1722, %v1721
        %v1726 = vsel %vm1673, %v1724, 0
        %1728 = vmatpush.bf16.msra.mxu0 0
        %1729 = vmatpush.bf16.msra.mxu0 0
        %1730 = vmatpush.bf16.msra.mxu0 0
        %1731 = vmatpush.bf16.msra.mxu0 0
        %1732 = vmatpush.bf16.msra.mxu0 0
        %1733 = vmatpush.bf16.msra.mxu0 0
        %1734 = vmatpush.bf16.msra.mxu0 0
        %1735 = vmatpush.bf16.msra.mxu0 %v1723
        %1736 = vmatmul.bf16.gmra.mxu0 %v1726
        %v1737 = vpop.f32.mrf.mxu0
        %v1738 = vadd.f32 0.0, %v1737
        %v1739 = vpop.f32.mrf.mxu0
        %v1740 = vadd.f32 0.0, %v1739
        %1741 = vdwg.mxu0
        %1742 = vrot.lane.b32.xlu0 %v1669, 112
        %v1743 = vpop.permute.xlu0 %1742
        %1744 = vrot.lane.b32.xlu0 %v1669, 48
        %v1745 = vpop.permute.xlu0 %1744
        %v1747 = vsel %vm1673, %v1743, 0
        %v1750 = vsel %vm1673, %v1745, 0
        %1752 = vmatpush.bf16.xpose.msra.mxu0 0
        %1753 = vmatpush.bf16.xpose.msra.mxu0 0
        %1754 = vmatpush.bf16.xpose.msra.mxu0 0
        %1755 = vmatpush.bf16.xpose.msra.mxu0 0
        %1756 = vmatpush.bf16.xpose.msra.mxu0 0
        %1757 = vmatpush.bf16.xpose.msra.mxu0 0
        %1758 = vmatpush.bf16.xpose.msra.mxu0 0
        %1759 = vmatpush.bf16.xpose.msra.mxu0 %v1750
        %1760 = vmatmul.bf16.gmra.mxu0 %v1747
        %v1761 = vpop.f32.mrf.mxu0
        %v1762 = vadd.f32 0.0, %v1761
        %v1763 = vpop.f32.mrf.mxu0
        %v1764 = vadd.f32 0.0, %v1763
        %1765 = vdwg.mxu0
        %v1766 = vmul.f32 %v1762, 0.25
        %v1767 = vmul.f32 %v1764, 0.25
        %v1768 = vadd.f32 %v1766, %v1697
        %v1769 = vadd.f32 %v1767, %v1697
        %v1770 = vsel %vm1673, %v1768, -inf
        %1771 = vmax.xlane.f32.xlu0 %v1770
        %v1772 = vpop.xlane.xlu0 %1771
        %v1773 = vsel %vm1673, %v1769, -inf
        %1774 = vmax.xlane.f32.xlu0 %v1773
        %v1775 = vpop.xlane.xlu0 %1774
        %v1776 = vsub.f32 %v1768, %v1772
        %v1777 = vsub.f32 %v1769, %v1775
        %v1778 = vmul.f32 %v1776, 1.442695
        %v1779 = vpow.pop %v1778
        %v1780 = vmul.f32 %v1777, 1.442695
        %v1781 = vpow.pop %v1780
        %v1782 = vsel %vm1673, %v1779, 0.0
        %1783 = vadd.xlane.f32.xlu0 %v1782
        %v1784 = vpop.xlane.xlu0 %1783
        %v1785 = vsel %vm1673, %v1781, 0.0
        %1786 = vadd.xlane.f32.xlu0 %v1785
        %v1787 = vpop.xlane.xlu0 %1786
        %v1788 = vrcp.pop %v1784
        %v1789 = vrcp.pop %v1787
        %v1790 = vmul.f32 %v1779, %v1788
        %v1791 = vmul.f32 %v1781, %v1789
        %v1792 = vpack.c.bf16 %v1791, %v1790
        %1794 = vrot.lane.b32.xlu0 %v1723, 112
        %v1795 = vpop.permute.xlu0 %1794
        %v1798 = vsel %vm1673, %v1792, 0
        %1800 = vmatpush.bf16.msra.mxu0 0
        %1801 = vmatpush.bf16.msra.mxu0 0
        %1802 = vmatpush.bf16.msra.mxu0 0
        %1803 = vmatpush.bf16.msra.mxu0 0
        %1804 = vmatpush.bf16.msra.mxu0 0
        %1805 = vmatpush.bf16.msra.mxu0 0
        %1806 = vmatpush.bf16.msra.mxu0 0
        %1807 = vmatpush.bf16.msra.mxu0 %v1795
        %1808 = vmatmul.bf16.gmra.mxu0 %v1798
        %v1809 = vpop.f32.mrf.mxu0
        %v1810 = vadd.f32 0.0, %v1809
        %v1811 = vpop.f32.mrf.mxu0
        %v1812 = vadd.f32 0.0, %v1811
        %1813 = vdwg.mxu0
        %1814 = vrot.lane.b32.xlu0 %v1669, 96
        %v1815 = vpop.permute.xlu0 %1814
        %1816 = vrot.lane.b32.xlu0 %v1669, 32
        %v1817 = vpop.permute.xlu0 %1816
        %v1819 = vsel %vm1673, %v1815, 0
        %v1822 = vsel %vm1673, %v1817, 0
        %1824 = vmatpush.bf16.xpose.msra.mxu0 0
        %1825 = vmatpush.bf16.xpose.msra.mxu0 0
        %1826 = vmatpush.bf16.xpose.msra.mxu0 0
        %1827 = vmatpush.bf16.xpose.msra.mxu0 0
        %1828 = vmatpush.bf16.xpose.msra.mxu0 0
        %1829 = vmatpush.bf16.xpose.msra.mxu0 0
        %1830 = vmatpush.bf16.xpose.msra.mxu0 0
        %1831 = vmatpush.bf16.xpose.msra.mxu0 %v1822
        %1832 = vmatmul.bf16.gmra.mxu0 %v1819
        %v1833 = vpop.f32.mrf.mxu0
        %v1834 = vadd.f32 0.0, %v1833
        %v1835 = vpop.f32.mrf.mxu0
        %v1836 = vadd.f32 0.0, %v1835
        %1837 = vdwg.mxu0
        %v1838 = vmul.f32 %v1834, 0.25
        %v1839 = vmul.f32 %v1836, 0.25
        %v1840 = vadd.f32 %v1838, %v1697
        %v1841 = vadd.f32 %v1839, %v1697
        %v1842 = vsel %vm1673, %v1840, -inf
        %1843 = vmax.xlane.f32.xlu0 %v1842
        %v1844 = vpop.xlane.xlu0 %1843
        %v1845 = vsel %vm1673, %v1841, -inf
        %1846 = vmax.xlane.f32.xlu0 %v1845
        %v1847 = vpop.xlane.xlu0 %1846
        %v1848 = vsub.f32 %v1840, %v1844
        %v1849 = vsub.f32 %v1841, %v1847
        %v1850 = vmul.f32 %v1848, 1.442695
        %v1851 = vpow.pop %v1850
        %v1852 = vmul.f32 %v1849, 1.442695
        %v1853 = vpow.pop %v1852
        %v1854 = vsel %vm1673, %v1851, 0.0
        %1855 = vadd.xlane.f32.xlu0 %v1854
        %v1856 = vpop.xlane.xlu0 %1855
        %v1857 = vsel %vm1673, %v1853, 0.0
        %1858 = vadd.xlane.f32.xlu0 %v1857
        %v1859 = vpop.xlane.xlu0 %1858
        %v1860 = vrcp.pop %v1856
        %v1861 = vrcp.pop %v1859
        %v1862 = vmul.f32 %v1851, %v1860
        %v1863 = vmul.f32 %v1853, %v1861
        %v1864 = vpack.c.bf16 %v1863, %v1862
        %1865 = vrot.lane.b32.xlu0 %v1723, 96
        %v1866 = vpop.permute.xlu0 %1865
        %v1869 = vsel %vm1673, %v1864, 0
        %1871 = vmatpush.bf16.msra.mxu0 0
        %1872 = vmatpush.bf16.msra.mxu0 0
        %1873 = vmatpush.bf16.msra.mxu0 0
        %1874 = vmatpush.bf16.msra.mxu0 0
        %1875 = vmatpush.bf16.msra.mxu0 0
        %1876 = vmatpush.bf16.msra.mxu0 0
        %1877 = vmatpush.bf16.msra.mxu0 0
        %1878 = vmatpush.bf16.msra.mxu0 %v1866
        %1879 = vmatmul.bf16.gmra.mxu0 %v1869
        %v1880 = vpop.f32.mrf.mxu0
        %v1881 = vadd.f32 0.0, %v1880
        %v1882 = vpop.f32.mrf.mxu0
        %v1883 = vadd.f32 0.0, %v1882
        %1884 = vdwg.mxu0
        %1885 = vrot.lane.b32.xlu0 %v1669, 80
        %v1886 = vpop.permute.xlu0 %1885
        %1887 = vrot.lane.b32.xlu0 %v1669, 16
        %v1888 = vpop.permute.xlu0 %1887
        %v1890 = vsel %vm1673, %v1886, 0
        %v1893 = vsel %vm1673, %v1888, 0
        %1895 = vmatpush.bf16.xpose.msra.mxu0 0
        %1896 = vmatpush.bf16.xpose.msra.mxu0 0
        %1897 = vmatpush.bf16.xpose.msra.mxu0 0
        %1898 = vmatpush.bf16.xpose.msra.mxu0 0
        %1899 = vmatpush.bf16.xpose.msra.mxu0 0
        %1900 = vmatpush.bf16.xpose.msra.mxu0 0
        %1901 = vmatpush.bf16.xpose.msra.mxu0 0
        %1902 = vmatpush.bf16.xpose.msra.mxu0 %v1893
        %1903 = vmatmul.bf16.gmra.mxu0 %v1890
        %v1904 = vpop.f32.mrf.mxu0
        %v1905 = vadd.f32 0.0, %v1904
        %v1906 = vpop.f32.mrf.mxu0
        %v1907 = vadd.f32 0.0, %v1906
        %1908 = vdwg.mxu0
        %v1909 = vmul.f32 %v1905, 0.25
        %v1910 = vmul.f32 %v1907, 0.25
        %v1911 = vadd.f32 %v1909, %v1697
        %v1912 = vadd.f32 %v1910, %v1697
        %v1913 = vsel %vm1673, %v1911, -inf
        %1914 = vmax.xlane.f32.xlu0 %v1913
        %v1915 = vpop.xlane.xlu0 %1914
        %v1916 = vsel %vm1673, %v1912, -inf
        %1917 = vmax.xlane.f32.xlu0 %v1916
        %v1918 = vpop.xlane.xlu0 %1917
        %v1919 = vsub.f32 %v1911, %v1915
        %v1920 = vsub.f32 %v1912, %v1918
        %v1921 = vmul.f32 %v1919, 1.442695
        %v1922 = vpow.pop %v1921
        %v1923 = vmul.f32 %v1920, 1.442695
        %v1924 = vpow.pop %v1923
        %v1925 = vsel %vm1673, %v1922, 0.0
        %1926 = vadd.xlane.f32.xlu0 %v1925
        %v1927 = vpop.xlane.xlu0 %1926
        %v1928 = vsel %vm1673, %v1924, 0.0
        %1929 = vadd.xlane.f32.xlu0 %v1928
        %v1930 = vpop.xlane.xlu0 %1929
        %v1931 = vrcp.pop %v1927
        %v1932 = vrcp.pop %v1930
        %v1933 = vmul.f32 %v1922, %v1931
        %v1934 = vmul.f32 %v1924, %v1932
        %v1935 = vpack.c.bf16 %v1934, %v1933
        %1936 = vrot.lane.b32.xlu0 %v1723, 80
        %v1937 = vpop.permute.xlu0 %1936
        %v1940 = vsel %vm1673, %v1935, 0
        %1942 = vmatpush.bf16.msra.mxu0 0
        %1943 = vmatpush.bf16.msra.mxu0 0
        %1944 = vmatpush.bf16.msra.mxu0 0
        %1945 = vmatpush.bf16.msra.mxu0 0
        %1946 = vmatpush.bf16.msra.mxu0 0
        %1947 = vmatpush.bf16.msra.mxu0 0
        %1948 = vmatpush.bf16.msra.mxu0 0
        %1949 = vmatpush.bf16.msra.mxu0 %v1937
        %1950 = vmatmul.bf16.gmra.mxu0 %v1940
        %v1951 = vpop.f32.mrf.mxu0
        %v1952 = vadd.f32 0.0, %v1951
        %v1953 = vpop.f32.mrf.mxu0
        %v1954 = vadd.f32 0.0, %v1953
        %1955 = vdwg.mxu0
        %1958 = vrot.lane.b32.xlu0 %v1810, 16
        %v1959 = vpop.permute.xlu0 %1958
        %1960 = vrot.lane.b32.xlu0 %v1812, 16
        %v1961 = vpop.permute.xlu0 %1960
        %1966 = vrot.lane.b32.xlu0 %v1881, 32
        %v1967 = vpop.permute.xlu0 %1966
        %1968 = vrot.lane.b32.xlu0 %v1883, 32
        %v1969 = vpop.permute.xlu0 %1968
        %1974 = vrot.lane.b32.xlu0 %v1952, 48
        %v1975 = vpop.permute.xlu0 %1974
        %1976 = vrot.lane.b32.xlu0 %v1954, 48
        %v1977 = vpop.permute.xlu0 %1976
        %v1980 = vsel %vm1673, %v1738, %v1959
        %v1981 = vsel %vm1673, %v1740, %v1961
        %vm1982 = vcmask 261120
        %v1983 = vsel %vm1982, %v1980, %v1967
        %v1984 = vsel %vm1982, %v1981, %v1969
        %vm1985 = vcmask 392192
        %v1986 = vsel %vm1985, %v1983, %v1975
        %v1987 = vsel %vm1985, %v1984, %v1977
        %v1988 = vld [vmem:[%s19] sm:$0xf]
        %v1989 = vld [vmem:[%s19 + $0x4] sm:$0xf]
        %v1990 = vld [vmem:[%s19 + $0x8] sm:$0xf]
        %v1991 = vld [vmem:[%s19 + $0xc] sm:$0xf]
        %v1992 = vld [vmem:[%s19 + $0x10] sm:$0xf]
        %v1993 = vld [vmem:[%s19 + $0x14] sm:$0xf]
        %v1994 = vld [vmem:[%s19 + $0x18] sm:$0xf]
        %v1995 = vld [vmem:[%s19 + $0x1c] sm:$0xf]
        %v1996 = vpack.c.bf16 %v1987, %v1986
        %v1997 = vld [vmem:[%s21] sm:$0x1]
        %v1999 = vperm.slane %v1997, 0
        %v2009 = vunpack.c.l.b16 %v1988
        %v2010 = vunpack.c.l.b16 %v1989
        %v2011 = vunpack.c.l.b16 %v1990
        %v2012 = vunpack.c.l.b16 %v1991
        %v2013 = vunpack.c.l.b16 %v1992
        %v2014 = vunpack.c.l.b16 %v1993
        %v2015 = vunpack.c.l.b16 %v1994
        %v2016 = vunpack.c.l.b16 %v1995
        %v2017 = vpack.c.b16 %v2010, %v2009
        %v2018 = vpack.c.b16 %v2012, %v2011
        %v2019 = vpack.c.b16 %v2014, %v2013
        %v2020 = vpack.c.b16 %v2016, %v2015
        %v2026 = vsel %vm1437, %v1996, 0
        %2028 = vmatpush.bf16.msra.mxu0 0
        %2029 = vmatpush.bf16.msra.mxu0 0
        %2030 = vmatpush.bf16.msra.mxu0 0
        %2031 = vmatpush.bf16.msra.mxu0 0
        %2032 = vmatpush.bf16.msra.mxu0 %v2020
        %2033 = vmatpush.bf16.msra.mxu0 %v2019
        %2034 = vmatpush.bf16.msra.mxu0 %v2018
        %2035 = vmatpush.bf16.msra.mxu0 %v2017
        %2036 = vmatmul.bf16.gmra.mxu0 %v2026
        %v2037 = vpop.f32.mrf.mxu0
        %v2038 = vadd.f32 %v1999, %v2037
        %v2039 = vpop.f32.mrf.mxu0
        %v2040 = vadd.f32 %v1999, %v2039
        %2041 = vdwg.mxu0
        %v2042 = vadd.f32 %v2038, %v1474
        %v2043 = vadd.f32 %v2040, %v1581
        %v2044 = vld [vmem:[%s23] sm:$0x1]
        %v2045 = vld [vmem:[%s25] sm:$0x1]
        %v2046 = vsel %vm1437, %v2042, 0.0
        %2047 = vadd.xlane.f32.xlu0 %v2046
        %v2048 = vpop.xlane.xlu0 %2047
        %v2049 = vsel %vm1437, %v2043, 0.0
        %2050 = vadd.xlane.f32.xlu0 %v2049
        %v2051 = vpop.xlane.xlu0 %2050
        %v2052 = vmul.f32 %v2048, %v1447
        %v2053 = vmul.f32 %v2051, %v1447
        %v2054 = vsub.f32 %v2042, %v2052
        %v2055 = vsub.f32 %v2043, %v2053
        %v2056 = vmul.f32 %v2054, %v2054
        %v2057 = vmul.f32 %v2055, %v2055
        %v2058 = vsel %vm1437, %v2056, 0.0
        %2059 = vadd.xlane.f32.xlu0 %v2058
        %v2060 = vpop.xlane.xlu0 %2059
        %v2061 = vsel %vm1437, %v2057, 0.0
        %2062 = vadd.xlane.f32.xlu0 %v2061
        %v2063 = vpop.xlane.xlu0 %2062
        %v2064 = vmul.f32 %v2060, %v1447
        %v2065 = vmul.f32 %v2063, %v1447
        %v2066 = vadd.f32 %v2064, 1e-12
        %v2067 = vadd.f32 %v2065, 1e-12
        %v2068 = vrsqrt.pop %v2066
        %v2069 = vmul.f32 %v2068, %v2066
        %v2070 = vmul.f32 %v2069, %v2068
        %v2071 = vmul.f32 0.5, %v2070
        %v2072 = vsub.f32 1.5, %v2071
        %v2073 = vmul.f32 %v2068, %v2072
        %vm2074 = vweird.f32 %v2066
        %vm2075 = vweird.f32 %v2068
        %vm2076 = vmor %vm2074, %vm2075
        %v2077 = vsel %vm2076, %v2068, %v2073
        %v2078 = vrsqrt.pop %v2067
        %v2079 = vmul.f32 %v2078, %v2067
        %v2080 = vmul.f32 %v2079, %v2078
        %v2081 = vmul.f32 0.5, %v2080
        %v2082 = vsub.f32 1.5, %v2081
        %v2083 = vmul.f32 %v2078, %v2082
        %vm2084 = vweird.f32 %v2067
        %vm2085 = vweird.f32 %v2078
        %vm2086 = vmor %vm2084, %vm2085
        %v2087 = vsel %vm2086, %v2078, %v2083
        %v2088 = vmul.f32 %v2054, %v2077
        %v2089 = vmul.f32 %v2055, %v2087
        %v2091 = vperm.slane %v2044, 0
        %v2093 = vmul.f32 %v2088, %v2091
        %v2094 = vmul.f32 %v2089, %v2091
        %v2096 = vperm.slane %v2045, 0
        %v2098 = vadd.f32 %v2093, %v2096
        %v2099 = vadd.f32 %v2094, %v2096
        %v2100 = vld [vmem:[%s27] sm:$0xff]
        %v2101 = vld [vmem:[%s27 + $0x8] sm:$0xff]
        %v2102 = vld [vmem:[%s27 + $0x10] sm:$0xff]
        %v2103 = vld [vmem:[%s27 + $0x18] sm:$0xff]
        %v2104 = vld [vmem:[%s27 + $0x20] sm:$0xff]
        %v2105 = vld [vmem:[%s27 + $0x28] sm:$0xff]
        %v2106 = vld [vmem:[%s27 + $0x30] sm:$0xff]
        %v2107 = vld [vmem:[%s27 + $0x38] sm:$0xff]
        %v2108 = vpack.c.bf16 %v2099, %v2098
        %v2109 = vld [vmem:[%s29] sm:$0x3]
        %v2111 = vperm.slane %v2109, 0
        %v2112 = vperm.slane %v2109, 1
        %v2123 = vunpack.c.l.b16 %v2100
        %v2124 = vunpack.c.h.b16 %v2100
        %v2125 = vunpack.c.l.b16 %v2101
        %v2126 = vunpack.c.h.b16 %v2101
        %v2127 = vunpack.c.l.b16 %v2102
        %v2128 = vunpack.c.h.b16 %v2102
        %v2129 = vunpack.c.l.b16 %v2103
        %v2130 = vunpack.c.h.b16 %v2103
        %v2131 = vunpack.c.l.b16 %v2104
        %v2132 = vunpack.c.h.b16 %v2104
        %v2133 = vunpack.c.l.b16 %v2105
        %v2134 = vunpack.c.h.b16 %v2105
        %v2135 = vunpack.c.l.b16 %v2106
        %v2136 = vunpack.c.h.b16 %v2106
        %v2137 = vunpack.c.l.b16 %v2107
        %v2138 = vunpack.c.h.b16 %v2107
        %v2139 = vpack.c.b16 %v2125, %v2123
        %v2140 = vpack.c.b16 %v2126, %v2124
        %v2141 = vpack.c.b16 %v2129, %v2127
        %v2142 = vpack.c.b16 %v2130, %v2128
        %v2143 = vpack.c.b16 %v2133, %v2131
        %v2144 = vpack.c.b16 %v2134, %v2132
        %v2145 = vpack.c.b16 %v2137, %v2135
        %v2146 = vpack.c.b16 %v2138, %v2136
        %v2156 = vsel %vm1437, %v2108, 0
        %2158 = vmatpush.bf16.msra.mxu0 0
        %2159 = vmatpush.bf16.msra.mxu0 0
        %2160 = vmatpush.bf16.msra.mxu0 0
        %2161 = vmatpush.bf16.msra.mxu0 0
        %2162 = vmatpush.bf16.msra.mxu0 %v2145
        %2163 = vmatpush.bf16.msra.mxu0 %v2143
        %2164 = vmatpush.bf16.msra.mxu0 %v2141
        %2165 = vmatpush.bf16.msra.mxu0 %v2139
        %2166 = vmatmul.bf16.gmra.mxu0 %v2156
        %v2167 = vpop.f32.mrf.mxu0
        %v2168 = vadd.f32 %v2111, %v2167
        %v2169 = vpop.f32.mrf.mxu0
        %v2170 = vadd.f32 %v2111, %v2169
        %2171 = vdwg.mxu0
        %2172 = vmatpush.bf16.msra.mxu0 0
        %2173 = vmatpush.bf16.msra.mxu0 0
        %2174 = vmatpush.bf16.msra.mxu0 0
        %2175 = vmatpush.bf16.msra.mxu0 0
        %2176 = vmatpush.bf16.msra.mxu0 %v2146
        %2177 = vmatpush.bf16.msra.mxu0 %v2144
        %2178 = vmatpush.bf16.msra.mxu0 %v2142
        %2179 = vmatpush.bf16.msra.mxu0 %v2140
        %2180 = vmatmul.bf16.gmra.mxu0 %v2156
        %v2181 = vpop.f32.mrf.mxu0
        %v2182 = vadd.f32 %v2112, %v2181
        %v2183 = vpop.f32.mrf.mxu0
        %v2184 = vadd.f32 %v2112, %v2183
        %2185 = vdwg.mxu0
        %v2186 = vmul.f32 %v2168, 0.5
        %v2187 = vmul.f32 %v2182, 0.5
        %v2188 = vmul.f32 %v2170, 0.5
        %v2189 = vmul.f32 %v2184, 0.5
        %v2190 = vmul.f32 %v2168, 0.044715
        %v2191 = vmul.f32 %v2182, 0.044715
        %v2192 = vmul.f32 %v2170, 0.044715
        %v2193 = vmul.f32 %v2184, 0.044715
        %v2194 = vmul.f32 %v2190, %v2168
        %v2195 = vmul.f32 %v2191, %v2182
        %v2196 = vmul.f32 %v2192, %v2170
        %v2197 = vmul.f32 %v2193, %v2184
        %v2198 = vmul.f32 %v2194, %v2168
        %v2199 = vmul.f32 %v2195, %v2182
        %v2200 = vmul.f32 %v2196, %v2170
        %v2201 = vmul.f32 %v2197, %v2184
        %v2202 = vadd.f32 %v2168, %v2198
        %v2203 = vadd.f32 %v2182, %v2199
        %v2204 = vadd.f32 %v2170, %v2200
        %v2205 = vadd.f32 %v2184, %v2201
        %v2206 = vmul.f32 %v2202, 0.7978846
        %v2207 = vmul.f32 %v2203, 0.7978846
        %v2208 = vmul.f32 %v2204, 0.7978846
        %v2209 = vmul.f32 %v2205, 0.7978846
        %v2210 = vtanh.pop %v2206
        %v2211 = vtanh.pop %v2207
        %v2212 = vtanh.pop %v2208
        %v2213 = vtanh.pop %v2209
        %v2214 = vadd.f32 %v2210, 1.0
        %v2215 = vadd.f32 %v2211, 1.0
        %v2216 = vadd.f32 %v2212, 1.0
        %v2217 = vadd.f32 %v2213, 1.0
        %v2218 = vmul.f32 %v2186, %v2214
        %v2219 = vmul.f32 %v2187, %v2215
        %v2220 = vmul.f32 %v2188, %v2216
        %v2221 = vmul.f32 %v2189, %v2217
        %v2222 = vld [vmem:[%s31] sm:$0xf]
        %v2223 = vld [vmem:[%s31 + $0x4] sm:$0xf]
        %v2224 = vld [vmem:[%s31 + $0x8] sm:$0xf]
        %v2225 = vld [vmem:[%s31 + $0xc] sm:$0xf]
        %v2226 = vld [vmem:[%s31 + $0x10] sm:$0xf]
        %v2227 = vld [vmem:[%s31 + $0x14] sm:$0xf]
        %v2228 = vld [vmem:[%s31 + $0x18] sm:$0xf]
        %v2229 = vld [vmem:[%s31 + $0x1c] sm:$0xf]
        %v2230 = vld [vmem:[%s31 + $0x20] sm:$0xf]
        %v2231 = vld [vmem:[%s31 + $0x24] sm:$0xf]
        %v2232 = vld [vmem:[%s31 + $0x28] sm:$0xf]
        %v2233 = vld [vmem:[%s31 + $0x2c] sm:$0xf]
        %v2234 = vld [vmem:[%s31 + $0x30] sm:$0xf]
        %v2235 = vld [vmem:[%s31 + $0x34] sm:$0xf]
        %v2236 = vld [vmem:[%s31 + $0x38] sm:$0xf]
        %v2237 = vld [vmem:[%s31 + $0x3c] sm:$0xf]
        %v2238 = vld [vmem:[%s31 + $0x40] sm:$0xf]
        %v2239 = vld [vmem:[%s31 + $0x44] sm:$0xf]
        %v2240 = vld [vmem:[%s31 + $0x48] sm:$0xf]
        %v2241 = vld [vmem:[%s31 + $0x4c] sm:$0xf]
        %v2242 = vld [vmem:[%s31 + $0x50] sm:$0xf]
        %v2243 = vld [vmem:[%s31 + $0x54] sm:$0xf]
        %v2244 = vld [vmem:[%s31 + $0x58] sm:$0xf]
        %v2245 = vld [vmem:[%s31 + $0x5c] sm:$0xf]
        %v2246 = vld [vmem:[%s31 + $0x60] sm:$0xf]
        %v2247 = vld [vmem:[%s31 + $0x64] sm:$0xf]
        %v2248 = vld [vmem:[%s31 + $0x68] sm:$0xf]
        %v2249 = vld [vmem:[%s31 + $0x6c] sm:$0xf]
        %v2250 = vld [vmem:[%s31 + $0x70] sm:$0xf]
        %v2251 = vld [vmem:[%s31 + $0x74] sm:$0xf]
        %v2252 = vld [vmem:[%s31 + $0x78] sm:$0xf]
        %v2253 = vld [vmem:[%s31 + $0x7c] sm:$0xf]
        %v2254 = vpack.c.bf16 %v2220, %v2218
        %v2255 = vpack.c.bf16 %v2221, %v2219
        %v2256 = vld [vmem:[%s33] sm:$0x1]
        %v2258 = vperm.slane %v2256, 0
        %v2292 = vunpack.c.l.b16 %v2222
        %v2293 = vunpack.c.l.b16 %v2223
        %v2294 = vunpack.c.l.b16 %v2224
        %v2295 = vunpack.c.l.b16 %v2225
        %v2296 = vunpack.c.l.b16 %v2226
        %v2297 = vunpack.c.l.b16 %v2227
        %v2298 = vunpack.c.l.b16 %v2228
        %v2299 = vunpack.c.l.b16 %v2229
        %v2300 = vunpack.c.l.b16 %v2230
        %v2301 = vunpack.c.l.b16 %v2231
        %v2302 = vunpack.c.l.b16 %v2232
        %v2303 = vunpack.c.l.b16 %v2233
        %v2304 = vunpack.c.l.b16 %v2234
        %v2305 = vunpack.c.l.b16 %v2235
        %v2306 = vunpack.c.l.b16 %v2236
        %v2307 = vunpack.c.l.b16 %v2237
        %v2308 = vunpack.c.l.b16 %v2238
        %v2309 = vunpack.c.l.b16 %v2239
        %v2310 = vunpack.c.l.b16 %v2240
        %v2311 = vunpack.c.l.b16 %v2241
        %v2312 = vunpack.c.l.b16 %v2242
        %v2313 = vunpack.c.l.b16 %v2243
        %v2314 = vunpack.c.l.b16 %v2244
        %v2315 = vunpack.c.l.b16 %v2245
        %v2316 = vunpack.c.l.b16 %v2246
        %v2317 = vunpack.c.l.b16 %v2247
        %v2318 = vunpack.c.l.b16 %v2248
        %v2319 = vunpack.c.l.b16 %v2249
        %v2320 = vunpack.c.l.b16 %v2250
        %v2321 = vunpack.c.l.b16 %v2251
        %v2322 = vunpack.c.l.b16 %v2252
        %v2323 = vunpack.c.l.b16 %v2253
        %v2324 = vpack.c.b16 %v2293, %v2292
        %v2325 = vpack.c.b16 %v2295, %v2294
        %v2326 = vpack.c.b16 %v2297, %v2296
        %v2327 = vpack.c.b16 %v2299, %v2298
        %v2328 = vpack.c.b16 %v2301, %v2300
        %v2329 = vpack.c.b16 %v2303, %v2302
        %v2330 = vpack.c.b16 %v2305, %v2304
        %v2331 = vpack.c.b16 %v2307, %v2306
        %v2332 = vpack.c.b16 %v2309, %v2308
        %v2333 = vpack.c.b16 %v2311, %v2310
        %v2334 = vpack.c.b16 %v2313, %v2312
        %v2335 = vpack.c.b16 %v2315, %v2314
        %v2336 = vpack.c.b16 %v2317, %v2316
        %v2337 = vpack.c.b16 %v2319, %v2318
        %v2338 = vpack.c.b16 %v2321, %v2320
        %v2339 = vpack.c.b16 %v2323, %v2322
        %2356 = vmatpush.bf16.msra.mxu0 %v2331
        %2357 = vmatpush.bf16.msra.mxu0 %v2330
        %2358 = vmatpush.bf16.msra.mxu0 %v2329
        %2359 = vmatpush.bf16.msra.mxu0 %v2328
        %2360 = vmatpush.bf16.msra.mxu0 %v2327
        %2361 = vmatpush.bf16.msra.mxu0 %v2326
        %2362 = vmatpush.bf16.msra.mxu0 %v2325
        %2363 = vmatpush.bf16.msra.mxu0 %v2324
        %2364 = vmatmul.bf16.gmra.mxu0 %v2254
        %v2365 = vpop.f32.mrf.mxu0
        %v2366 = vadd.f32 %v2258, %v2365
        %v2367 = vpop.f32.mrf.mxu0
        %v2368 = vadd.f32 %v2258, %v2367
        %2369 = vdwg.mxu0
        %2370 = vmatpush.bf16.msra.mxu0 %v2339
        %2371 = vmatpush.bf16.msra.mxu0 %v2338
        %2372 = vmatpush.bf16.msra.mxu0 %v2337
        %2373 = vmatpush.bf16.msra.mxu0 %v2336
        %2374 = vmatpush.bf16.msra.mxu0 %v2335
        %2375 = vmatpush.bf16.msra.mxu0 %v2334
        %2376 = vmatpush.bf16.msra.mxu0 %v2333
        %2377 = vmatpush.bf16.msra.mxu0 %v2332
        %2378 = vmatmul.bf16.gmra.mxu0 %v2255
        %v2379 = vpop.f32.mrf.mxu0
        %v2380 = vadd.f32 %v2366, %v2379
        %v2381 = vpop.f32.mrf.mxu0
        %v2382 = vadd.f32 %v2368, %v2381
        %2383 = vdwg.mxu0
        %v2384 = vadd.f32 %v2380, %v2098
        %v2385 = vadd.f32 %v2382, %v2099
        %v2386 = vld [vmem:[%s35] sm:$0x1]
        %v2387 = vld [vmem:[%s37] sm:$0x1]
        %v2388 = vsel %vm1437, %v2384, 0.0
        %2389 = vadd.xlane.f32.xlu0 %v2388
        %v2390 = vpop.xlane.xlu0 %2389
        %v2391 = vsel %vm1437, %v2385, 0.0
        %2392 = vadd.xlane.f32.xlu0 %v2391
        %v2393 = vpop.xlane.xlu0 %2392
        %v2394 = vmul.f32 %v2390, %v1447
        %v2395 = vmul.f32 %v2393, %v1447
        %v2396 = vsub.f32 %v2384, %v2394
        %v2397 = vsub.f32 %v2385, %v2395
        %v2398 = vmul.f32 %v2396, %v2396
        %v2399 = vmul.f32 %v2397, %v2397
        %v2400 = vsel %vm1437, %v2398, 0.0
        %2401 = vadd.xlane.f32.xlu0 %v2400
        %v2402 = vpop.xlane.xlu0 %2401
        %v2403 = vsel %vm1437, %v2399, 0.0
        %2404 = vadd.xlane.f32.xlu0 %v2403
        %v2405 = vpop.xlane.xlu0 %2404
        %v2406 = vmul.f32 %v2402, %v1447
        %v2407 = vmul.f32 %v2405, %v1447
        %v2408 = vadd.f32 %v2406, 1e-12
        %v2409 = vadd.f32 %v2407, 1e-12
        %v2410 = vrsqrt.pop %v2408
        %v2411 = vmul.f32 %v2410, %v2408
        %v2412 = vmul.f32 %v2411, %v2410
        %v2413 = vmul.f32 0.5, %v2412
        %v2414 = vsub.f32 1.5, %v2413
        %v2415 = vmul.f32 %v2410, %v2414
        %vm2416 = vweird.f32 %v2408
        %vm2417 = vweird.f32 %v2410
        %vm2418 = vmor %vm2416, %vm2417
        %v2419 = vsel %vm2418, %v2410, %v2415
        %v2420 = vrsqrt.pop %v2409
        %v2421 = vmul.f32 %v2420, %v2409
        %v2422 = vmul.f32 %v2421, %v2420
        %v2423 = vmul.f32 0.5, %v2422
        %v2424 = vsub.f32 1.5, %v2423
        %v2425 = vmul.f32 %v2420, %v2424
        %vm2426 = vweird.f32 %v2409
        %vm2427 = vweird.f32 %v2420
        %vm2428 = vmor %vm2426, %vm2427
        %v2429 = vsel %vm2428, %v2420, %v2425
        %v2430 = vmul.f32 %v2396, %v2419
        %v2431 = vmul.f32 %v2397, %v2429
        %v2433 = vperm.slane %v2386, 0
        %v2435 = vmul.f32 %v2430, %v2433
        %v2436 = vmul.f32 %v2431, %v2433
        %v2438 = vperm.slane %v2387, 0
        %v2440 = vadd.f32 %v2435, %v2438
        %v2441 = vadd.f32 %v2436, %v2438
        %s2442 = scalar_lea.vmem %s15, 64
        %v2443 = vld [vmem:[%s2442] sm:$0xff]
        %v2444 = vld [vmem:[%s2442 + $0x8] sm:$0xff]
        %v2445 = vld [vmem:[%s2442 + $0x10] sm:$0xff]
        %v2446 = vld [vmem:[%s2442 + $0x18] sm:$0xff]
        %v2447 = vld [vmem:[%s2442 + $0x20] sm:$0xff]
        %v2448 = vld [vmem:[%s2442 + $0x28] sm:$0xff]
        %v2449 = vld [vmem:[%s2442 + $0x30] sm:$0xff]
        %v2450 = vld [vmem:[%s2442 + $0x38] sm:$0xff]
        %v2451 = vpack.c.bf16 %v2441, %v2440
        %s2452 = scalar_lea.vmem %s17, 2
        %v2453 = vld [vmem:[%s2452] sm:$0x3]
        %v2455 = vperm.slane %v2453, 0
        %v2456 = vperm.slane %v2453, 1
        %v2467 = vunpack.c.l.b16 %v2443
        %v2468 = vunpack.c.h.b16 %v2443
        %v2469 = vunpack.c.l.b16 %v2444
        %v2470 = vunpack.c.h.b16 %v2444
        %v2471 = vunpack.c.l.b16 %v2445
        %v2472 = vunpack.c.h.b16 %v2445
        %v2473 = vunpack.c.l.b16 %v2446
        %v2474 = vunpack.c.h.b16 %v2446
        %v2475 = vunpack.c.l.b16 %v2447
        %v2476 = vunpack.c.h.b16 %v2447
        %v2477 = vunpack.c.l.b16 %v2448
        %v2478 = vunpack.c.h.b16 %v2448
        %v2479 = vunpack.c.l.b16 %v2449
        %v2480 = vunpack.c.h.b16 %v2449
        %v2481 = vunpack.c.l.b16 %v2450
        %v2482 = vunpack.c.h.b16 %v2450
        %v2483 = vpack.c.b16 %v2469, %v2467
        %v2484 = vpack.c.b16 %v2470, %v2468
        %v2485 = vpack.c.b16 %v2473, %v2471
        %v2486 = vpack.c.b16 %v2474, %v2472
        %v2487 = vpack.c.b16 %v2477, %v2475
        %v2488 = vpack.c.b16 %v2478, %v2476
        %v2489 = vpack.c.b16 %v2481, %v2479
        %v2490 = vpack.c.b16 %v2482, %v2480
        %v2500 = vsel %vm1437, %v2451, 0
        %2502 = vmatpush.bf16.msra.mxu0 0
        %2503 = vmatpush.bf16.msra.mxu0 0
        %2504 = vmatpush.bf16.msra.mxu0 0
        %2505 = vmatpush.bf16.msra.mxu0 0
        %2506 = vmatpush.bf16.msra.mxu0 %v2489
        %2507 = vmatpush.bf16.msra.mxu0 %v2487
        %2508 = vmatpush.bf16.msra.mxu0 %v2485
        %2509 = vmatpush.bf16.msra.mxu0 %v2483
        %2510 = vmatmul.bf16.gmra.mxu0 %v2500
        %v2511 = vpop.f32.mrf.mxu0
        %v2512 = vadd.f32 %v2455, %v2511
        %v2513 = vpop.f32.mrf.mxu0
        %v2514 = vadd.f32 %v2455, %v2513
        %2515 = vdwg.mxu0
        %2516 = vmatpush.bf16.msra.mxu0 0
        %2517 = vmatpush.bf16.msra.mxu0 0
        %2518 = vmatpush.bf16.msra.mxu0 0
        %2519 = vmatpush.bf16.msra.mxu0 0
        %2520 = vmatpush.bf16.msra.mxu0 %v2490
        %2521 = vmatpush.bf16.msra.mxu0 %v2488
        %2522 = vmatpush.bf16.msra.mxu0 %v2486
        %2523 = vmatpush.bf16.msra.mxu0 %v2484
        %2524 = vmatmul.bf16.gmra.mxu0 %v2500
        %v2525 = vpop.f32.mrf.mxu0
        %v2526 = vadd.f32 %v2456, %v2525
        %v2527 = vpop.f32.mrf.mxu0
        %v2528 = vadd.f32 %v2456, %v2527
        %2529 = vdwg.mxu0
        %v2530 = vpack.c.bf16 %v2514, %v2512
        %2532 = vrot.lane.b32.xlu0 %v2530, 64
        %v2533 = vpop.permute.xlu0 %2532
        %v2535 = vsel %vm1673, %v2530, 0
        %v2538 = vsel %vm1673, %v2533, 0
        %2540 = vmatpush.bf16.xpose.msra.mxu0 0
        %2541 = vmatpush.bf16.xpose.msra.mxu0 0
        %2542 = vmatpush.bf16.xpose.msra.mxu0 0
        %2543 = vmatpush.bf16.xpose.msra.mxu0 0
        %2544 = vmatpush.bf16.xpose.msra.mxu0 0
        %2545 = vmatpush.bf16.xpose.msra.mxu0 0
        %2546 = vmatpush.bf16.xpose.msra.mxu0 0
        %2547 = vmatpush.bf16.xpose.msra.mxu0 %v2538
        %2548 = vmatmul.bf16.gmra.mxu0 %v2535
        %v2549 = vpop.f32.mrf.mxu0
        %v2550 = vadd.f32 0.0, %v2549
        %v2551 = vpop.f32.mrf.mxu0
        %v2552 = vadd.f32 0.0, %v2551
        %2553 = vdwg.mxu0
        %v2554 = vmul.f32 %v2550, 0.25
        %v2555 = vmul.f32 %v2552, 0.25
        %v2556 = vadd.f32 %v2554, %v1697
        %v2557 = vadd.f32 %v2555, %v1697
        %v2558 = vsel %vm1673, %v2556, -inf
        %2559 = vmax.xlane.f32.xlu0 %v2558
        %v2560 = vpop.xlane.xlu0 %2559
        %v2561 = vsel %vm1673, %v2557, -inf
        %2562 = vmax.xlane.f32.xlu0 %v2561
        %v2563 = vpop.xlane.xlu0 %2562
        %v2564 = vsub.f32 %v2556, %v2560
        %v2565 = vsub.f32 %v2557, %v2563
        %v2566 = vmul.f32 %v2564, 1.442695
        %v2567 = vpow.pop %v2566
        %v2568 = vmul.f32 %v2565, 1.442695
        %v2569 = vpow.pop %v2568
        %v2570 = vsel %vm1673, %v2567, 0.0
        %2571 = vadd.xlane.f32.xlu0 %v2570
        %v2572 = vpop.xlane.xlu0 %2571
        %v2573 = vsel %vm1673, %v2569, 0.0
        %2574 = vadd.xlane.f32.xlu0 %v2573
        %v2575 = vpop.xlane.xlu0 %2574
        %v2576 = vrcp.pop %v2572
        %v2577 = vrcp.pop %v2575
        %v2578 = vmul.f32 %v2567, %v2576
        %v2579 = vmul.f32 %v2569, %v2577
        %v2580 = vpack.c.bf16 %v2528, %v2526
        %v2581 = vpack.c.bf16 %v2579, %v2578
        %v2583 = vsel %vm1673, %v2581, 0
        %2585 = vmatpush.bf16.msra.mxu0 0
        %2586 = vmatpush.bf16.msra.mxu0 0
        %2587 = vmatpush.bf16.msra.mxu0 0
        %2588 = vmatpush.bf16.msra.mxu0 0
        %2589 = vmatpush.bf16.msra.mxu0 0
        %2590 = vmatpush.bf16.msra.mxu0 0
        %2591 = vmatpush.bf16.msra.mxu0 0
        %2592 = vmatpush.bf16.msra.mxu0 %v2580
        %2593 = vmatmul.bf16.gmra.mxu0 %v2583
        %v2594 = vpop.f32.mrf.mxu0
        %v2595 = vadd.f32 0.0, %v2594
        %v2596 = vpop.f32.mrf.mxu0
        %v2597 = vadd.f32 0.0, %v2596
        %2598 = vdwg.mxu0
        %2599 = vrot.lane.b32.xlu0 %v2530, 112
        %v2600 = vpop.permute.xlu0 %2599
        %2601 = vrot.lane.b32.xlu0 %v2530, 48
        %v2602 = vpop.permute.xlu0 %2601
        %v2604 = vsel %vm1673, %v2600, 0
        %v2607 = vsel %vm1673, %v2602, 0
        %2609 = vmatpush.bf16.xpose.msra.mxu0 0
        %2610 = vmatpush.bf16.xpose.msra.mxu0 0
        %2611 = vmatpush.bf16.xpose.msra.mxu0 0
        %2612 = vmatpush.bf16.xpose.msra.mxu0 0
        %2613 = vmatpush.bf16.xpose.msra.mxu0 0
        %2614 = vmatpush.bf16.xpose.msra.mxu0 0
        %2615 = vmatpush.bf16.xpose.msra.mxu0 0
        %2616 = vmatpush.bf16.xpose.msra.mxu0 %v2607
        %2617 = vmatmul.bf16.gmra.mxu0 %v2604
        %v2618 = vpop.f32.mrf.mxu0
        %v2619 = vadd.f32 0.0, %v2618
        %v2620 = vpop.f32.mrf.mxu0
        %v2621 = vadd.f32 0.0, %v2620
        %2622 = vdwg.mxu0
        %v2623 = vmul.f32 %v2619, 0.25
        %v2624 = vmul.f32 %v2621, 0.25
        %v2625 = vadd.f32 %v2623, %v1697
        %v2626 = vadd.f32 %v2624, %v1697
        %v2627 = vsel %vm1673, %v2625, -inf
        %2628 = vmax.xlane.f32.xlu0 %v2627
        %v2629 = vpop.xlane.xlu0 %2628
        %v2630 = vsel %vm1673, %v2626, -inf
        %2631 = vmax.xlane.f32.xlu0 %v2630
        %v2632 = vpop.xlane.xlu0 %2631
        %v2633 = vsub.f32 %v2625, %v2629
        %v2634 = vsub.f32 %v2626, %v2632
        %v2635 = vmul.f32 %v2633, 1.442695
        %v2636 = vpow.pop %v2635
        %v2637 = vmul.f32 %v2634, 1.442695
        %v2638 = vpow.pop %v2637
        %v2639 = vsel %vm1673, %v2636, 0.0
        %2640 = vadd.xlane.f32.xlu0 %v2639
        %v2641 = vpop.xlane.xlu0 %2640
        %v2642 = vsel %vm1673, %v2638, 0.0
        %2643 = vadd.xlane.f32.xlu0 %v2642
        %v2644 = vpop.xlane.xlu0 %2643
        %v2645 = vrcp.pop %v2641
        %v2646 = vrcp.pop %v2644
        %v2647 = vmul.f32 %v2636, %v2645
        %v2648 = vmul.f32 %v2638, %v2646
        %v2649 = vpack.c.bf16 %v2648, %v2647
        %2651 = vrot.lane.b32.xlu0 %v2580, 112
        %v2652 = vpop.permute.xlu0 %2651
        %v2655 = vsel %vm1673, %v2649, 0
        %2657 = vmatpush.bf16.msra.mxu0 0
        %2658 = vmatpush.bf16.msra.mxu0 0
        %2659 = vmatpush.bf16.msra.mxu0 0
        %2660 = vmatpush.bf16.msra.mxu0 0
        %2661 = vmatpush.bf16.msra.mxu0 0
        %2662 = vmatpush.bf16.msra.mxu0 0
        %2663 = vmatpush.bf16.msra.mxu0 0
        %2664 = vmatpush.bf16.msra.mxu0 %v2652
        %2665 = vmatmul.bf16.gmra.mxu0 %v2655
        %v2666 = vpop.f32.mrf.mxu0
        %v2667 = vadd.f32 0.0, %v2666
        %v2668 = vpop.f32.mrf.mxu0
        %v2669 = vadd.f32 0.0, %v2668
        %2670 = vdwg.mxu0
        %2671 = vrot.lane.b32.xlu0 %v2530, 96
        %v2672 = vpop.permute.xlu0 %2671
        %2673 = vrot.lane.b32.xlu0 %v2530, 32
        %v2674 = vpop.permute.xlu0 %2673
        %v2676 = vsel %vm1673, %v2672, 0
        %v2679 = vsel %vm1673, %v2674, 0
        %2681 = vmatpush.bf16.xpose.msra.mxu0 0
        %2682 = vmatpush.bf16.xpose.msra.mxu0 0
        %2683 = vmatpush.bf16.xpose.msra.mxu0 0
        %2684 = vmatpush.bf16.xpose.msra.mxu0 0
        %2685 = vmatpush.bf16.xpose.msra.mxu0 0
        %2686 = vmatpush.bf16.xpose.msra.mxu0 0
        %2687 = vmatpush.bf16.xpose.msra.mxu0 0
        %2688 = vmatpush.bf16.xpose.msra.mxu0 %v2679
        %2689 = vmatmul.bf16.gmra.mxu0 %v2676
        %v2690 = vpop.f32.mrf.mxu0
        %v2691 = vadd.f32 0.0, %v2690
        %v2692 = vpop.f32.mrf.mxu0
        %v2693 = vadd.f32 0.0, %v2692
        %2694 = vdwg.mxu0
        %v2695 = vmul.f32 %v2691, 0.25
        %v2696 = vmul.f32 %v2693, 0.25
        %v2697 = vadd.f32 %v2695, %v1697
        %v2698 = vadd.f32 %v2696, %v1697
        %v2699 = vsel %vm1673, %v2697, -inf
        %2700 = vmax.xlane.f32.xlu0 %v2699
        %v2701 = vpop.xlane.xlu0 %2700
        %v2702 = vsel %vm1673, %v2698, -inf
        %2703 = vmax.xlane.f32.xlu0 %v2702
        %v2704 = vpop.xlane.xlu0 %2703
        %v2705 = vsub.f32 %v2697, %v2701
        %v2706 = vsub.f32 %v2698, %v2704
        %v2707 = vmul.f32 %v2705, 1.442695
        %v2708 = vpow.pop %v2707
        %v2709 = vmul.f32 %v2706, 1.442695
        %v2710 = vpow.pop %v2709
        %v2711 = vsel %vm1673, %v2708, 0.0
        %2712 = vadd.xlane.f32.xlu0 %v2711
        %v2713 = vpop.xlane.xlu0 %2712
        %v2714 = vsel %vm1673, %v2710, 0.0
        %2715 = vadd.xlane.f32.xlu0 %v2714
        %v2716 = vpop.xlane.xlu0 %2715
        %v2717 = vrcp.pop %v2713
        %v2718 = vrcp.pop %v2716
        %v2719 = vmul.f32 %v2708, %v2717
        %v2720 = vmul.f32 %v2710, %v2718
        %v2721 = vpack.c.bf16 %v2720, %v2719
        %2722 = vrot.lane.b32.xlu0 %v2580, 96
        %v2723 = vpop.permute.xlu0 %2722
        %v2726 = vsel %vm1673, %v2721, 0
        %2728 = vmatpush.bf16.msra.mxu0 0
        %2729 = vmatpush.bf16.msra.mxu0 0
        %2730 = vmatpush.bf16.msra.mxu0 0
        %2731 = vmatpush.bf16.msra.mxu0 0
        %2732 = vmatpush.bf16.msra.mxu0 0
        %2733 = vmatpush.bf16.msra.mxu0 0
        %2734 = vmatpush.bf16.msra.mxu0 0
        %2735 = vmatpush.bf16.msra.mxu0 %v2723
        %2736 = vmatmul.bf16.gmra.mxu0 %v2726
        %v2737 = vpop.f32.mrf.mxu0
        %v2738 = vadd.f32 0.0, %v2737
        %v2739 = vpop.f32.mrf.mxu0
        %v2740 = vadd.f32 0.0, %v2739
        %2741 = vdwg.mxu0
        %2742 = vrot.lane.b32.xlu0 %v2530, 80
        %v2743 = vpop.permute.xlu0 %2742
        %2744 = vrot.lane.b32.xlu0 %v2530, 16
        %v2745 = vpop.permute.xlu0 %2744
        %v2747 = vsel %vm1673, %v2743, 0
        %v2750 = vsel %vm1673, %v2745, 0
        %2752 = vmatpush.bf16.xpose.msra.mxu0 0
        %2753 = vmatpush.bf16.xpose.msra.mxu0 0
        %2754 = vmatpush.bf16.xpose.msra.mxu0 0
        %2755 = vmatpush.bf16.xpose.msra.mxu0 0
        %2756 = vmatpush.bf16.xpose.msra.mxu0 0
        %2757 = vmatpush.bf16.xpose.msra.mxu0 0
        %2758 = vmatpush.bf16.xpose.msra.mxu0 0
        %2759 = vmatpush.bf16.xpose.msra.mxu0 %v2750
        %2760 = vmatmul.bf16.gmra.mxu0 %v2747
        %v2761 = vpop.f32.mrf.mxu0
        %v2762 = vadd.f32 0.0, %v2761
        %v2763 = vpop.f32.mrf.mxu0
        %v2764 = vadd.f32 0.0, %v2763
        %2765 = vdwg.mxu0
        %v2766 = vmul.f32 %v2762, 0.25
        %v2767 = vmul.f32 %v2764, 0.25
        %v2768 = vadd.f32 %v2766, %v1697
        %v2769 = vadd.f32 %v2767, %v1697
        %v2770 = vsel %vm1673, %v2768, -inf
        %2771 = vmax.xlane.f32.xlu0 %v2770
        %v2772 = vpop.xlane.xlu0 %2771
        %v2773 = vsel %vm1673, %v2769, -inf
        %2774 = vmax.xlane.f32.xlu0 %v2773
        %v2775 = vpop.xlane.xlu0 %2774
        %v2776 = vsub.f32 %v2768, %v2772
        %v2777 = vsub.f32 %v2769, %v2775
        %v2778 = vmul.f32 %v2776, 1.442695
        %v2779 = vpow.pop %v2778
        %v2780 = vmul.f32 %v2777, 1.442695
        %v2781 = vpow.pop %v2780
        %v2782 = vsel %vm1673, %v2779, 0.0
        %2783 = vadd.xlane.f32.xlu0 %v2782
        %v2784 = vpop.xlane.xlu0 %2783
        %v2785 = vsel %vm1673, %v2781, 0.0
        %2786 = vadd.xlane.f32.xlu0 %v2785
        %v2787 = vpop.xlane.xlu0 %2786
        %v2788 = vrcp.pop %v2784
        %v2789 = vrcp.pop %v2787
        %v2790 = vmul.f32 %v2779, %v2788
        %v2791 = vmul.f32 %v2781, %v2789
        %v2792 = vpack.c.bf16 %v2791, %v2790
        %2793 = vrot.lane.b32.xlu0 %v2580, 80
        %v2794 = vpop.permute.xlu0 %2793
        %v2797 = vsel %vm1673, %v2792, 0
        %2799 = vmatpush.bf16.msra.mxu0 0
        %2800 = vmatpush.bf16.msra.mxu0 0
        %2801 = vmatpush.bf16.msra.mxu0 0
        %2802 = vmatpush.bf16.msra.mxu0 0
        %2803 = vmatpush.bf16.msra.mxu0 0
        %2804 = vmatpush.bf16.msra.mxu0 0
        %2805 = vmatpush.bf16.msra.mxu0 0
        %2806 = vmatpush.bf16.msra.mxu0 %v2794
        %2807 = vmatmul.bf16.gmra.mxu0 %v2797
        %v2808 = vpop.f32.mrf.mxu0
        %v2809 = vadd.f32 0.0, %v2808
        %v2810 = vpop.f32.mrf.mxu0
        %v2811 = vadd.f32 0.0, %v2810
        %2812 = vdwg.mxu0
        %2815 = vrot.lane.b32.xlu0 %v2667, 16
        %v2816 = vpop.permute.xlu0 %2815
        %2817 = vrot.lane.b32.xlu0 %v2669, 16
        %v2818 = vpop.permute.xlu0 %2817
        %2823 = vrot.lane.b32.xlu0 %v2738, 32
        %v2824 = vpop.permute.xlu0 %2823
        %2825 = vrot.lane.b32.xlu0 %v2740, 32
        %v2826 = vpop.permute.xlu0 %2825
        %2831 = vrot.lane.b32.xlu0 %v2809, 48
        %v2832 = vpop.permute.xlu0 %2831
        %2833 = vrot.lane.b32.xlu0 %v2811, 48
        %v2834 = vpop.permute.xlu0 %2833
        %v2837 = vsel %vm1673, %v2595, %v2816
        %v2838 = vsel %vm1673, %v2597, %v2818
        %v2839 = vsel %vm1982, %v2837, %v2824
        %v2840 = vsel %vm1982, %v2838, %v2826
        %v2841 = vsel %vm1985, %v2839, %v2832
        %v2842 = vsel %vm1985, %v2840, %v2834
        %s2843 = scalar_lea.vmem %s19, 32
        %v2844 = vld [vmem:[%s2843] sm:$0xf]
        %v2845 = vld [vmem:[%s2843 + $0x4] sm:$0xf]
        %v2846 = vld [vmem:[%s2843 + $0x8] sm:$0xf]
        %v2847 = vld [vmem:[%s2843 + $0xc] sm:$0xf]
        %v2848 = vld [vmem:[%s2843 + $0x10] sm:$0xf]
        %v2849 = vld [vmem:[%s2843 + $0x14] sm:$0xf]
        %v2850 = vld [vmem:[%s2843 + $0x18] sm:$0xf]
        %v2851 = vld [vmem:[%s2843 + $0x1c] sm:$0xf]
        %v2852 = vpack.c.bf16 %v2842, %v2841
        %s2853 = scalar_lea.vmem %s21, 1
        %v2854 = vld [vmem:[%s2853] sm:$0x1]
        %v2856 = vperm.slane %v2854, 0
        %v2866 = vunpack.c.l.b16 %v2844
        %v2867 = vunpack.c.l.b16 %v2845
        %v2868 = vunpack.c.l.b16 %v2846
        %v2869 = vunpack.c.l.b16 %v2847
        %v2870 = vunpack.c.l.b16 %v2848
        %v2871 = vunpack.c.l.b16 %v2849
        %v2872 = vunpack.c.l.b16 %v2850
        %v2873 = vunpack.c.l.b16 %v2851
        %v2874 = vpack.c.b16 %v2867, %v2866
        %v2875 = vpack.c.b16 %v2869, %v2868
        %v2876 = vpack.c.b16 %v2871, %v2870
        %v2877 = vpack.c.b16 %v2873, %v2872
        %v2883 = vsel %vm1437, %v2852, 0
        %2885 = vmatpush.bf16.msra.mxu0 0
        %2886 = vmatpush.bf16.msra.mxu0 0
        %2887 = vmatpush.bf16.msra.mxu0 0
        %2888 = vmatpush.bf16.msra.mxu0 0
        %2889 = vmatpush.bf16.msra.mxu0 %v2877
        %2890 = vmatpush.bf16.msra.mxu0 %v2876
        %2891 = vmatpush.bf16.msra.mxu0 %v2875
        %2892 = vmatpush.bf16.msra.mxu0 %v2874
        %2893 = vmatmul.bf16.gmra.mxu0 %v2883
        %v2894 = vpop.f32.mrf.mxu0
        %v2895 = vadd.f32 %v2856, %v2894
        %v2896 = vpop.f32.mrf.mxu0
        %v2897 = vadd.f32 %v2856, %v2896
        %2898 = vdwg.mxu0
        %v2899 = vadd.f32 %v2895, %v2440
        %v2900 = vadd.f32 %v2897, %v2441
        %s2901 = scalar_lea.vmem %s23, 1
        %v2902 = vld [vmem:[%s2901] sm:$0x1]
        %s2903 = scalar_lea.vmem %s25, 1
        %v2904 = vld [vmem:[%s2903] sm:$0x1]
        %v2905 = vsel %vm1437, %v2899, 0.0
        %2906 = vadd.xlane.f32.xlu0 %v2905
        %v2907 = vpop.xlane.xlu0 %2906
        %v2908 = vsel %vm1437, %v2900, 0.0
        %2909 = vadd.xlane.f32.xlu0 %v2908
        %v2910 = vpop.xlane.xlu0 %2909
        %v2911 = vmul.f32 %v2907, %v1447
        %v2912 = vmul.f32 %v2910, %v1447
        %v2913 = vsub.f32 %v2899, %v2911
        %v2914 = vsub.f32 %v2900, %v2912
        %v2915 = vmul.f32 %v2913, %v2913
        %v2916 = vmul.f32 %v2914, %v2914
        %v2917 = vsel %vm1437, %v2915, 0.0
        %2918 = vadd.xlane.f32.xlu0 %v2917
        %v2919 = vpop.xlane.xlu0 %2918
        %v2920 = vsel %vm1437, %v2916, 0.0
        %2921 = vadd.xlane.f32.xlu0 %v2920
        %v2922 = vpop.xlane.xlu0 %2921
        %v2923 = vmul.f32 %v2919, %v1447
        %v2924 = vmul.f32 %v2922, %v1447
        %v2925 = vadd.f32 %v2923, 1e-12
        %v2926 = vadd.f32 %v2924, 1e-12
        %v2927 = vrsqrt.pop %v2925
        %v2928 = vmul.f32 %v2927, %v2925
        %v2929 = vmul.f32 %v2928, %v2927
        %v2930 = vmul.f32 0.5, %v2929
        %v2931 = vsub.f32 1.5, %v2930
        %v2932 = vmul.f32 %v2927, %v2931
        %vm2933 = vweird.f32 %v2925
        %vm2934 = vweird.f32 %v2927
        %vm2935 = vmor %vm2933, %vm2934
        %v2936 = vsel %vm2935, %v2927, %v2932
        %v2937 = vrsqrt.pop %v2926
        %v2938 = vmul.f32 %v2937, %v2926
        %v2939 = vmul.f32 %v2938, %v2937
        %v2940 = vmul.f32 0.5, %v2939
        %v2941 = vsub.f32 1.5, %v2940
        %v2942 = vmul.f32 %v2937, %v2941
        %vm2943 = vweird.f32 %v2926
        %vm2944 = vweird.f32 %v2937
        %vm2945 = vmor %vm2943, %vm2944
        %v2946 = vsel %vm2945, %v2937, %v2942
        %v2947 = vmul.f32 %v2913, %v2936
        %v2948 = vmul.f32 %v2914, %v2946
        %v2950 = vperm.slane %v2902, 0
        %v2952 = vmul.f32 %v2947, %v2950
        %v2953 = vmul.f32 %v2948, %v2950
        %v2955 = vperm.slane %v2904, 0
        %v2957 = vadd.f32 %v2952, %v2955
        %v2958 = vadd.f32 %v2953, %v2955
        %s2959 = scalar_lea.vmem %s27, 64
        %v2960 = vld [vmem:[%s2959] sm:$0xff]
        %v2961 = vld [vmem:[%s2959 + $0x8] sm:$0xff]
        %v2962 = vld [vmem:[%s2959 + $0x10] sm:$0xff]
        %v2963 = vld [vmem:[%s2959 + $0x18] sm:$0xff]
        %v2964 = vld [vmem:[%s2959 + $0x20] sm:$0xff]
        %v2965 = vld [vmem:[%s2959 + $0x28] sm:$0xff]
        %v2966 = vld [vmem:[%s2959 + $0x30] sm:$0xff]
        %v2967 = vld [vmem:[%s2959 + $0x38] sm:$0xff]
        %v2968 = vpack.c.bf16 %v2958, %v2957
        %s2969 = scalar_lea.vmem %s29, 2
        %v2970 = vld [vmem:[%s2969] sm:$0x3]
        %v2972 = vperm.slane %v2970, 0
        %v2973 = vperm.slane %v2970, 1
        %v2984 = vunpack.c.l.b16 %v2960
        %v2985 = vunpack.c.h.b16 %v2960
        %v2986 = vunpack.c.l.b16 %v2961
        %v2987 = vunpack.c.h.b16 %v2961
        %v2988 = vunpack.c.l.b16 %v2962
        %v2989 = vunpack.c.h.b16 %v2962
        %v2990 = vunpack.c.l.b16 %v2963
        %v2991 = vunpack.c.h.b16 %v2963
        %v2992 = vunpack.c.l.b16 %v2964
        %v2993 = vunpack.c.h.b16 %v2964
        %v2994 = vunpack.c.l.b16 %v2965
        %v2995 = vunpack.c.h.b16 %v2965
        %v2996 = vunpack.c.l.b16 %v2966
        %v2997 = vunpack.c.h.b16 %v2966
        %v2998 = vunpack.c.l.b16 %v2967
        %v2999 = vunpack.c.h.b16 %v2967
        %v3000 = vpack.c.b16 %v2986, %v2984
        %v3001 = vpack.c.b16 %v2987, %v2985
        %v3002 = vpack.c.b16 %v2990, %v2988
        %v3003 = vpack.c.b16 %v2991, %v2989
        %v3004 = vpack.c.b16 %v2994, %v2992
        %v3005 = vpack.c.b16 %v2995, %v2993
        %v3006 = vpack.c.b16 %v2998, %v2996
        %v3007 = vpack.c.b16 %v2999, %v2997
        %v3017 = vsel %vm1437, %v2968, 0
        %3019 = vmatpush.bf16.msra.mxu0 0
        %3020 = vmatpush.bf16.msra.mxu0 0
        %3021 = vmatpush.bf16.msra.mxu0 0
        %3022 = vmatpush.bf16.msra.mxu0 0
        %3023 = vmatpush.bf16.msra.mxu0 %v3006
        %3024 = vmatpush.bf16.msra.mxu0 %v3004
        %3025 = vmatpush.bf16.msra.mxu0 %v3002
        %3026 = vmatpush.bf16.msra.mxu0 %v3000
        %3027 = vmatmul.bf16.gmra.mxu0 %v3017
        %v3028 = vpop.f32.mrf.mxu0
        %v3029 = vadd.f32 %v2972, %v3028
        %v3030 = vpop.f32.mrf.mxu0
        %v3031 = vadd.f32 %v2972, %v3030
        %3032 = vdwg.mxu0
        %3033 = vmatpush.bf16.msra.mxu0 0
        %3034 = vmatpush.bf16.msra.mxu0 0
        %3035 = vmatpush.bf16.msra.mxu0 0
        %3036 = vmatpush.bf16.msra.mxu0 0
        %3037 = vmatpush.bf16.msra.mxu0 %v3007
        %3038 = vmatpush.bf16.msra.mxu0 %v3005
        %3039 = vmatpush.bf16.msra.mxu0 %v3003
        %3040 = vmatpush.bf16.msra.mxu0 %v3001
        %3041 = vmatmul.bf16.gmra.mxu0 %v3017
        %v3042 = vpop.f32.mrf.mxu0
        %v3043 = vadd.f32 %v2973, %v3042
        %v3044 = vpop.f32.mrf.mxu0
        %v3045 = vadd.f32 %v2973, %v3044
        %3046 = vdwg.mxu0
        %v3047 = vmul.f32 %v3029, 0.5
        %v3048 = vmul.f32 %v3043, 0.5
        %v3049 = vmul.f32 %v3031, 0.5
        %v3050 = vmul.f32 %v3045, 0.5
        %v3051 = vmul.f32 %v3029, 0.044715
        %v3052 = vmul.f32 %v3043, 0.044715
        %v3053 = vmul.f32 %v3031, 0.044715
        %v3054 = vmul.f32 %v3045, 0.044715
        %v3055 = vmul.f32 %v3051, %v3029
        %v3056 = vmul.f32 %v3052, %v3043
        %v3057 = vmul.f32 %v3053, %v3031
        %v3058 = vmul.f32 %v3054, %v3045
        %v3059 = vmul.f32 %v3055, %v3029
        %v3060 = vmul.f32 %v3056, %v3043
        %v3061 = vmul.f32 %v3057, %v3031
        %v3062 = vmul.f32 %v3058, %v3045
        %v3063 = vadd.f32 %v3029, %v3059
        %v3064 = vadd.f32 %v3043, %v3060
        %v3065 = vadd.f32 %v3031, %v3061
        %v3066 = vadd.f32 %v3045, %v3062
        %v3067 = vmul.f32 %v3063, 0.7978846
        %v3068 = vmul.f32 %v3064, 0.7978846
        %v3069 = vmul.f32 %v3065, 0.7978846
        %v3070 = vmul.f32 %v3066, 0.7978846
        %v3071 = vtanh.pop %v3067
        %v3072 = vtanh.pop %v3068
        %v3073 = vtanh.pop %v3069
        %v3074 = vtanh.pop %v3070
        %v3075 = vadd.f32 %v3071, 1.0
        %v3076 = vadd.f32 %v3072, 1.0
        %v3077 = vadd.f32 %v3073, 1.0
        %v3078 = vadd.f32 %v3074, 1.0
        %v3079 = vmul.f32 %v3047, %v3075
        %v3080 = vmul.f32 %v3048, %v3076
        %v3081 = vmul.f32 %v3049, %v3077
        %v3082 = vmul.f32 %v3050, %v3078
        %s3083 = scalar_lea.vmem %s31, 128
        %v3084 = vld [vmem:[%s3083] sm:$0xf]
        %v3085 = vld [vmem:[%s3083 + $0x4] sm:$0xf]
        %v3086 = vld [vmem:[%s3083 + $0x8] sm:$0xf]
        %v3087 = vld [vmem:[%s3083 + $0xc] sm:$0xf]
        %v3088 = vld [vmem:[%s3083 + $0x10] sm:$0xf]
        %v3089 = vld [vmem:[%s3083 + $0x14] sm:$0xf]
        %v3090 = vld [vmem:[%s3083 + $0x18] sm:$0xf]
        %v3091 = vld [vmem:[%s3083 + $0x1c] sm:$0xf]
        %v3092 = vld [vmem:[%s3083 + $0x20] sm:$0xf]
        %v3093 = vld [vmem:[%s3083 + $0x24] sm:$0xf]
        %v3094 = vld [vmem:[%s3083 + $0x28] sm:$0xf]
        %v3095 = vld [vmem:[%s3083 + $0x2c] sm:$0xf]
        %v3096 = vld [vmem:[%s3083 + $0x30] sm:$0xf]
        %v3097 = vld [vmem:[%s3083 + $0x34] sm:$0xf]
        %v3098 = vld [vmem:[%s3083 + $0x38] sm:$0xf]
        %v3099 = vld [vmem:[%s3083 + $0x3c] sm:$0xf]
        %v3100 = vld [vmem:[%s3083 + $0x40] sm:$0xf]
        %v3101 = vld [vmem:[%s3083 + $0x44] sm:$0xf]
        %v3102 = vld [vmem:[%s3083 + $0x48] sm:$0xf]
        %v3103 = vld [vmem:[%s3083 + $0x4c] sm:$0xf]
        %v3104 = vld [vmem:[%s3083 + $0x50] sm:$0xf]
        %v3105 = vld [vmem:[%s3083 + $0x54] sm:$0xf]
        %v3106 = vld [vmem:[%s3083 + $0x58] sm:$0xf]
        %v3107 = vld [vmem:[%s3083 + $0x5c] sm:$0xf]
        %v3108 = vld [vmem:[%s3083 + $0x60] sm:$0xf]
        %v3109 = vld [vmem:[%s3083 + $0x64] sm:$0xf]
        %v3110 = vld [vmem:[%s3083 + $0x68] sm:$0xf]
        %v3111 = vld [vmem:[%s3083 + $0x6c] sm:$0xf]
        %v3112 = vld [vmem:[%s3083 + $0x70] sm:$0xf]
        %v3113 = vld [vmem:[%s3083 + $0x74] sm:$0xf]
        %v3114 = vld [vmem:[%s3083 + $0x78] sm:$0xf]
        %v3115 = vld [vmem:[%s3083 + $0x7c] sm:$0xf]
        %v3116 = vpack.c.bf16 %v3081, %v3079
        %v3117 = vpack.c.bf16 %v3082, %v3080
        %s3118 = scalar_lea.vmem %s33, 1
        %v3119 = vld [vmem:[%s3118] sm:$0x1]
        %v3121 = vperm.slane %v3119, 0
        %v3155 = vunpack.c.l.b16 %v3084
        %v3156 = vunpack.c.l.b16 %v3085
        %v3157 = vunpack.c.l.b16 %v3086
        %v3158 = vunpack.c.l.b16 %v3087
        %v3159 = vunpack.c.l.b16 %v3088
        %v3160 = vunpack.c.l.b16 %v3089
        %v3161 = vunpack.c.l.b16 %v3090
        %v3162 = vunpack.c.l.b16 %v3091
        %v3163 = vunpack.c.l.b16 %v3092
        %v3164 = vunpack.c.l.b16 %v3093
        %v3165 = vunpack.c.l.b16 %v3094
        %v3166 = vunpack.c.l.b16 %v3095
        %v3167 = vunpack.c.l.b16 %v3096
        %v3168 = vunpack.c.l.b16 %v3097
        %v3169 = vunpack.c.l.b16 %v3098
        %v3170 = vunpack.c.l.b16 %v3099
        %v3171 = vunpack.c.l.b16 %v3100
        %v3172 = vunpack.c.l.b16 %v3101
        %v3173 = vunpack.c.l.b16 %v3102
        %v3174 = vunpack.c.l.b16 %v3103
        %v3175 = vunpack.c.l.b16 %v3104
        %v3176 = vunpack.c.l.b16 %v3105
        %v3177 = vunpack.c.l.b16 %v3106
        %v3178 = vunpack.c.l.b16 %v3107
        %v3179 = vunpack.c.l.b16 %v3108
        %v3180 = vunpack.c.l.b16 %v3109
        %v3181 = vunpack.c.l.b16 %v3110
        %v3182 = vunpack.c.l.b16 %v3111
        %v3183 = vunpack.c.l.b16 %v3112
        %v3184 = vunpack.c.l.b16 %v3113
        %v3185 = vunpack.c.l.b16 %v3114
        %v3186 = vunpack.c.l.b16 %v3115
        %v3187 = vpack.c.b16 %v3156, %v3155
        %v3188 = vpack.c.b16 %v3158, %v3157
        %v3189 = vpack.c.b16 %v3160, %v3159
        %v3190 = vpack.c.b16 %v3162, %v3161
        %v3191 = vpack.c.b16 %v3164, %v3163
        %v3192 = vpack.c.b16 %v3166, %v3165
        %v3193 = vpack.c.b16 %v3168, %v3167
        %v3194 = vpack.c.b16 %v3170, %v3169
        %v3195 = vpack.c.b16 %v3172, %v3171
        %v3196 = vpack.c.b16 %v3174, %v3173
        %v3197 = vpack.c.b16 %v3176, %v3175
        %v3198 = vpack.c.b16 %v3178, %v3177
        %v3199 = vpack.c.b16 %v3180, %v3179
        %v3200 = vpack.c.b16 %v3182, %v3181
        %v3201 = vpack.c.b16 %v3184, %v3183
        %v3202 = vpack.c.b16 %v3186, %v3185
        %3219 = vmatpush.bf16.msra.mxu0 %v3194
        %3220 = vmatpush.bf16.msra.mxu0 %v3193
        %3221 = vmatpush.bf16.msra.mxu0 %v3192
        %3222 = vmatpush.bf16.msra.mxu0 %v3191
        %3223 = vmatpush.bf16.msra.mxu0 %v3190
        %3224 = vmatpush.bf16.msra.mxu0 %v3189
        %3225 = vmatpush.bf16.msra.mxu0 %v3188
        %3226 = vmatpush.bf16.msra.mxu0 %v3187
        %3227 = vmatmul.bf16.gmra.mxu0 %v3116
        %v3228 = vpop.f32.mrf.mxu0
        %v3229 = vadd.f32 %v3121, %v3228
        %v3230 = vpop.f32.mrf.mxu0
        %3231 = vdwg.mxu0
        %3232 = vmatpush.bf16.msra.mxu0 %v3202
        %3233 = vmatpush.bf16.msra.mxu0 %v3201
        %3234 = vmatpush.bf16.msra.mxu0 %v3200
        %3235 = vmatpush.bf16.msra.mxu0 %v3199
        %3236 = vmatpush.bf16.msra.mxu0 %v3198
        %3237 = vmatpush.bf16.msra.mxu0 %v3197
        %3238 = vmatpush.bf16.msra.mxu0 %v3196
        %3239 = vmatpush.bf16.msra.mxu0 %v3195
        %3240 = vmatmul.bf16.gmra.mxu0 %v3117
        %v3241 = vpop.f32.mrf.mxu0
        %v3242 = vadd.f32 %v3229, %v3241
        %v3243 = vpop.f32.mrf.mxu0
        %3244 = vdwg.mxu0
        %v3245 = vadd.f32 %v3242, %v2957
        %s3246 = scalar_lea.vmem %s35, 1
        %v3247 = vld [vmem:[%s3246] sm:$0x1]
        %s3248 = scalar_lea.vmem %s37, 1
        %v3249 = vld [vmem:[%s3248] sm:$0x1]
        %v3250 = vsel %vm1437, %v3245, 0.0
        %3251 = vadd.xlane.f32.xlu0 %v3250
        %v3252 = vpop.xlane.xlu0 %3251
        %v3253 = vmul.f32 %v3252, %v1447
        %v3254 = vsub.f32 %v3245, %v3253
        %v3255 = vmul.f32 %v3254, %v3254
        %v3256 = vsel %vm1437, %v3255, 0.0
        %3257 = vadd.xlane.f32.xlu0 %v3256
        %v3258 = vpop.xlane.xlu0 %3257
        %v3259 = vmul.f32 %v3258, %v1447
        %v3260 = vadd.f32 %v3259, 1e-12
        %v3261 = vrsqrt.pop %v3260
        %v3262 = vmul.f32 %v3261, %v3260
        %v3263 = vmul.f32 %v3262, %v3261
        %v3264 = vmul.f32 0.5, %v3263
        %v3265 = vsub.f32 1.5, %v3264
        %v3266 = vmul.f32 %v3261, %v3265
        %vm3267 = vweird.f32 %v3260
        %vm3268 = vweird.f32 %v3261
        %vm3269 = vmor %vm3267, %vm3268
        %v3270 = vsel %vm3269, %v3261, %v3266
        %v3271 = vmul.f32 %v3254, %v3270
        %v3273 = vperm.slane %v3247, 0
        %v3275 = vmul.f32 %v3271, %v3273
        %v3277 = vperm.slane %v3249, 0
        %v3279 = vadd.f32 %v3275, %v3277
        %v3280 = vld [vmem:[%s43] sm:$0xff]
        %v3281 = vld [vmem:[%s43 + $0x8] sm:$0xff]
        %v3282 = vld [vmem:[%s43 + $0x10] sm:$0xff]
        %v3283 = vld [vmem:[%s43 + $0x18] sm:$0xff]
        %v3284 = vld [vmem:[%s43 + $0x20] sm:$0xff]
        %v3285 = vld [vmem:[%s43 + $0x28] sm:$0xff]
        %v3286 = vld [vmem:[%s43 + $0x30] sm:$0xff]
        %v3287 = vld [vmem:[%s43 + $0x38] sm:$0xff]
        %v3288 = vpack.c.bf16 %v3279, %v3279
        %v3289 = vld [vmem:[%s45] sm:$0x3]
        %v3298 = vunpack.c.l.b16 %v3280
        %v3299 = vunpack.c.h.b16 %v3280
        %v3300 = vunpack.c.l.b16 %v3281
        %v3301 = vunpack.c.h.b16 %v3281
        %v3302 = vunpack.c.l.b16 %v3282
        %v3303 = vunpack.c.h.b16 %v3282
        %v3304 = vunpack.c.l.b16 %v3283
        %v3305 = vunpack.c.h.b16 %v3283
        %v3306 = vunpack.c.l.b16 %v3284
        %v3307 = vunpack.c.h.b16 %v3284
        %v3308 = vunpack.c.l.b16 %v3285
        %v3309 = vunpack.c.h.b16 %v3285
        %v3310 = vunpack.c.l.b16 %v3286
        %v3311 = vunpack.c.h.b16 %v3286
        %v3312 = vunpack.c.l.b16 %v3287
        %v3313 = vunpack.c.h.b16 %v3287
        %v3314 = vpack.c.b16 %v3300, %v3298
        %v3315 = vpack.c.b16 %v3301, %v3299
        %v3316 = vpack.c.b16 %v3304, %v3302
        %v3317 = vpack.c.b16 %v3305, %v3303
        %v3318 = vpack.c.b16 %v3308, %v3306
        %v3319 = vpack.c.b16 %v3309, %v3307
        %v3320 = vpack.c.b16 %v3312, %v3310
        %v3321 = vpack.c.b16 %v3313, %v3311
        %v3331 = vperm.slane %v3289, 0
        %v3332 = vperm.slane %v3289, 1
        %v3336 = vsel %vm1437, %v3288, 0
        %3338 = vmatpush.bf16.msra.mxu0 0
        %3339 = vmatpush.bf16.msra.mxu0 0
        %3340 = vmatpush.bf16.msra.mxu0 0
        %3341 = vmatpush.bf16.msra.mxu0 0
        %3342 = vmatpush.bf16.msra.mxu0 %v3320
        %3343 = vmatpush.bf16.msra.mxu0 %v3318
        %3344 = vmatpush.bf16.msra.mxu0 %v3316
        %3345 = vmatpush.bf16.msra.mxu0 %v3314
        %3346 = vmatmul.bf16.gmra.mxu0 %v3336
        %v3347 = vpop.f32.mrf.mxu0
        %v3348 = vadd.f32 %v3331, %v3347
        %v3349 = vpop.f32.mrf.mxu0
        %3350 = vdwg.mxu0
        %3351 = vmatpush.bf16.msra.mxu0 0
        %3352 = vmatpush.bf16.msra.mxu0 0
        %3353 = vmatpush.bf16.msra.mxu0 0
        %3354 = vmatpush.bf16.msra.mxu0 0
        %3355 = vmatpush.bf16.msra.mxu0 %v3321
        %3356 = vmatpush.bf16.msra.mxu0 %v3319
        %3357 = vmatpush.bf16.msra.mxu0 %v3317
        %3358 = vmatpush.bf16.msra.mxu0 %v3315
        %3359 = vmatmul.bf16.gmra.mxu0 %v3336
        %v3360 = vpop.f32.mrf.mxu0
        %v3361 = vadd.f32 %v3332, %v3360
        %v3362 = vpop.f32.mrf.mxu0
        %3363 = vdwg.mxu0
        %v3364 = vtanh.pop %v3348
        %vm3365 = vcmask 1040384
        %v3366 = vsel %vm3365, %v3361, -inf
        %3367 = vmax.xlane.f32.xlu0 %v3366
        %v3368 = vpop.xlane.xlu0 %3367
        %v3369 = vsub.f32 %v3361, %v3368
        %v3370 = vmul.f32 %v3369, 1.442695
        %v3371 = vpow.pop %v3370
        %v3372 = vsel %vm3365, %v3371, 0.0
        %3373 = vadd.xlane.f32.xlu0 %v3372
        %v3374 = vpop.xlane.xlu0 %3373
        %v3375 = vrcp.pop %v3374
        %v3376 = vmul.f32 %v3374, %v3375
        %v3377 = vsub.f32 1.0, %v3376
        %v3378 = vmul.f32 %v3375, %v3377
        %v3379 = vadd.f32 %v3375, %v3378
        %vm3380 = vweird.f32 %v3374
        %vm3381 = vweird.f32 %v3375
        %vm3382 = vmor %vm3380, %vm3381
        %v3383 = vsel %vm3382, %v3375, %v3379
        %v3384 = vand.u32 2147483647, %v3374
        %vm3385 = vcmp.eq.f32.partialorder %v3384, 8.507059e+37
        %v3386 = vand.u32 %v3374, 2147483648
        %v3387 = vor.u32 1.1754944e-38, %v3386
        %v3388 = vsel %vm3385, %v3387, %v3383
        %v3389 = vmul.f32 %v3371, %v3388
        %3390 = vst [vmem:[%s1421] sm:$0x1] %v3389
        %v3391 = vld [vmem:[%s1429] sm:$0xff]
        %v3392 = vld [vmem:[%s39] sm:$0xf]
        %v3393 = vld [vmem:[%s39 + $0x4] sm:$0xf]
        %v3394 = vld [vmem:[%s39 + $0x8] sm:$0xf]
        %v3395 = vld [vmem:[%s39 + $0xc] sm:$0xf]
        %v3396 = vld [vmem:[%s39 + $0x10] sm:$0xf]
        %v3397 = vld [vmem:[%s39 + $0x14] sm:$0xf]
        %v3398 = vld [vmem:[%s39 + $0x18] sm:$0xf]
        %v3399 = vld [vmem:[%s39 + $0x1c] sm:$0xf]
        %v3400 = vld [vmem:[%s39 + $0x20] sm:$0xf]
        %v3401 = vld [vmem:[%s39 + $0x24] sm:$0xf]
        %v3402 = vld [vmem:[%s39 + $0x28] sm:$0xf]
        %v3403 = vld [vmem:[%s39 + $0x2c] sm:$0xf]
        %v3404 = vld [vmem:[%s39 + $0x30] sm:$0xf]
        %v3405 = vld [vmem:[%s39 + $0x34] sm:$0xf]
        %v3406 = vld [vmem:[%s39 + $0x38] sm:$0xf]
        %v3407 = vld [vmem:[%s39 + $0x3c] sm:$0xf]
        %v3408 = vpack.c.bf16 %v3391, %v3391
        %v3409 = vld [vmem:[%s41] sm:$0x1]
        %v3411 = vperm.slane %v3409, 0
        %v3429 = vunpack.c.l.b16 %v3392
        %v3430 = vunpack.c.l.b16 %v3393
        %v3431 = vunpack.c.l.b16 %v3394
        %v3432 = vunpack.c.l.b16 %v3395
        %v3433 = vunpack.c.l.b16 %v3396
        %v3434 = vunpack.c.l.b16 %v3397
        %v3435 = vunpack.c.l.b16 %v3398
        %v3436 = vunpack.c.l.b16 %v3399
        %v3437 = vunpack.c.l.b16 %v3400
        %v3438 = vunpack.c.l.b16 %v3401
        %v3439 = vunpack.c.l.b16 %v3402
        %v3440 = vunpack.c.l.b16 %v3403
        %v3441 = vunpack.c.l.b16 %v3404
        %v3442 = vunpack.c.l.b16 %v3405
        %v3443 = vunpack.c.l.b16 %v3406
        %v3444 = vunpack.c.l.b16 %v3407
        %v3445 = vpack.c.b16 %v3430, %v3429
        %v3446 = vpack.c.b16 %v3432, %v3431
        %v3447 = vpack.c.b16 %v3434, %v3433
        %v3448 = vpack.c.b16 %v3436, %v3435
        %v3449 = vpack.c.b16 %v3438, %v3437
        %v3450 = vpack.c.b16 %v3440, %v3439
        %v3451 = vpack.c.b16 %v3442, %v3441
        %v3452 = vpack.c.b16 %v3444, %v3443
        %3461 = vmatpush.bf16.msra.mxu0 %v3452
        %3462 = vmatpush.bf16.msra.mxu0 %v3451
        %3463 = vmatpush.bf16.msra.mxu0 %v3450
        %3464 = vmatpush.bf16.msra.mxu0 %v3449
        %3465 = vmatpush.bf16.msra.mxu0 %v3448
        %3466 = vmatpush.bf16.msra.mxu0 %v3447
        %3467 = vmatpush.bf16.msra.mxu0 %v3446
        %3468 = vmatpush.bf16.msra.mxu0 %v3445
        %3469 = vmatmul.bf16.gmra.mxu0 %v3408
        %v3470 = vpop.f32.mrf.mxu0
        %v3471 = vadd.f32 %v3411, %v3470
        %v3472 = vpop.f32.mrf.mxu0
        %3473 = vdwg.mxu0
        %v3474 = vtanh.pop %v3471
        %v3475 = vperm.slane %v3364, 0
        %v3476 = vmul.f32 %v3474, %v3475
        %v3477 = vsel %vm1437, %v3476, 0.0
        %v3478 = vrot.slane %v3477, 4
        %v3479 = vadd.f32 %v3477, %v3478
        %v3480 = vrot.slane %v3479, 2
        %v3481 = vadd.f32 %v3479, %v3480
        %v3482 = vrot.slane %v3481, 1
        %v3483 = vadd.f32 %v3481, %v3482
        %v3484 = vrcp.pop 8.0
        %v3485 = vmul.f32 8.0, %v3484
        %v3486 = vsub.f32 1.0, %v3485
        %v3487 = vmul.f32 %v3484, %v3486
        %v3488 = vadd.f32 %v3484, %v3487
        %vm3489 = vweird.f32 %v3484
        %v3490 = vsel %vm3489, %v3484, %v3488
        %v3491 = vmul.f32 %v3483, %v3490
        %v3492 = vlaneseq
        %v3493 = vand.u32 %v3492, 127
        loop: start=0, step=1, limit=4
        $region209: #{visualbert_rex_forward.1} parent=195 // loop_pre_header
          _
        $region210: #{visualbert_rex_forward.1} parent=195 // loop_header
          %s3495 = sphi 0, %s3499
          %p3496 = scmp.ge.s32.totalorder %s3495, 4
          %v3500 = vphi 0.0, %v4293
          %v3501 = vphi 0.0, %v4403
        $region211: #{visualbert_rex_forward.1} parent=195 // loop_header_branch
          %3498 = sbr.rel (%p3496) target = $region215
        $region212: #{visualbert_rex_forward.1} parent=195 // loop_body
          %p3502 = scmp.eq.s32.totalorder %s3495, 0
          %s3503 = scalar_select %p3502, 1, 0
          %v3504 = vstv %s3503
          %vm3505 = vcmp.eq.s32.totalorder %v3504, 1
          %v3506 = vsel %vm3505, %v3491, %v3483
          %3508 = vrot.lane.b32.xlu0 %v3500, 64
          %v3509 = vpop.permute.xlu0 %3508
          %v3511 = vsel %vm1437, %v3506, %v3509
          %v3512 = vld [vmem:[%s55] sm:$0xff]
          %v3513 = vld [vmem:[%s55 + $0x8] sm:$0xff]
          %v3514 = vld [vmem:[%s55 + $0x10] sm:$0xff]
          %v3515 = vld [vmem:[%s55 + $0x18] sm:$0xff]
          %v3516 = vld [vmem:[%s55 + $0x20] sm:$0xff]
          %v3517 = vld [vmem:[%s55 + $0x28] sm:$0xff]
          %v3518 = vld [vmem:[%s55 + $0x30] sm:$0xff]
          %v3519 = vld [vmem:[%s55 + $0x38] sm:$0xff]
          %v3520 = vld [vmem:[%s55 + $0x40] sm:$0xff]
          %v3521 = vld [vmem:[%s55 + $0x48] sm:$0xff]
          %v3522 = vld [vmem:[%s55 + $0x50] sm:$0xff]
          %v3523 = vld [vmem:[%s55 + $0x58] sm:$0xff]
          %v3524 = vld [vmem:[%s55 + $0x60] sm:$0xff]
          %v3525 = vld [vmem:[%s55 + $0x68] sm:$0xff]
          %v3526 = vld [vmem:[%s55 + $0x70] sm:$0xff]
          %v3527 = vld [vmem:[%s55 + $0x78] sm:$0xff]
          %v3528 = vld [vmem:[%s55 + $0x80] sm:$0xff]
          %v3529 = vld [vmem:[%s55 + $0x88] sm:$0xff]
          %v3530 = vld [vmem:[%s55 + $0x90] sm:$0xff]
          %v3531 = vld [vmem:[%s55 + $0x98] sm:$0xff]
          %v3532 = vld [vmem:[%s55 + $0xa0] sm:$0xff]
          %v3533 = vld [vmem:[%s55 + $0xa8] sm:$0xff]
          %v3534 = vld [vmem:[%s55 + $0xb0] sm:$0xff]
          %v3535 = vld [vmem:[%s55 + $0xb8] sm:$0xff]
          %v3536 = vpack.c.bf16 %v3511, %v3511
          %v3537 = vpack.c.bf16 %v3501, %v3501
          %v3538 = vld [vmem:[%s57] sm:$0x3]
          %v3563 = vunpack.c.l.b16 %v3512
          %v3564 = vunpack.c.h.b16 %v3512
          %v3565 = vunpack.c.l.b16 %v3513
          %v3566 = vunpack.c.h.b16 %v3513
          %v3567 = vunpack.c.l.b16 %v3514
          %v3568 = vunpack.c.h.b16 %v3514
          %v3569 = vunpack.c.l.b16 %v3515
          %v3570 = vunpack.c.h.b16 %v3515
          %v3571 = vunpack.c.l.b16 %v3516
          %v3572 = vunpack.c.h.b16 %v3516
          %v3573 = vunpack.c.l.b16 %v3517
          %v3574 = vunpack.c.h.b16 %v3517
          %v3575 = vunpack.c.l.b16 %v3518
          %v3576 = vunpack.c.h.b16 %v3518
          %v3577 = vunpack.c.l.b16 %v3519
          %v3578 = vunpack.c.h.b16 %v3519
          %v3579 = vunpack.c.l.b16 %v3520
          %v3580 = vunpack.c.h.b16 %v3520
          %v3581 = vunpack.c.l.b16 %v3521
          %v3582 = vunpack.c.h.b16 %v3521
          %v3583 = vunpack.c.l.b16 %v3522
          %v3584 = vunpack.c.h.b16 %v3522
          %v3585 = vunpack.c.l.b16 %v3523
          %v3586 = vunpack.c.h.b16 %v3523
          %v3587 = vunpack.c.l.b16 %v3524
          %v3588 = vunpack.c.h.b16 %v3524
          %v3589 = vunpack.c.l.b16 %v3525
          %v3590 = vunpack.c.h.b16 %v3525
          %v3591 = vunpack.c.l.b16 %v3526
          %v3592 = vunpack.c.h.b16 %v3526
          %v3593 = vunpack.c.l.b16 %v3527
          %v3594 = vunpack.c.h.b16 %v3527
          %v3595 = vunpack.c.l.b16 %v3528
          %v3596 = vunpack.c.h.b16 %v3528
          %v3597 = vunpack.c.l.b16 %v3529
          %v3598 = vunpack.c.h.b16 %v3529
          %v3599 = vunpack.c.l.b16 %v3530
          %v3600 = vunpack.c.h.b16 %v3530
          %v3601 = vunpack.c.l.b16 %v3531
          %v3602 = vunpack.c.h.b16 %v3531
          %v3603 = vunpack.c.l.b16 %v3532
          %v3604 = vunpack.c.h.b16 %v3532
          %v3605 = vunpack.c.l.b16 %v3533
          %v3606 = vunpack.c.h.b16 %v3533
          %v3607 = vunpack.c.l.b16 %v3534
          %v3608 = vunpack.c.h.b16 %v3534
          %v3609 = vunpack.c.l.b16 %v3535
          %v3610 = vunpack.c.h.b16 %v3535
          %v3611 = vpack.c.b16 %v3565, %v3563
          %v3612 = vpack.c.b16 %v3566, %v3564
          %v3613 = vpack.c.b16 %v3569, %v3567
          %v3614 = vpack.c.b16 %v3570, %v3568
          %v3615 = vpack.c.b16 %v3573, %v3571
          %v3616 = vpack.c.b16 %v3574, %v3572
          %v3617 = vpack.c.b16 %v3577, %v3575
          %v3618 = vpack.c.b16 %v3578, %v3576
          %v3619 = vpack.c.b16 %v3581, %v3579
          %v3620 = vpack.c.b16 %v3582, %v3580
          %v3621 = vpack.c.b16 %v3585, %v3583
          %v3622 = vpack.c.b16 %v3586, %v3584
          %v3623 = vpack.c.b16 %v3589, %v3587
          %v3624 = vpack.c.b16 %v3590, %v3588
          %v3625 = vpack.c.b16 %v3593, %v3591
          %v3626 = vpack.c.b16 %v3594, %v3592
          %v3627 = vpack.c.b16 %v3597, %v3595
          %v3628 = vpack.c.b16 %v3598, %v3596
          %v3629 = vpack.c.b16 %v3601, %v3599
          %v3630 = vpack.c.b16 %v3602, %v3600
          %v3631 = vpack.c.b16 %v3605, %v3603
          %v3632 = vpack.c.b16 %v3606, %v3604
          %v3633 = vpack.c.b16 %v3609, %v3607
          %v3634 = vpack.c.b16 %v3610, %v3608
          %v3660 = vperm.slane %v3538, 0
          %v3661 = vperm.slane %v3538, 1
          %v3665 = vsel %vm1437, %v3537, 0
          %3667 = vmatpush.bf16.msra.mxu0 %v3625
          %3668 = vmatpush.bf16.msra.mxu0 %v3623
          %3669 = vmatpush.bf16.msra.mxu0 %v3621
          %3670 = vmatpush.bf16.msra.mxu0 %v3619
          %3671 = vmatpush.bf16.msra.mxu0 %v3617
          %3672 = vmatpush.bf16.msra.mxu0 %v3615
          %3673 = vmatpush.bf16.msra.mxu0 %v3613
          %3674 = vmatpush.bf16.msra.mxu0 %v3611
          %3675 = vmatmul.bf16.gmra.mxu0 %v3536
          %v3676 = vpop.f32.mrf.mxu0
          %v3677 = vadd.f32 %v3660, %v3676
          %v3678 = vpop.f32.mrf.mxu0
          %3679 = vdwg.mxu0
          %3680 = vmatpush.bf16.msra.mxu0 0
          %3681 = vmatpush.bf16.msra.mxu0 0
          %3682 = vmatpush.bf16.msra.mxu0 0
          %3683 = vmatpush.bf16.msra.mxu0 0
          %3684 = vmatpush.bf16.msra.mxu0 %v3633
          %3685 = vmatpush.bf16.msra.mxu0 %v3631
          %3686 = vmatpush.bf16.msra.mxu0 %v3629
          %3687 = vmatpush.bf16.msra.mxu0 %v3627
          %3688 = vmatmul.bf16.gmra.mxu0 %v3665
          %v3689 = vpop.f32.mrf.mxu0
          %v3690 = vadd.f32 %v3677, %v3689
          %v3691 = vpop.f32.mrf.mxu0
          %3692 = vdwg.mxu0
          %3693 = vmatpush.bf16.msra.mxu0 %v3626
          %3694 = vmatpush.bf16.msra.mxu0 %v3624
          %3695 = vmatpush.bf16.msra.mxu0 %v3622
          %3696 = vmatpush.bf16.msra.mxu0 %v3620
          %3697 = vmatpush.bf16.msra.mxu0 %v3618
          %3698 = vmatpush.bf16.msra.mxu0 %v3616
          %3699 = vmatpush.bf16.msra.mxu0 %v3614
          %3700 = vmatpush.bf16.msra.mxu0 %v3612
          %3701 = vmatmul.bf16.gmra.mxu0 %v3536
          %v3702 = vpop.f32.mrf.mxu0
          %v3703 = vadd.f32 %v3661, %v3702
          %v3704 = vpop.f32.mrf.mxu0
          %3705 = vdwg.mxu0
          %3706 = vmatpush.bf16.msra.mxu0 0
          %3707 = vmatpush.bf16.msra.mxu0 0
          %3708 = vmatpush.bf16.msra.mxu0 0
          %3709 = vmatpush.bf16.msra.mxu0 0
          %3710 = vmatpush.bf16.msra.mxu0 %v3634
          %3711 = vmatpush.bf16.msra.mxu0 %v3632
          %3712 = vmatpush.bf16.msra.mxu0 %v3630
          %3713 = vmatpush.bf16.msra.mxu0 %v3628
          %3714 = vmatmul.bf16.gmra.mxu0 %v3665
          %v3715 = vpop.f32.mrf.mxu0
          %v3716 = vadd.f32 %v3703, %v3715
          %v3717 = vpop.f32.mrf.mxu0
          %3718 = vdwg.mxu0
          %v3719 = vld [vmem:[%s59] sm:$0xf]
          %v3720 = vld [vmem:[%s59 + $0x4] sm:$0xf]
          %v3721 = vld [vmem:[%s59 + $0x8] sm:$0xf]
          %v3722 = vld [vmem:[%s59 + $0xc] sm:$0xf]
          %v3723 = vld [vmem:[%s59 + $0x10] sm:$0xf]
          %v3724 = vld [vmem:[%s59 + $0x14] sm:$0xf]
          %v3725 = vld [vmem:[%s59 + $0x18] sm:$0xf]
          %v3726 = vld [vmem:[%s59 + $0x1c] sm:$0xf]
          %v3727 = vpack.c.bf16 %v3500, %v3500
          %v3728 = vld [vmem:[%s61] sm:$0x1]
          %v3737 = vunpack.c.l.b16 %v3719
          %v3738 = vunpack.c.l.b16 %v3720
          %v3739 = vunpack.c.l.b16 %v3721
          %v3740 = vunpack.c.l.b16 %v3722
          %v3741 = vunpack.c.l.b16 %v3723
          %v3742 = vunpack.c.l.b16 %v3724
          %v3743 = vunpack.c.l.b16 %v3725
          %v3744 = vunpack.c.l.b16 %v3726
          %v3745 = vpack.c.b16 %v3738, %v3737
          %v3746 = vpack.c.b16 %v3740, %v3739
          %v3747 = vpack.c.b16 %v3742, %v3741
          %v3748 = vpack.c.b16 %v3744, %v3743
          %v3754 = vsel %vm1437, %v3727, 0
          %3756 = vmatpush.bf16.msra.mxu0 0
          %3757 = vmatpush.bf16.msra.mxu0 0
          %3758 = vmatpush.bf16.msra.mxu0 0
          %3759 = vmatpush.bf16.msra.mxu0 0
          %3760 = vmatpush.bf16.msra.mxu0 %v3748
          %3761 = vmatpush.bf16.msra.mxu0 %v3747
          %3762 = vmatpush.bf16.msra.mxu0 %v3746
          %3763 = vmatpush.bf16.msra.mxu0 %v3745
          %3764 = vmatmul.bf16.gmra.mxu0 %v3754
          %v3765 = vpop.f32.mrf.mxu0
          %v3766 = vadd.f32 %v3728, %v3765
          %v3767 = vpop.f32.mrf.mxu0
          %3768 = vdwg.mxu0
          %v3769 = vadd.f32 %v3690, %v3766
          %v3770 = vxor.u32 %v3769, 2147483648
          %v3771 = vmul.f32 %v3770, 1.442695
          %v3772 = vpow.pop %v3771
          %v3773 = vadd.f32 %v3772, 1.0
          %v3774 = vrcp.pop %v3773
          %v3775 = vmul.f32 %v3773, %v3774
          %v3776 = vsub.f32 1.0, %v3775
          %v3777 = vmul.f32 %v3774, %v3776
          %v3778 = vadd.f32 %v3774, %v3777
          %vm3779 = vweird.f32 %v3773
          %vm3780 = vweird.f32 %v3774
          %vm3781 = vmor %vm3779, %vm3780
          %v3782 = vsel %vm3781, %v3774, %v3778
          %v3783 = vand.u32 2147483647, %v3773
          %vm3784 = vcmp.eq.f32.partialorder %v3783, 8.507059e+37
          %v3785 = vand.u32 %v3773, 2147483648
          %v3786 = vor.u32 1.1754944e-38, %v3785
          %v3787 = vsel %vm3784, %v3786, %v3782
          %v3788 = vmul.f32 1.0, %v3787
          %v3789 = vmul.f32 %v3788, %v3509
          %v3790 = vld [vmem:[%s63] sm:$0xf]
          %v3791 = vld [vmem:[%s63 + $0x4] sm:$0xf]
          %v3792 = vld [vmem:[%s63 + $0x8] sm:$0xf]
          %v3793 = vld [vmem:[%s63 + $0xc] sm:$0xf]
          %v3794 = vld [vmem:[%s63 + $0x10] sm:$0xf]
          %v3795 = vld [vmem:[%s63 + $0x14] sm:$0xf]
          %v3796 = vld [vmem:[%s63 + $0x18] sm:$0xf]
          %v3797 = vld [vmem:[%s63 + $0x1c] sm:$0xf]
          %v3798 = vpack.c.bf16 %v3789, %v3789
          %3800 = vrot.lane.b32.xlu0 %v3798, 64
          %v3801 = vpop.permute.xlu0 %3800
          %v3810 = vunpack.c.l.b16 %v3790
          %v3811 = vunpack.c.l.b16 %v3791
          %v3812 = vunpack.c.l.b16 %v3792
          %v3813 = vunpack.c.l.b16 %v3793
          %v3814 = vunpack.c.l.b16 %v3794
          %v3815 = vunpack.c.l.b16 %v3795
          %v3816 = vunpack.c.l.b16 %v3796
          %v3817 = vunpack.c.l.b16 %v3797
          %v3818 = vpack.c.b16 %v3811, %v3810
          %v3819 = vpack.c.b16 %v3813, %v3812
          %v3820 = vpack.c.b16 %v3815, %v3814
          %v3821 = vpack.c.b16 %v3817, %v3816
          %v3827 = vsel %vm1437, %v3801, 0
          %3829 = vmatpush.bf16.msra.mxu0 0
          %3830 = vmatpush.bf16.msra.mxu0 0
          %3831 = vmatpush.bf16.msra.mxu0 0
          %3832 = vmatpush.bf16.msra.mxu0 0
          %3833 = vmatpush.bf16.msra.mxu0 %v3821
          %3834 = vmatpush.bf16.msra.mxu0 %v3820
          %3835 = vmatpush.bf16.msra.mxu0 %v3819
          %3836 = vmatpush.bf16.msra.mxu0 %v3818
          %3837 = vmatmul.bf16.gmra.mxu0 %v3827
          %v3838 = vpop.f32.mrf.mxu0
          %v3839 = vadd.f32 0.0, %v3838
          %v3840 = vpop.f32.mrf.mxu0
          %3841 = vdwg.mxu0
          %v3842 = vadd.f32 %v3716, %v3839
          %v3843 = vld [vmem:[%s65] sm:$0x1]
          %v3844 = vadd.f32 %v3842, %v3843
          %v3845 = vtanh.pop %v3844
          %v3846 = vsub.f32 1.0, %v3788
          %v3847 = vmul.f32 %v3846, %v3500
          %v3848 = vmul.f32 %v3788, %v3845
          %v3849 = vadd.f32 %v3847, %v3848
          %v3850 = vld [vmem:[%s47] sm:$0xf]
          %v3851 = vld [vmem:[%s47 + $0x4] sm:$0xf]
          %v3852 = vld [vmem:[%s47 + $0x8] sm:$0xf]
          %v3853 = vld [vmem:[%s47 + $0xc] sm:$0xf]
          %v3854 = vld [vmem:[%s47 + $0x10] sm:$0xf]
          %v3855 = vld [vmem:[%s47 + $0x14] sm:$0xf]
          %v3856 = vld [vmem:[%s47 + $0x18] sm:$0xf]
          %v3857 = vld [vmem:[%s47 + $0x1c] sm:$0xf]
          %v3858 = vpack.c.bf16 %v3849, %v3849
          %v3859 = vld [vmem:[%s49] sm:$0x1]
          %v3868 = vunpack.c.l.b16 %v3850
          %v3869 = vunpack.c.l.b16 %v3851
          %v3870 = vunpack.c.l.b16 %v3852
          %v3871 = vunpack.c.l.b16 %v3853
          %v3872 = vunpack.c.l.b16 %v3854
          %v3873 = vunpack.c.l.b16 %v3855
          %v3874 = vunpack.c.l.b16 %v3856
          %v3875 = vunpack.c.l.b16 %v3857
          %v3876 = vpack.c.b16 %v3869, %v3868
          %v3877 = vpack.c.b16 %v3871, %v3870
          %v3878 = vpack.c.b16 %v3873, %v3872
          %v3879 = vpack.c.b16 %v3875, %v3874
          %v3885 = vsel %vm1437, %v3858, 0
          %3887 = vmatpush.bf16.msra.mxu0 0
          %3888 = vmatpush.bf16.msra.mxu0 0
          %3889 = vmatpush.bf16.msra.mxu0 0
          %3890 = vmatpush.bf16.msra.mxu0 0
          %3891 = vmatpush.bf16.msra.mxu0 %v3879
          %3892 = vmatpush.bf16.msra.mxu0 %v3878
          %3893 = vmatpush.bf16.msra.mxu0 %v3877
          %3894 = vmatpush.bf16.msra.mxu0 %v3876
          %3895 = vmatmul.bf16.gmra.mxu0 %v3885
          %v3896 = vpop.f32.mrf.mxu0
          %v3897 = vadd.f32 %v3859, %v3896
          %v3898 = vpop.f32.mrf.mxu0
          %3899 = vdwg.mxu0
          %v3900 = vperm.slane %v3897, 0
          %v3901 = vadd.f32 %v3900, %v3476
          %v3902 = vtanh.pop %v3901
          %v3903 = vld [vmem:[%s51] sm:$0x1]
          %v3905 = vperm.slane %v3903, 0
          %v3907 = vmul.f32 %v3902, %v3905
          %v3908 = vsel %vm1437, %v3907, 0.0
          %3909 = vadd.xlane.f32.xlu0 %v3908
          %v3910 = vpop.xlane.xlu0 %3909
          %v3911 = vld [vmem:[#allocation2] sm:$0x1]
          %v3913 = vperm.slane %v3911, 0
          %v3915 = vadd.f32 %v3910, %v3913
          %vm3916 = vcmask 7168
          %v3917 = vsel %vm3916, %v3915, -inf
          %v3918 = vrot.slane %v3917, 4
          %v3919 = vmax.f32 %v3917, %v3918
          %v3920 = vrot.slane %v3919, 2
          %v3921 = vmax.f32 %v3919, %v3920
          %v3922 = vrot.slane %v3921, 1
          %v3923 = vmax.f32 %v3921, %v3922
          %v3924 = vsub.f32 %v3915, %v3923
          %v3925 = vmul.f32 %v3924, 1.442695
          %v3926 = vpow.pop %v3925
          %v3927 = vsel %vm3916, %v3926, 0.0
          %v3928 = vrot.slane %v3927, 4
          %v3929 = vadd.f32 %v3927, %v3928
          %v3930 = vrot.slane %v3929, 2
          %v3931 = vadd.f32 %v3929, %v3930
          %v3932 = vrot.slane %v3931, 1
          %v3933 = vadd.f32 %v3931, %v3932
          %v3934 = vrcp.pop %v3933
          %v3935 = vmul.f32 %v3926, %v3934
          %3937 = vset.pattern.permute.xlu0 0
          %3938 = vperm.xlu0 %3937, %v3935
          %v3939 = vpop.permute.xlu0 %3938
          %v3941 = vmul.f32 %v3939, %v3391
          %v3942 = vrot.slane %v3941, 4
          %v3943 = vadd.f32 %v3941, %v3942
          %v3944 = vrot.slane %v3943, 2
          %v3945 = vadd.f32 %v3943, %v3944
          %v3946 = vrot.slane %v3945, 1
          %v3947 = vadd.f32 %v3945, %v3946
          %v3948 = vld [vmem:[%s67] sm:$0xf]
          %v3949 = vld [vmem:[%s67 + $0x4] sm:$0xf]
          %v3950 = vld [vmem:[%s67 + $0x8] sm:$0xf]
          %v3951 = vld [vmem:[%s67 + $0xc] sm:$0xf]
          %v3952 = vld [vmem:[%s67 + $0x10] sm:$0xf]
          %v3953 = vld [vmem:[%s67 + $0x14] sm:$0xf]
          %v3954 = vld [vmem:[%s67 + $0x18] sm:$0xf]
          %v3955 = vld [vmem:[%s67 + $0x1c] sm:$0xf]
          %v3956 = vld [vmem:[%s67 + $0x20] sm:$0xf]
          %v3957 = vld [vmem:[%s67 + $0x24] sm:$0xf]
          %v3958 = vld [vmem:[%s67 + $0x28] sm:$0xf]
          %v3959 = vld [vmem:[%s67 + $0x2c] sm:$0xf]
          %v3960 = vld [vmem:[%s67 + $0x30] sm:$0xf]
          %v3961 = vld [vmem:[%s67 + $0x34] sm:$0xf]
          %v3962 = vld [vmem:[%s67 + $0x38] sm:$0xf]
          %v3963 = vld [vmem:[%s67 + $0x3c] sm:$0xf]
          %v3964 = vpack.c.bf16 %v3947, %v3947
          %v3965 = vld [vmem:[%s69] sm:$0x1]
          %v3982 = vunpack.c.l.b16 %v3948
          %v3983 = vunpack.c.l.b16 %v3949
          %v3984 = vunpack.c.l.b16 %v3950
          %v3985 = vunpack.c.l.b16 %v3951
          %v3986 = vunpack.c.l.b16 %v3952
          %v3987 = vunpack.c.l.b16 %v3953
          %v3988 = vunpack.c.l.b16 %v3954
          %v3989 = vunpack.c.l.b16 %v3955
          %v3990 = vunpack.c.l.b16 %v3956
          %v3991 = vunpack.c.l.b16 %v3957
          %v3992 = vunpack.c.l.b16 %v3958
          %v3993 = vunpack.c.l.b16 %v3959
          %v3994 = vunpack.c.l.b16 %v3960
          %v3995 = vunpack.c.l.b16 %v3961
          %v3996 = vunpack.c.l.b16 %v3962
          %v3997 = vunpack.c.l.b16 %v3963
          %v3998 = vpack.c.b16 %v3983, %v3982
          %v3999 = vpack.c.b16 %v3985, %v3984
          %v4000 = vpack.c.b16 %v3987, %v3986
          %v4001 = vpack.c.b16 %v3989, %v3988
          %v4002 = vpack.c.b16 %v3991, %v3990
          %v4003 = vpack.c.b16 %v3993, %v3992
          %v4004 = vpack.c.b16 %v3995, %v3994
          %v4005 = vpack.c.b16 %v3997, %v3996
          %4014 = vmatpush.bf16.msra.mxu0 %v4005
          %4015 = vmatpush.bf16.msra.mxu0 %v4004
          %4016 = vmatpush.bf16.msra.mxu0 %v4003
          %4017 = vmatpush.bf16.msra.mxu0 %v4002
          %4018 = vmatpush.bf16.msra.mxu0 %v4001
          %4019 = vmatpush.bf16.msra.mxu0 %v4000
          %4020 = vmatpush.bf16.msra.mxu0 %v3999
          %4021 = vmatpush.bf16.msra.mxu0 %v3998
          %4022 = vmatmul.bf16.gmra.mxu0 %v3964
          %v4023 = vpop.f32.mrf.mxu0
          %v4024 = vadd.f32 %v3965, %v4023
          %v4025 = vpop.f32.mrf.mxu0
          %4026 = vdwg.mxu0
          %v4027 = vtanh.pop %v4024
          %4029 = vrot.lane.b32.xlu0 %v3364, 64
          %v4030 = vpop.permute.xlu0 %4029
          %v4032 = vmul.f32 %v4027, %v4030
          %4034 = vrot.lane.b32.xlu0 %v3849, 64
          %v4035 = vpop.permute.xlu0 %4034
          %v4037 = vsel %vm1437, %v4032, %v4035
          %v4038 = vld [vmem:[%s71] sm:$0xff]
          %v4039 = vld [vmem:[%s71 + $0x8] sm:$0xff]
          %v4040 = vld [vmem:[%s71 + $0x10] sm:$0xff]
          %v4041 = vld [vmem:[%s71 + $0x18] sm:$0xff]
          %v4042 = vld [vmem:[%s71 + $0x20] sm:$0xff]
          %v4043 = vld [vmem:[%s71 + $0x28] sm:$0xff]
          %v4044 = vld [vmem:[%s71 + $0x30] sm:$0xff]
          %v4045 = vld [vmem:[%s71 + $0x38] sm:$0xff]
          %v4046 = vld [vmem:[%s71 + $0x40] sm:$0xff]
          %v4047 = vld [vmem:[%s71 + $0x48] sm:$0xff]
          %v4048 = vld [vmem:[%s71 + $0x50] sm:$0xff]
          %v4049 = vld [vmem:[%s71 + $0x58] sm:$0xff]
          %v4050 = vld [vmem:[%s71 + $0x60] sm:$0xff]
          %v4051 = vld [vmem:[%s71 + $0x68] sm:$0xff]
          %v4052 = vld [vmem:[%s71 + $0x70] sm:$0xff]
          %v4053 = vld [vmem:[%s71 + $0x78] sm:$0xff]
          %v4054 = vpack.c.bf16 %v4037, %v4037
          %v4055 = vld [vmem:[%s73] sm:$0x3]
          %v4072 = vunpack.c.l.b16 %v4038
          %v4073 = vunpack.c.h.b16 %v4038
          %v4074 = vunpack.c.l.b16 %v4039
          %v4075 = vunpack.c.h.b16 %v4039
          %v4076 = vunpack.c.l.b16 %v4040
          %v4077 = vunpack.c.h.b16 %v4040
          %v4078 = vunpack.c.l.b16 %v4041
          %v4079 = vunpack.c.h.b16 %v4041
          %v4080 = vunpack.c.l.b16 %v4042
          %v4081 = vunpack.c.h.b16 %v4042
          %v4082 = vunpack.c.l.b16 %v4043
          %v4083 = vunpack.c.h.b16 %v4043
          %v4084 = vunpack.c.l.b16 %v4044
          %v4085 = vunpack.c.h.b16 %v4044
          %v4086 = vunpack.c.l.b16 %v4045
          %v4087 = vunpack.c.h.b16 %v4045
          %v4088 = vunpack.c.l.b16 %v4046
          %v4089 = vunpack.c.h.b16 %v4046
          %v4090 = vunpack.c.l.b16 %v4047
          %v4091 = vunpack.c.h.b16 %v4047
          %v4092 = vunpack.c.l.b16 %v4048
          %v4093 = vunpack.c.h.b16 %v4048
          %v4094 = vunpack.c.l.b16 %v4049
          %v4095 = vunpack.c.h.b16 %v4049
          %v4096 = vunpack.c.l.b16 %v4050
          %v4097 = vunpack.c.h.b16 %v4050
          %v4098 = vunpack.c.l.b16 %v4051
          %v4099 = vunpack.c.h.b16 %v4051
          %v4100 = vunpack.c.l.b16 %v4052
          %v4101 = vunpack.c.h.b16 %v4052
          %v4102 = vunpack.c.l.b16 %v4053
          %v4103 = vunpack.c.h.b16 %v4053
          %v4104 = vpack.c.b16 %v4074, %v4072
          %v4105 = vpack.c.b16 %v4075, %v4073
          %v4106 = vpack.c.b16 %v4078, %v4076
          %v4107 = vpack.c.b16 %v4079, %v4077
          %v4108 = vpack.c.b16 %v4082, %v4080
          %v4109 = vpack.c.b16 %v4083, %v4081
          %v4110 = vpack.c.b16 %v4086, %v4084
          %v4111 = vpack.c.b16 %v4087, %v4085
          %v4112 = vpack.c.b16 %v4090, %v4088
          %v4113 = vpack.c.b16 %v4091, %v4089
          %v4114 = vpack.c.b16 %v4094, %v4092
          %v4115 = vpack.c.b16 %v4095, %v4093
          %v4116 = vpack.c.b16 %v4098, %v4096
          %v4117 = vpack.c.b16 %v4099, %v4097
          %v4118 = vpack.c.b16 %v4102, %v4100
          %v4119 = vpack.c.b16 %v4103, %v4101
          %v4137 = vperm.slane %v4055, 0
          %v4138 = vperm.slane %v4055, 1
          %4141 = vmatpush.bf16.msra.mxu0 %v4118
          %4142 = vmatpush.bf16.msra.mxu0 %v4116
          %4143 = vmatpush.bf16.msra.mxu0 %v4114
          %4144 = vmatpush.bf16.msra.mxu0 %v4112
          %4145 = vmatpush.bf16.msra.mxu0 %v4110
          %4146 = vmatpush.bf16.msra.mxu0 %v4108
          %4147 = vmatpush.bf16.msra.mxu0 %v4106
          %4148 = vmatpush.bf16.msra.mxu0 %v4104
          %4149 = vmatmul.bf16.gmra.mxu0 %v4054
          %v4150 = vpop.f32.mrf.mxu0
          %v4151 = vadd.f32 %v4137, %v4150
          %v4152 = vpop.f32.mrf.mxu0
          %4153 = vdwg.mxu0
          %4154 = vmatpush.bf16.msra.mxu0 %v4119
          %4155 = vmatpush.bf16.msra.mxu0 %v4117
          %4156 = vmatpush.bf16.msra.mxu0 %v4115
          %4157 = vmatpush.bf16.msra.mxu0 %v4113
          %4158 = vmatpush.bf16.msra.mxu0 %v4111
          %4159 = vmatpush.bf16.msra.mxu0 %v4109
          %4160 = vmatpush.bf16.msra.mxu0 %v4107
          %4161 = vmatpush.bf16.msra.mxu0 %v4105
          %4162 = vmatmul.bf16.gmra.mxu0 %v4054
          %v4163 = vpop.f32.mrf.mxu0
          %v4164 = vadd.f32 %v4138, %v4163
          %v4165 = vpop.f32.mrf.mxu0
          %4166 = vdwg.mxu0
          %v4167 = vld [vmem:[%s75] sm:$0xf]
          %v4168 = vld [vmem:[%s75 + $0x4] sm:$0xf]
          %v4169 = vld [vmem:[%s75 + $0x8] sm:$0xf]
          %v4170 = vld [vmem:[%s75 + $0xc] sm:$0xf]
          %v4171 = vld [vmem:[%s75 + $0x10] sm:$0xf]
          %v4172 = vld [vmem:[%s75 + $0x14] sm:$0xf]
          %v4173 = vld [vmem:[%s75 + $0x18] sm:$0xf]
          %v4174 = vld [vmem:[%s75 + $0x1c] sm:$0xf]
          %v4175 = vld [vmem:[#allocation3] sm:$0x1]
          %v4184 = vunpack.c.l.b16 %v4167
          %v4185 = vunpack.c.l.b16 %v4168
          %v4186 = vunpack.c.l.b16 %v4169
          %v4187 = vunpack.c.l.b16 %v4170
          %v4188 = vunpack.c.l.b16 %v4171
          %v4189 = vunpack.c.l.b16 %v4172
          %v4190 = vunpack.c.l.b16 %v4173
          %v4191 = vunpack.c.l.b16 %v4174
          %v4192 = vpack.c.b16 %v4185, %v4184
          %v4193 = vpack.c.b16 %v4187, %v4186
          %v4194 = vpack.c.b16 %v4189, %v4188
          %v4195 = vpack.c.b16 %v4191, %v4190
          %4200 = vmatpush.bf16.msra.mxu0 0
          %4201 = vmatpush.bf16.msra.mxu0 0
          %4202 = vmatpush.bf16.msra.mxu0 0
          %4203 = vmatpush.bf16.msra.mxu0 0
          %4204 = vmatpush.bf16.msra.mxu0 %v4195
          %4205 = vmatpush.bf16.msra.mxu0 %v4194
          %4206 = vmatpush.bf16.msra.mxu0 %v4193
          %4207 = vmatpush.bf16.msra.mxu0 %v4192
          %4208 = vmatmul.bf16.gmra.mxu0 %v3754
          %v4209 = vpop.f32.mrf.mxu0
          %v4210 = vadd.f32 %v4175, %v4209
          %v4211 = vpop.f32.mrf.mxu0
          %4212 = vdwg.mxu0
          %v4213 = vadd.f32 %v4151, %v4210
          %v4214 = vxor.u32 %v4213, 2147483648
          %v4215 = vmul.f32 %v4214, 1.442695
          %v4216 = vpow.pop %v4215
          %v4217 = vadd.f32 %v4216, 1.0
          %v4218 = vrcp.pop %v4217
          %v4219 = vmul.f32 %v4217, %v4218
          %v4220 = vsub.f32 1.0, %v4219
          %v4221 = vmul.f32 %v4218, %v4220
          %v4222 = vadd.f32 %v4218, %v4221
          %vm4223 = vweird.f32 %v4217
          %vm4224 = vweird.f32 %v4218
          %vm4225 = vmor %vm4223, %vm4224
          %v4226 = vsel %vm4225, %v4218, %v4222
          %v4227 = vand.u32 2147483647, %v4217
          %vm4228 = vcmp.eq.f32.partialorder %v4227, 8.507059e+37
          %v4229 = vand.u32 %v4217, 2147483648
          %v4230 = vor.u32 1.1754944e-38, %v4229
          %v4231 = vsel %vm4228, %v4230, %v4226
          %v4232 = vmul.f32 1.0, %v4231
          %v4233 = vmul.f32 %v4232, %v3509
          %v4234 = vld [vmem:[%s79] sm:$0xf]
          %v4235 = vld [vmem:[%s79 + $0x4] sm:$0xf]
          %v4236 = vld [vmem:[%s79 + $0x8] sm:$0xf]
          %v4237 = vld [vmem:[%s79 + $0xc] sm:$0xf]
          %v4238 = vld [vmem:[%s79 + $0x10] sm:$0xf]
          %v4239 = vld [vmem:[%s79 + $0x14] sm:$0xf]
          %v4240 = vld [vmem:[%s79 + $0x18] sm:$0xf]
          %v4241 = vld [vmem:[%s79 + $0x1c] sm:$0xf]
          %v4242 = vpack.c.bf16 %v4233, %v4233
          %4244 = vrot.lane.b32.xlu0 %v4242, 64
          %v4245 = vpop.permute.xlu0 %4244
          %v4254 = vunpack.c.l.b16 %v4234
          %v4255 = vunpack.c.l.b16 %v4235
          %v4256 = vunpack.c.l.b16 %v4236
          %v4257 = vunpack.c.l.b16 %v4237
          %v4258 = vunpack.c.l.b16 %v4238
          %v4259 = vunpack.c.l.b16 %v4239
          %v4260 = vunpack.c.l.b16 %v4240
          %v4261 = vunpack.c.l.b16 %v4241
          %v4262 = vpack.c.b16 %v4255, %v4254
          %v4263 = vpack.c.b16 %v4257, %v4256
          %v4264 = vpack.c.b16 %v4259, %v4258
          %v4265 = vpack.c.b16 %v4261, %v4260
          %v4271 = vsel %vm1437, %v4245, 0
          %4273 = vmatpush.bf16.msra.mxu0 0
          %4274 = vmatpush.bf16.msra.mxu0 0
          %4275 = vmatpush.bf16.msra.mxu0 0
          %4276 = vmatpush.bf16.msra.mxu0 0
          %4277 = vmatpush.bf16.msra.mxu0 %v4265
          %4278 = vmatpush.bf16.msra.mxu0 %v4264
          %4279 = vmatpush.bf16.msra.mxu0 %v4263
          %4280 = vmatpush.bf16.msra.mxu0 %v4262
          %4281 = vmatmul.bf16.gmra.mxu0 %v4271
          %v4282 = vpop.f32.mrf.mxu0
          %v4283 = vadd.f32 0.0, %v4282
          %v4284 = vpop.f32.mrf.mxu0
          %4285 = vdwg.mxu0
          %v4286 = vadd.f32 %v4164, %v4283
          %v4287 = vld [vmem:[#allocation6] sm:$0x1]
          %v4288 = vadd.f32 %v4286, %v4287
          %v4289 = vtanh.pop %v4288
          %v4290 = vsub.f32 1.0, %v4232
          %v4291 = vmul.f32 %v4290, %v3500
          %v4292 = vmul.f32 %v4232, %v4289
          %v4293 = vadd.f32 %v4291, %v4292
          %v4294 = vld [vmem:[%s83] sm:$0xf]
          %v4295 = vld [vmem:[%s83 + $0x4] sm:$0xf]
          %v4296 = vld [vmem:[%s83 + $0x8] sm:$0xf]
          %v4297 = vld [vmem:[%s83 + $0xc] sm:$0xf]
          %v4298 = vld [vmem:[%s83 + $0x10] sm:$0xf]
          %v4299 = vld [vmem:[%s83 + $0x14] sm:$0xf]
          %v4300 = vld [vmem:[%s83 + $0x18] sm:$0xf]
          %v4301 = vld [vmem:[%s83 + $0x1c] sm:$0xf]
          %v4302 = vpack.c.bf16 %v4293, %v4293
          %v4303 = vld [vmem:[#allocation8] sm:$0x1]
          %v4312 = vunpack.c.l.b16 %v4294
          %v4313 = vunpack.c.l.b16 %v4295
          %v4314 = vunpack.c.l.b16 %v4296
          %v4315 = vunpack.c.l.b16 %v4297
          %v4316 = vunpack.c.l.b16 %v4298
          %v4317 = vunpack.c.l.b16 %v4299
          %v4318 = vunpack.c.l.b16 %v4300
          %v4319 = vunpack.c.l.b16 %v4301
          %v4320 = vpack.c.b16 %v4313, %v4312
          %v4321 = vpack.c.b16 %v4315, %v4314
          %v4322 = vpack.c.b16 %v4317, %v4316
          %v4323 = vpack.c.b16 %v4319, %v4318
          %v4329 = vsel %vm1437, %v4302, 0
          %4331 = vmatpush.bf16.msra.mxu0 0
          %4332 = vmatpush.bf16.msra.mxu0 0
          %4333 = vmatpush.bf16.msra.mxu0 0
          %4334 = vmatpush.bf16.msra.mxu0 0
          %4335 = vmatpush.bf16.msra.mxu0 %v4323
          %4336 = vmatpush.bf16.msra.mxu0 %v4322
          %4337 = vmatpush.bf16.msra.mxu0 %v4321
          %4338 = vmatpush.bf16.msra.mxu0 %v4320
          %4339 = vmatmul.bf16.gmra.mxu0 %v4329
          %v4340 = vpop.f32.mrf.mxu0
          %v4341 = vadd.f32 %v4303, %v4340
          %v4342 = vpop.f32.mrf.mxu0
          %4343 = vdwg.mxu0
          %v4344 = vsel %vm3365, %v4341, -inf
          %4345 = vmax.xlane.f32.xlu0 %v4344
          %v4346 = vpop.xlane.xlu0 %4345
          %v4347 = vsub.f32 %v4341, %v4346
          %v4348 = vmul.f32 %v4347, 1.442695
          %v4349 = vpow.pop %v4348
          %v4350 = vsel %vm3365, %v4349, 0.0
          %4351 = vadd.xlane.f32.xlu0 %v4350
          %v4352 = vpop.xlane.xlu0 %4351
          %v4353 = vrcp.pop %v4352
          %v4354 = vmul.f32 %v4352, %v4353
          %v4355 = vsub.f32 1.0, %v4354
          %v4356 = vmul.f32 %v4353, %v4355
          %v4357 = vadd.f32 %v4353, %v4356
          %vm4358 = vweird.f32 %v4352
          %vm4359 = vweird.f32 %v4353
          %vm4360 = vmor %vm4358, %vm4359
          %v4361 = vsel %vm4360, %v4353, %v4357
          %v4362 = vand.u32 2147483647, %v4352
          %vm4363 = vcmp.eq.f32.partialorder %v4362, 8.507059e+37
          %v4364 = vand.u32 %v4352, 2147483648
          %v4365 = vor.u32 1.1754944e-38, %v4364
          %v4366 = vsel %vm4363, %v4365, %v4361
          %v4367 = vmul.f32 %v4349, %v4366
          %s4368 = scalar_lea.vmem %s1415, %s3495 [#allocation9]
          %4369 = vst [vmem:[%s4368] sm:$0x1] %v4367
          %v4370 = vsel %vm3365, %v4367, -inf
          %4371 = vmax.xlane.f32.xlu0 %v4370
          %v4372 = vpop.xlane.xlu0 %4371
          %vm4373 = vcmp.eq.f32.partialorder %v4367, %v4372
          %v4374 = vsel %vm4373, %v3493, 128
          %v4375 = vsel %vm3365, %v4374, 2147483647
          %v4376 = vand.u32 %v4375, 65535
          %v4377 = vshra.s32 %v4375, 16
          %v4378 = vcvt.s32.f32 %v4376
          %v4379 = vcvt.s32.f32 %v4377
          %4380 = vmin.xlane.f32.xlu0 %v4379
          %v4381 = vpop.xlane.xlu0 %4380
          %vm4382 = vcmp.eq.f32.partialorder %v4379, %v4381
          %v4383 = vsel %vm4382, %v4378, inf
          %4384 = vmin.xlane.f32.xlu0 %v4383
          %v4385 = vpop.xlane.xlu0 %4384
          %v4386 = vcvt.f32.s32 %v4385
          %v4387 = vcvt.f32.s32 %v4381
          %v4388 = vshll.u32 %v4387, 16
          %v4389 = vadd.s32 %v4388, %v4386
          %v4390 = vrot.slane %v4389, 4
          %vm4391 = vcmp.lt.s32.totalorder %v4389, %v4390
          %v4392 = vsel %vm4391, %v4389, %v4390
          %v4393 = vrot.slane %v4392, 2
          %vm4394 = vcmp.lt.s32.totalorder %v4392, %v4393
          %v4395 = vsel %vm4394, %v4392, %v4393
          %v4396 = vrot.slane %v4395, 1
          %vm4397 = vcmp.lt.s32.totalorder %v4395, %v4396
          %v4398 = vsel %vm4397, %v4395, %v4396
          %s4399 = vtos %v4398
          %p4400 = scmp.lt.s32.totalorder %s4399, 50
          %s4401 = scalar_select %p4400, %s4399, 50
          %s4402 = scalar_lea.vmem %s87, %s4401
          %v4403 = vld [vmem:[%s4402] sm:$0x1]
        $region213: #{visualbert_rex_forward.1} parent=195 // loop_footer
          %s3499 = sadd.s32 1, %s3495
        $region214: #{visualbert_rex_forward.1} parent=195 // loop_footer_branch
          %3494 = sbr.rel target = $region210
        $region215: #{visualbert_rex_forward.1} parent=195 // loop_exit
          _
        %s4404 = sand.u32 %s1060, 1
        %s4405 = scalar_lea.sflag [#allocation5], %s4404
        %s4406 = sand.u32 %s1060, 1
        %s4407 = smul.addr %s4406, 4
        %s4408 = scalar_lea.vmem [#allocation9], %s4407
        %s4409 = sand.u32 %s1086, 1
        %s4410 = scalar_lea.sflag [#allocation11], %s4409
        %s4411 = sand.u32 %s1086, 1
        %s4412 = scalar_lea.vmem [#allocation10], %s4411
        // Predicated region
        $region216: #{visualbert_rex_forward.1} parent=195 // pred_check
          %p4413 = pneg %p1070
        $region217: #{visualbert_rex_forward.1} parent=195 // pred_check_branch
          %4415 = sbr.rel (%p4413) target = $region219
        $region218: #{visualbert_rex_forward.1} parent=195 // pred_region
          %4417 = vsyncadd %s4405, 0
          %s4418 = smul.addr %s113, 4
          %s4419 = scalar_lea.hbm %s89, %s4418
          %s4420 = sshll.u32 %s4408, 4
          %s4421 = int_to_ptr.vmem [resolvable:$true] %s4420
          %s4422 = sshll.u32 %s4419, 4
          %s4423 = int_to_ptr.hbm [resolvable:$true] %s4422
          %4428 = dma.vmem_to_hbm [thread:$0]  %s4421, 64, %s4423, %s4405, 16, 16, 1
        $region219: #{visualbert_rex_forward.1} parent=195 // pred_fallthru
          _
        // Predicated region
        $region220: #{visualbert_rex_forward.1} parent=195 // pred_check
          %p4429 = pneg %p1096
        $region221: #{visualbert_rex_forward.1} parent=195 // pred_check_branch
          %4431 = sbr.rel (%p4429) target = $region223
        $region222: #{visualbert_rex_forward.1} parent=195 // pred_region
          %4433 = vsyncadd %s4410, 0
          %s4434 = scalar_lea.hbm %s91, %s113
          %s4436 = sshll.u32 %s4412, 4
          %s4437 = int_to_ptr.vmem [resolvable:$true] %s4436
          %s4438 = sshll.u32 %s4434, 4
          %s4439 = int_to_ptr.hbm [resolvable:$true] %s4438
          %4441 = dma.vmem_to_hbm [thread:$0]  %s4437, 16, %s4439, %s4410
        $region223: #{visualbert_rex_forward.1} parent=195 // pred_fallthru
          _
      $region196: #{visualbert_rex_forward.1} parent=5 // pred_fallthru
        _
      %p4442 = scmp.le.s32.totalorder 2, %s108
      // Predicated region
      $region224: #{visualbert_rex_forward.1} parent=5 // pred_check
        %p4443 = pneg %p4442
      $region225: #{visualbert_rex_forward.1} parent=5 // pred_check_branch
        %4445 = sbr.rel (%p4443) target = $region227
      $region226: #{visualbert_rex_forward.1} parent=5 // pred_region
        %s4446 = ssub.s32 %s108, 2
        // Predicated region
        $region228: #{visualbert_rex_forward.1} parent=226 // pred_check
          %p4447 = pneg %p1076
        $region229: #{visualbert_rex_forward.1} parent=226 // pred_check_branch
          %4449 = sbr.rel (%p4447) target = $region231
        $region230: #{visualbert_rex_forward.1} parent=226 // pred_region
          %s4450 = sand.u32 %s1061, 1
          %s4451 = scalar_lea.sflag [#allocation5], %s4450
          %s4452 = sand.u32 %s1061, 1
          %s4453 = smul.addr %s4452, 4
          %s4454 = scalar_lea.vmem [#allocation9], %s4453
          %4456 = dma.done %s4451, 64
        $region231: #{visualbert_rex_forward.1} parent=226 // pred_fallthru
          _
        // Predicated region
        $region232: #{visualbert_rex_forward.1} parent=226 // pred_check
          %p4457 = pneg %p1102
        $region233: #{visualbert_rex_forward.1} parent=226 // pred_check_branch
          %4459 = sbr.rel (%p4457) target = $region235
        $region234: #{visualbert_rex_forward.1} parent=226 // pred_region
          %s4460 = sand.u32 %s1087, 1
          %s4461 = scalar_lea.sflag [#allocation11], %s4460
          %s4462 = sand.u32 %s1087, 1
          %s4463 = scalar_lea.vmem [#allocation10], %s4462
          %4465 = dma.done %s4461, 16
        $region235: #{visualbert_rex_forward.1} parent=226 // pred_fallthru
          _
      $region227: #{visualbert_rex_forward.1} parent=5 // pred_fallthru
        _
    $region6: #{visualbert_rex_forward.1} parent=1 // loop_footer
      %s112 = sadd.s32 1, %s108
    $region7: #{visualbert_rex_forward.1} parent=1 // loop_footer_branch
      %107 = sbr.rel target = $region3
    $region8: #{visualbert_rex_forward.1} parent=1 // loop_exit
      _
    %4466 = vsyncpa [#allocation4], 1
    %s4467 = scalar_lea.sflag [#allocation4], 1
    %4468 = vsyncpa %s4467, 1
    %4469 = vsyncpa [#allocation7], 1
    %4470 = vsyncpa [#allocation5], 1
    %s4471 = scalar_lea.sflag [#allocation5], 1
    %4472 = vsyncpa %s4471, 1
    %4473 = vsyncpa [#allocation11], 1
    %s4474 = scalar_lea.sflag [#allocation11], 1
    %4475 = vsyncpa %s4474, 1

</llo_original>
